<compile_context>
chip_gen: v6e
topology: v6e:2x2x1
jax: 0.10.0
libtpu: 0.0.40
codegen_flags: <defaults>
</compile_context>

<pallas_src>
import jax
import jax.numpy as jnp
from jax import lax
from jax.experimental import pallas as pl
from jax.experimental.pallas import tpu as pltpu


_VMEM = pl.BlockSpec(memory_space=pltpu.MemorySpace.VMEM)


# ----------------------------------------------------------------------------
# Fused Pallas kernel: layer-0 input projection + wavefront LSTM stack + decode
# ----------------------------------------------------------------------------
def _make_wavefront_lstm_decode_kernel(num_layers, T, B, H, V):
    L = num_layers
    S = T + L - 1  # wavefront steps

    def kernel(*refs):
        # refs: x, [w_ih_l, w_hh_l, b_l]*L, dec_w, dec_b, out, xw_scr, hseq_scr
        x_ref = refs[0]
        w_refs = refs[1:1 + 3 * L]
        dec_w_ref = refs[1 + 3 * L]
        dec_b_ref = refs[2 + 3 * L]
        out_ref = refs[3 + 3 * L]
        xw_scr, hseq_scr = refs[4 + 3 * L:]

        # ---- phase 1: layer-0 input projection for the WHOLE sequence -------
        # One big bf16 MXU matmul (f32 accumulate), bias folded in (single
        # broadcast, hoisted out of the recurrence).
        xw_scr[...] = (
            jnp.dot(x_ref[...], w_refs[0][...],
                    preferred_element_type=jnp.float32)
            + w_refs[2][...]
        )

        # ---- hoisted weight loads / bias broadcasts --------------------------
        whh = [w_refs[3 * l + 1][...] for l in range(L)]          # (H, 4H) f32
        wih = [None] + [w_refs[3 * l][...] for l in range(1, L)]  # (H, 4H) f32
        b_b = [None] + [jnp.broadcast_to(w_refs[3 * l + 2][...], (B, 4 * H))
                        for l in range(1, L)]

        def gate_act(gates):
            if H % 128 == 0:
                # lane-aligned slabs: no redundant EUP work
                i_g = jax.nn.sigmoid(gates[:, 0 * H:1 * H])
                f_g = jax.nn.sigmoid(gates[:, 1 * H:2 * H])
                g_g = jnp.tanh(gates[:, 2 * H:3 * H])
                o_g = jax.nn.sigmoid(gates[:, 3 * H:4 * H])
            else:
                # full-width over (B, 4H) (one vreg-wide op at 4H = 128)
                sig = jax.nn.sigmoid(gates)
                th = jnp.tanh(gates)
                i_g = sig[:, 0 * H:1 * H]
                f_g = sig[:, 1 * H:2 * H]
                g_g = th[:, 2 * H:3 * H]
                o_g = sig[:, 3 * H:4 * H]
            return i_g, f_g, g_g, o_g

        # ---- phase 2: wavefront recurrence -----------------------------------
        # At global step s, layer l processes time t = s - l using the
        # PREVIOUS step's carries (functional snapshot via fori_loop carry).
        def step(s, carry):
            hs, cs = carry                       # tuples of L x (B, H) vregs
            new_h, new_c = [], []
            for l in range(L):
                h_prev, c_prev = hs[l], cs[l]
                if l == 0:
                    # clamp keeps the read in-bounds on trailing invalid steps
                    row0 = pl.multiple_of(jnp.minimum(s, T - 1) * B, 8)
                    gates = xw_scr[pl.ds(row0, B), :] + jnp.dot(
                        h_prev, whh[0], preferred_element_type=jnp.float32)
                else:
                    gates = (
                        jnp.dot(hs[l - 1], wih[l],
                                preferred_element_type=jnp.float32)
                        + jnp.dot(h_prev, whh[l],
                                  preferred_element_type=jnp.float32)
                        + b_b[l]
                    )
                i_g, f_g, g_g, o_g = gate_act(gates)
                c_new = f_g * c_prev + i_g * g_g
                h_new = o_g * jnp.tanh(c_new)
                # scalar blend gate: keep old state on invalid wavefront steps
                keep = (jnp.logical_and(s >= l, s <= (T - 1) + l)
                        ).astype(jnp.float32)
                new_h.append(h_prev + keep * (h_new - h_prev))
                new_c.append(c_prev + keep * (c_new - c_prev))

            # last layer's hidden -> sequence buffer; (L-1)*B front pad rows
            # absorb the s < L-1 writes, so no per-step conditional is needed.
            row = pl.multiple_of(s * B, 8)
            hseq_scr[pl.ds(row, B), :] = new_h[L - 1]
            return tuple(new_h), tuple(new_c)

        zeros = tuple(jnp.zeros((B, H), jnp.float32) for _ in range(L))
        unroll = True if S <= 32 else 8          # bounded unroll for long T
        lax.fori_loop(0, S, step, (zeros, zeros), unroll=unroll)

        # ---- phase 3: fused decoder (bf16 MXU, f32 accumulate) ---------------
        h_seq = hseq_scr[pl.ds((L - 1) * B, T * B), :].astype(jnp.bfloat16)
        out_ref[...] = (
            jnp.dot(h_seq, dec_w_ref[...], preferred_element_type=jnp.float32)
            + dec_b_ref[...]
        )

    return kernel


# ----------------------------------------------------------------------------
# Wrapper
# ----------------------------------------------------------------------------
def stacked_lstm_decode(x_flat, layer_params, dec_w_t, dec_b, T, B):
    """x_flat: (T*B, D) time-major bf16 input, B already padded to x8.

    Returns logits (T*B, V) f32.
    """
    H = layer_params[0][1].shape[0]          # w_hh is (H, 4H)
    V = dec_w_t.shape[1]
    L = len(layer_params)

    flat_w = []
    for l, (w_ih, w_hh, b) in enumerate(layer_params):
        # layer 0's input projection runs as one big bf16 matmul; recurrent
        # weights (and layer>=1 input weights, now in the loop) stay f32.
        w_ih = w_ih.astype(jnp.bfloat16) if l == 0 else w_ih
        flat_w += [w_ih, w_hh, b]

    kernel = _make_wavefront_lstm_decode_kernel(L, T, B, H, V)
    return pl.pallas_call(
        kernel,
        out_shape=jax.ShapeDtypeStruct((T * B, V), jnp.float32),
        in_specs=[_VMEM] * (1 + 3 * L + 2),
        out_specs=_VMEM,
        scratch_shapes=[
            pltpu.VMEM((T * B, 4 * H), jnp.float32),           # x@W_ih0 + b0
            pltpu.VMEM(((T + L - 1) * B, H), jnp.float32),     # hidden sequence
        ],
        compiler_params=pltpu.CompilerParams(
            vmem_limit_bytes=32 * 1024 * 1024),
    )(x_flat, *flat_w, dec_w_t.astype(jnp.bfloat16), dec_b)


def init_params(key, vocab_num, input_dim, hidden_dim, num_layers):
    """Dense-equivalent parameters (uniform init), stored pre-transposed, f32."""
    params = {}
    keys = jax.random.split(key, 4 * num_layers + 4)
    k = iter(keys)

    params["embed"] = jax.random.uniform(
        next(k), (vocab_num, input_dim), jnp.float32, -0.1, 0.1)

    params["lstm"] = []
    bound = 1.0 / jnp.sqrt(hidden_dim)
    for layer in range(num_layers):
        in_dim = input_dim if layer == 0 else hidden_dim
        w_ih = jax.random.uniform(next(k), (4 * hidden_dim, in_dim),
                                  jnp.float32, -bound, bound)
        w_hh = jax.random.uniform(next(k), (4 * hidden_dim, hidden_dim),
                                  jnp.float32, -bound, bound)
        b_ih = jax.random.uniform(next(k), (4 * hidden_dim,), jnp.float32,
                                  -bound, bound)
        b_hh = jax.random.uniform(next(k), (4 * hidden_dim,), jnp.float32,
                                  -bound, bound)
        # Pre-transposed for the kernel: (in_dim, 4H), (H, 4H); combined bias.
        params["lstm"].append((w_ih.T, w_hh.T, (b_ih + b_hh).reshape(1, -1)))

    bound_d = 1.0 / jnp.sqrt(hidden_dim)
    dec_w = jax.random.uniform(next(k), (vocab_num, hidden_dim), jnp.float32,
                               -bound_d, bound_d)
    params["dec_w_t"] = dec_w.T                                   # (H, V)
    params["dec_b"] = jax.random.uniform(next(k), (1, vocab_num), jnp.float32,
                                         -bound_d, bound_d)
    return params


@jax.jit
def tt_rnn_forward(params, x_ids):
    """x_ids: (T, B) int32 token ids -> (T, B, vocab) logits."""
    # Embedding lookup (glue: pure gather). Dropout = identity at eval.
    emb = params["embed"][x_ids]                      # (T, B, D)
    T, B, D = emb.shape

    # Pad batch to the f32 sublane count so the kernel works on dense tiles.
    # TODO(synk): for large batches, tile batch into a parallel grid axis
    #             (megacore on v7x) instead of single-block padding.
    B_pad = ((B + 7) // 8) * 8
    if B_pad != B:
        emb = jnp.pad(emb, ((0, 0), (0, B_pad - B), (0, 0)))

    # Embed -> stacked-LSTM wavefront -> decoder, all in ONE Pallas kernel.
    logits = stacked_lstm_decode(
        emb.reshape(T * B_pad, D).astype(jnp.bfloat16),
        params["lstm"], params["dec_w_t"], params["dec_b"], T, B_pad)

    logits = logits.reshape(T, B_pad, -1)[:, :B, :]   # drop batch padding
    return logits


# ----------------------------------------------------------------------------
# Pure-JAX (f32) reference for validation
# ----------------------------------------------------------------------------
def reference_forward(params, x_ids):
    h = params["embed"][x_ids]
    for (w_ih, w_hh, b) in params["lstm"]:
        T, B, _ = h.shape
        H = w_hh.shape[0]
        hs = jnp.zeros((B, H), jnp.float32)
        cs = jnp.zeros((B, H), jnp.float32)
        outs = []
        for t in range(T):
            gates = h[t] @ w_ih + hs @ w_hh + b
            i_g = jax.nn.sigmoid(gates[:, 0 * H:1 * H])
            f_g = jax.nn.sigmoid(gates[:, 1 * H:2 * H])
            g_g = jnp.tanh(gates[:, 2 * H:3 * H])
            o_g = jax.nn.sigmoid(gates[:, 3 * H:4 * H])
            cs = f_g * cs + i_g * g_g
            hs = o_g * jnp.tanh(cs)
            outs.append(hs)
        h = jnp.stack(outs, axis=0)
    T, B, H = h.shape
    dec = h.reshape(T * B, H) @ params["dec_w_t"] + params["dec_b"]
    return dec.reshape(T, B, -1)


# ----------------------------------------------------------------------------
if __name__ == "__main__":
    VOCAB = 64
    INPUT_DIM = 32
    HIDDEN = 32
    NUM_LAYERS = 2
    SEQ = 8
    BATCH = 2

    key = jax.random.PRNGKey(0)
    k_param, k_data = jax.random.split(key)

    params = init_params(k_param, VOCAB, INPUT_DIM, HIDDEN, NUM_LAYERS)
    x_ids = jax.random.randint(k_data, (SEQ, BATCH), 0, VOCAB, dtype=jnp.int32)

    out = tt_rnn_forward(params, x_ids)
    out = jax.block_until_ready(out)

    ref = reference_forward(params, x_ids)
    assert out.shape == (SEQ, BATCH, VOCAB), out.shape
    # bf16 inputs on the throughput matmuls (f32 accumulation) -> loosened tol
    assert jnp.allclose(out, ref, atol=1e-2, rtol=2e-2), "mismatch vs reference"

    print("KERNEL_OK")
</pallas_src>

<mosaic_0001>
module attributes {stable_mosaic.version = 11 : i64} {
  func.func @kernel(%arg0: memref<64x32xbf16, #tpu.memory_space<vmem>>, %arg1: memref<32x128xbf16, #tpu.memory_space<vmem>>, %arg2: memref<32x128xf32, #tpu.memory_space<vmem>>, %arg3: memref<1x128xf32, #tpu.memory_space<vmem>>, %arg4: memref<32x128xf32, #tpu.memory_space<vmem>>, %arg5: memref<32x128xf32, #tpu.memory_space<vmem>>, %arg6: memref<1x128xf32, #tpu.memory_space<vmem>>, %arg7: memref<32x64xbf16, #tpu.memory_space<vmem>>, %arg8: memref<1x64xf32, #tpu.memory_space<vmem>>, %arg9: memref<64x64xf32, #tpu.memory_space<vmem>>, %arg10: memref<64x128xf32, #tpu.memory_space<vmem>>, %arg11: memref<72x32xf32, #tpu.memory_space<vmem>>) attributes {dimension_semantics = [], scalar_prefetch = 0 : i64, scratch_operands = 2 : i64, tpu.core_type = #tpu.core_type<tc>} {
    %c0 = arith.constant 0 : index
    %c0_0 = arith.constant 0 : index
    %0 = vector.load %arg0[%c0, %c0_0] : memref<64x32xbf16, #tpu.memory_space<vmem>>, vector<64x32xbf16>
    %c0_1 = arith.constant 0 : index
    %c0_2 = arith.constant 0 : index
    %1 = vector.load %arg1[%c0_1, %c0_2] : memref<32x128xbf16, #tpu.memory_space<vmem>>, vector<32x128xbf16>
    %cst = arith.constant dense<0.000000e+00> : vector<64x128xf32>
    %2 = tpu.matmul %0, %1, %cst {dimension_numbers = #tpu.dot_dimension_numbers<[1], [0], [0], [1], [0, 0, 1, 1], [], []>} : vector<64x32xbf16>, vector<32x128xbf16>, vector<64x128xf32> -> vector<64x128xf32>
    %c0_3 = arith.constant 0 : index
    %c0_4 = arith.constant 0 : index
    %3 = vector.load %arg3[%c0_3, %c0_4] : memref<1x128xf32, #tpu.memory_space<vmem>>, vector<1x128xf32>
    %4 = vector.broadcast %3 : vector<1x128xf32> to vector<64x128xf32>
    %5 = arith.addf %2, %4 : vector<64x128xf32>
    %c0_5 = arith.constant 0 : index
    %c0_6 = arith.constant 0 : index
    %6 = vector.load %arg10[%c0_5, %c0_6] : memref<64x128xf32, #tpu.memory_space<vmem>>, vector<64x128xf32>
    tpu.vector_store %arg10[%c0_5, %c0_6], %5 {strides = array<i32>} : memref<64x128xf32, #tpu.memory_space<vmem>>, vector<64x128xf32>,
    %c0_7 = arith.constant 0 : index
    %c0_8 = arith.constant 0 : index
    %7 = vector.load %arg2[%c0_7, %c0_8] : memref<32x128xf32, #tpu.memory_space<vmem>>, vector<32x128xf32>
    %c0_9 = arith.constant 0 : index
    %c0_10 = arith.constant 0 : index
    %8 = vector.load %arg5[%c0_9, %c0_10] : memref<32x128xf32, #tpu.memory_space<vmem>>, vector<32x128xf32>
    %c0_11 = arith.constant 0 : index
    %c0_12 = arith.constant 0 : index
    %9 = vector.load %arg4[%c0_11, %c0_12] : memref<32x128xf32, #tpu.memory_space<vmem>>, vector<32x128xf32>
    %c0_13 = arith.constant 0 : index
    %c0_14 = arith.constant 0 : index
    %10 = vector.load %arg6[%c0_13, %c0_14] : memref<1x128xf32, #tpu.memory_space<vmem>>, vector<1x128xf32>
    %11 = vector.shape_cast %10 : vector<1x128xf32> to vector<1x128xf32>
    %12 = vector.broadcast %11 : vector<1x128xf32> to vector<8x128xf32>
    %cst_15 = arith.constant 0.000000e+00 : f32
    %13 = vector.broadcast %cst_15 : f32 to vector<8x32xf32>
    %cst_16 = arith.constant 0.000000e+00 : f32
    %14 = vector.broadcast %cst_16 : f32 to vector<8x32xf32>
    %c0_i32 = arith.constant 0 : i32
    %c7_i32 = arith.constant 7 : i32
    %15 = arith.minsi %c0_i32, %c7_i32 : i32
    %c8_i32 = arith.constant 8 : i32
    %16 = arith.muli %15, %c8_i32 : i32
    %17 = tpu.assume_multiple %16, 8 : i32
    %18 = arith.index_cast %17 : i32 to index
    %c0_17 = arith.constant 0 : index
    %19 = vector.load %arg10[%18, %c0_17] : memref<64x128xf32, #tpu.memory_space<vmem>>, vector<8x128xf32>
    %cst_18 = arith.constant dense<0.000000e+00> : vector<8x128xf32>
    %20 = tpu.matmul %13, %7, %cst_18 {dimension_numbers = #tpu.dot_dimension_numbers<[1], [0], [0], [1], [0, 0, 1, 1], [], []>} : vector<8x32xf32>, vector<32x128xf32>, vector<8x128xf32> -> vector<8x128xf32>
    %21 = arith.addf %19, %20 : vector<8x128xf32>
    %22 = arith.negf %21 : vector<8x128xf32>
    %23 = math.exp %22 : vector<8x128xf32>
    %cst_19 = arith.constant 1.000000e+00 : f32
    %24 = vector.broadcast %cst_19 : f32 to vector<8x128xf32>
    %25 = arith.addf %24, %23 : vector<8x128xf32>
    %26 = arith.divf %24, %25 : vector<8x128xf32>
    %27 = math.tanh %21 : vector<8x128xf32>
    %28 = vector.extract_strided_slice %26 {offsets = [0, 0], sizes = [8, 32], strides = [1, 1]} : vector<8x128xf32> to vector<8x32xf32>
    %29 = vector.extract_strided_slice %26 {offsets = [0, 32], sizes = [8, 32], strides = [1, 1]} : vector<8x128xf32> to vector<8x32xf32>
    %30 = vector.extract_strided_slice %27 {offsets = [0, 64], sizes = [8, 32], strides = [1, 1]} : vector<8x128xf32> to vector<8x32xf32>
    %31 = vector.extract_strided_slice %26 {offsets = [0, 96], sizes = [8, 32], strides = [1, 1]} : vector<8x128xf32> to vector<8x32xf32>
    %32 = arith.mulf %29, %13 : vector<8x32xf32>
    %33 = arith.mulf %28, %30 : vector<8x32xf32>
    %34 = arith.addf %32, %33 : vector<8x32xf32>
    %35 = math.tanh %34 : vector<8x32xf32>
    %36 = arith.mulf %31, %35 : vector<8x32xf32>
    %c0_i32_20 = arith.constant 0 : i32
    %37 = arith.cmpi sge, %c0_i32, %c0_i32_20 : i32
    %c7_i32_21 = arith.constant 7 : i32
    %38 = arith.cmpi sle, %c0_i32, %c7_i32_21 : i32
    %39 = arith.andi %37, %38 : i1
    %40 = arith.extui %39 : i1 to i32
    %41 = arith.sitofp %40 : i32 to f32
    %42 = arith.subf %36, %13 : vector<8x32xf32>
    %43 = vector.broadcast %41 : f32 to vector<8x32xf32>
    %44 = arith.mulf %43, %42 : vector<8x32xf32>
    %45 = arith.addf %13, %44 : vector<8x32xf32>
    %46 = arith.subf %34, %13 : vector<8x32xf32>
    %47 = vector.broadcast %41 : f32 to vector<8x32xf32>
    %48 = arith.mulf %47, %46 : vector<8x32xf32>
    %49 = arith.addf %13, %48 : vector<8x32xf32>
    %cst_22 = arith.constant dense<0.000000e+00> : vector<8x128xf32>
    %50 = tpu.matmul %13, %9, %cst_22 {dimension_numbers = #tpu.dot_dimension_numbers<[1], [0], [0], [1], [0, 0, 1, 1], [], []>} : vector<8x32xf32>, vector<32x128xf32>, vector<8x128xf32> -> vector<8x128xf32>
    %cst_23 = arith.constant dense<0.000000e+00> : vector<8x128xf32>
    %51 = tpu.matmul %14, %8, %cst_23 {dimension_numbers = #tpu.dot_dimension_numbers<[1], [0], [0], [1], [0, 0, 1, 1], [], []>} : vector<8x32xf32>, vector<32x128xf32>, vector<8x128xf32> -> vector<8x128xf32>
    %52 = arith.addf %50, %51 : vector<8x128xf32>
    %53 = arith.addf %52, %12 : vector<8x128xf32>
    %54 = arith.negf %53 : vector<8x128xf32>
    %55 = math.exp %54 : vector<8x128xf32>
    %cst_24 = arith.constant 1.000000e+00 : f32
    %56 = vector.broadcast %cst_24 : f32 to vector<8x128xf32>
    %57 = arith.addf %56, %55 : vector<8x128xf32>
    %58 = arith.divf %56, %57 : vector<8x128xf32>
    %59 = math.tanh %53 : vector<8x128xf32>
    %60 = vector.extract_strided_slice %58 {offsets = [0, 0], sizes = [8, 32], strides = [1, 1]} : vector<8x128xf32> to vector<8x32xf32>
    %61 = vector.extract_strided_slice %58 {offsets = [0, 32], sizes = [8, 32], strides = [1, 1]} : vector<8x128xf32> to vector<8x32xf32>
    %62 = vector.extract_strided_slice %59 {offsets = [0, 64], sizes = [8, 32], strides = [1, 1]} : vector<8x128xf32> to vector<8x32xf32>
    %63 = vector.extract_strided_slice %58 {offsets = [0, 96], sizes = [8, 32], strides = [1, 1]} : vector<8x128xf32> to vector<8x32xf32>
    %64 = arith.mulf %61, %14 : vector<8x32xf32>
    %65 = arith.mulf %60, %62 : vector<8x32xf32>
    %66 = arith.addf %64, %65 : vector<8x32xf32>
    %67 = math.tanh %66 : vector<8x32xf32>
    %68 = arith.mulf %63, %67 : vector<8x32xf32>
    %c1_i32 = arith.constant 1 : i32
    %69 = arith.cmpi sge, %c0_i32, %c1_i32 : i32
    %c8_i32_25 = arith.constant 8 : i32
    %70 = arith.cmpi sle, %c0_i32, %c8_i32_25 : i32
    %71 = arith.andi %69, %70 : i1
    %72 = arith.extui %71 : i1 to i32
    %73 = arith.sitofp %72 : i32 to f32
    %74 = arith.subf %68, %14 : vector<8x32xf32>
    %75 = vector.broadcast %73 : f32 to vector<8x32xf32>
    %76 = arith.mulf %75, %74 : vector<8x32xf32>
    %77 = arith.addf %14, %76 : vector<8x32xf32>
    %78 = arith.subf %66, %14 : vector<8x32xf32>
    %79 = vector.broadcast %73 : f32 to vector<8x32xf32>
    %80 = arith.mulf %79, %78 : vector<8x32xf32>
    %81 = arith.addf %14, %80 : vector<8x32xf32>
    %c8_i32_26 = arith.constant 8 : i32
    %82 = arith.muli %c0_i32, %c8_i32_26 : i32
    %83 = tpu.assume_multiple %82, 8 : i32
    %84 = arith.index_cast %83 : i32 to index
    %c0_27 = arith.constant 0 : index
    %85 = vector.load %arg11[%84, %c0_27] : memref<72x32xf32, #tpu.memory_space<vmem>>, vector<8x32xf32>
    tpu.vector_store %arg11[%84, %c0_27], %77 {strides = array<i32>} : memref<72x32xf32, #tpu.memory_space<vmem>>, vector<8x32xf32>,
    %c1_i32_28 = arith.constant 1 : i32
    %c7_i32_29 = arith.constant 7 : i32
    %86 = arith.minsi %c1_i32_28, %c7_i32_29 : i32
    %c8_i32_30 = arith.constant 8 : i32
    %87 = arith.muli %86, %c8_i32_30 : i32
    %88 = tpu.assume_multiple %87, 8 : i32
    %89 = arith.index_cast %88 : i32 to index
    %c0_31 = arith.constant 0 : index
    %90 = vector.load %arg10[%89, %c0_31] : memref<64x128xf32, #tpu.memory_space<vmem>>, vector<8x128xf32>
    %cst_32 = arith.constant dense<0.000000e+00> : vector<8x128xf32>
    %91 = tpu.matmul %45, %7, %cst_32 {dimension_numbers = #tpu.dot_dimension_numbers<[1], [0], [0], [1], [0, 0, 1, 1], [], []>} : vector<8x32xf32>, vector<32x128xf32>, vector<8x128xf32> -> vector<8x128xf32>
    %92 = arith.addf %90, %91 : vector<8x128xf32>
    %93 = arith.negf %92 : vector<8x128xf32>
    %94 = math.exp %93 : vector<8x128xf32>
    %cst_33 = arith.constant 1.000000e+00 : f32
    %95 = vector.broadcast %cst_33 : f32 to vector<8x128xf32>
    %96 = arith.addf %95, %94 : vector<8x128xf32>
    %97 = arith.divf %95, %96 : vector<8x128xf32>
    %98 = math.tanh %92 : vector<8x128xf32>
    %99 = vector.extract_strided_slice %97 {offsets = [0, 0], sizes = [8, 32], strides = [1, 1]} : vector<8x128xf32> to vector<8x32xf32>
    %100 = vector.extract_strided_slice %97 {offsets = [0, 32], sizes = [8, 32], strides = [1, 1]} : vector<8x128xf32> to vector<8x32xf32>
    %101 = vector.extract_strided_slice %98 {offsets = [0, 64], sizes = [8, 32], strides = [1, 1]} : vector<8x128xf32> to vector<8x32xf32>
    %102 = vector.extract_strided_slice %97 {offsets = [0, 96], sizes = [8, 32], strides = [1, 1]} : vector<8x128xf32> to vector<8x32xf32>
    %103 = arith.mulf %100, %49 : vector<8x32xf32>
    %104 = arith.mulf %99, %101 : vector<8x32xf32>
    %105 = arith.addf %103, %104 : vector<8x32xf32>
    %106 = math.tanh %105 : vector<8x32xf32>
    %107 = arith.mulf %102, %106 : vector<8x32xf32>
    %c0_i32_34 = arith.constant 0 : i32
    %108 = arith.cmpi sge, %c1_i32_28, %c0_i32_34 : i32
    %c7_i32_35 = arith.constant 7 : i32
    %109 = arith.cmpi sle, %c1_i32_28, %c7_i32_35 : i32
    %110 = arith.andi %108, %109 : i1
    %111 = arith.extui %110 : i1 to i32
    %112 = arith.sitofp %111 : i32 to f32
    %113 = arith.subf %107, %45 : vector<8x32xf32>
    %114 = vector.broadcast %112 : f32 to vector<8x32xf32>
    %115 = arith.mulf %114, %113 : vector<8x32xf32>
    %116 = arith.addf %45, %115 : vector<8x32xf32>
    %117 = arith.subf %105, %49 : vector<8x32xf32>
    %118 = vector.broadcast %112 : f32 to vector<8x32xf32>
    %119 = arith.mulf %118, %117 : vector<8x32xf32>
    %120 = arith.addf %49, %119 : vector<8x32xf32>
    %cst_36 = arith.constant dense<0.000000e+00> : vector<8x128xf32>
    %121 = tpu.matmul %45, %9, %cst_36 {dimension_numbers = #tpu.dot_dimension_numbers<[1], [0], [0], [1], [0, 0, 1, 1], [], []>} : vector<8x32xf32>, vector<32x128xf32>, vector<8x128xf32> -> vector<8x128xf32>
    %cst_37 = arith.constant dense<0.000000e+00> : vector<8x128xf32>
    %122 = tpu.matmul %77, %8, %cst_37 {dimension_numbers = #tpu.dot_dimension_numbers<[1], [0], [0], [1], [0, 0, 1, 1], [], []>} : vector<8x32xf32>, vector<32x128xf32>, vector<8x128xf32> -> vector<8x128xf32>
    %123 = arith.addf %121, %122 : vector<8x128xf32>
    %124 = arith.addf %123, %12 : vector<8x128xf32>
    %125 = arith.negf %124 : vector<8x128xf32>
    %126 = math.exp %125 : vector<8x128xf32>
    %cst_38 = arith.constant 1.000000e+00 : f32
    %127 = vector.broadcast %cst_38 : f32 to vector<8x128xf32>
    %128 = arith.addf %127, %126 : vector<8x128xf32>
    %129 = arith.divf %127, %128 : vector<8x128xf32>
    %130 = math.tanh %124 : vector<8x128xf32>
    %131 = vector.extract_strided_slice %129 {offsets = [0, 0], sizes = [8, 32], strides = [1, 1]} : vector<8x128xf32> to vector<8x32xf32>
    %132 = vector.extract_strided_slice %129 {offsets = [0, 32], sizes = [8, 32], strides = [1, 1]} : vector<8x128xf32> to vector<8x32xf32>
    %133 = vector.extract_strided_slice %130 {offsets = [0, 64], sizes = [8, 32], strides = [1, 1]} : vector<8x128xf32> to vector<8x32xf32>
    %134 = vector.extract_strided_slice %129 {offsets = [0, 96], sizes = [8, 32], strides = [1, 1]} : vector<8x128xf32> to vector<8x32xf32>
    %135 = arith.mulf %132, %81 : vector<8x32xf32>
    %136 = arith.mulf %131, %133 : vector<8x32xf32>
    %137 = arith.addf %135, %136 : vector<8x32xf32>
    %138 = math.tanh %137 : vector<8x32xf32>
    %139 = arith.mulf %134, %138 : vector<8x32xf32>
    %c1_i32_39 = arith.constant 1 : i32
    %140 = arith.cmpi sge, %c1_i32_28, %c1_i32_39 : i32
    %c8_i32_40 = arith.constant 8 : i32
    %141 = arith.cmpi sle, %c1_i32_28, %c8_i32_40 : i32
    %142 = arith.andi %140, %141 : i1
    %143 = arith.extui %142 : i1 to i32
    %144 = arith.sitofp %143 : i32 to f32
    %145 = arith.subf %139, %77 : vector<8x32xf32>
    %146 = vector.broadcast %144 : f32 to vector<8x32xf32>
    %147 = arith.mulf %146, %145 : vector<8x32xf32>
    %148 = arith.addf %77, %147 : vector<8x32xf32>
    %149 = arith.subf %137, %81 : vector<8x32xf32>
    %150 = vector.broadcast %144 : f32 to vector<8x32xf32>
    %151 = arith.mulf %150, %149 : vector<8x32xf32>
    %152 = arith.addf %81, %151 : vector<8x32xf32>
    %c8_i32_41 = arith.constant 8 : i32
    %153 = arith.muli %c1_i32_28, %c8_i32_41 : i32
    %154 = tpu.assume_multiple %153, 8 : i32
    %155 = arith.index_cast %154 : i32 to index
    %c0_42 = arith.constant 0 : index
    %156 = vector.load %arg11[%155, %c0_42] : memref<72x32xf32, #tpu.memory_space<vmem>>, vector<8x32xf32>
    tpu.vector_store %arg11[%155, %c0_42], %148 {strides = array<i32>} : memref<72x32xf32, #tpu.memory_space<vmem>>, vector<8x32xf32>,
    %c2_i32 = arith.constant 2 : i32
    %c7_i32_43 = arith.constant 7 : i32
    %157 = arith.minsi %c2_i32, %c7_i32_43 : i32
    %c8_i32_44 = arith.constant 8 : i32
    %158 = arith.muli %157, %c8_i32_44 : i32
    %159 = tpu.assume_multiple %158, 8 : i32
    %160 = arith.index_cast %159 : i32 to index
    %c0_45 = arith.constant 0 : index
    %161 = vector.load %arg10[%160, %c0_45] : memref<64x128xf32, #tpu.memory_space<vmem>>, vector<8x128xf32>
    %cst_46 = arith.constant dense<0.000000e+00> : vector<8x128xf32>
    %162 = tpu.matmul %116, %7, %cst_46 {dimension_numbers = #tpu.dot_dimension_numbers<[1], [0], [0], [1], [0, 0, 1, 1], [], []>} : vector<8x32xf32>, vector<32x128xf32>, vector<8x128xf32> -> vector<8x128xf32>
    %163 = arith.addf %161, %162 : vector<8x128xf32>
    %164 = arith.negf %163 : vector<8x128xf32>
    %165 = math.exp %164 : vector<8x128xf32>
    %cst_47 = arith.constant 1.000000e+00 : f32
    %166 = vector.broadcast %cst_47 : f32 to vector<8x128xf32>
    %167 = arith.addf %166, %165 : vector<8x128xf32>
    %168 = arith.divf %166, %167 : vector<8x128xf32>
    %169 = math.tanh %163 : vector<8x128xf32>
    %170 = vector.extract_strided_slice %168 {offsets = [0, 0], sizes = [8, 32], strides = [1, 1]} : vector<8x128xf32> to vector<8x32xf32>
    %171 = vector.extract_strided_slice %168 {offsets = [0, 32], sizes = [8, 32], strides = [1, 1]} : vector<8x128xf32> to vector<8x32xf32>
    %172 = vector.extract_strided_slice %169 {offsets = [0, 64], sizes = [8, 32], strides = [1, 1]} : vector<8x128xf32> to vector<8x32xf32>
    %173 = vector.extract_strided_slice %168 {offsets = [0, 96], sizes = [8, 32], strides = [1, 1]} : vector<8x128xf32> to vector<8x32xf32>
    %174 = arith.mulf %171, %120 : vector<8x32xf32>
    %175 = arith.mulf %170, %172 : vector<8x32xf32>
    %176 = arith.addf %174, %175 : vector<8x32xf32>
    %177 = math.tanh %176 : vector<8x32xf32>
    %178 = arith.mulf %173, %177 : vector<8x32xf32>
    %c0_i32_48 = arith.constant 0 : i32
    %179 = arith.cmpi sge, %c2_i32, %c0_i32_48 : i32
    %c7_i32_49 = arith.constant 7 : i32
    %180 = arith.cmpi sle, %c2_i32, %c7_i32_49 : i32
    %181 = arith.andi %179, %180 : i1
    %182 = arith.extui %181 : i1 to i32
    %183 = arith.sitofp %182 : i32 to f32
    %184 = arith.subf %178, %116 : vector<8x32xf32>
    %185 = vector.broadcast %183 : f32 to vector<8x32xf32>
    %186 = arith.mulf %185, %184 : vector<8x32xf32>
    %187 = arith.addf %116, %186 : vector<8x32xf32>
    %188 = arith.subf %176, %120 : vector<8x32xf32>
    %189 = vector.broadcast %183 : f32 to vector<8x32xf32>
    %190 = arith.mulf %189, %188 : vector<8x32xf32>
    %191 = arith.addf %120, %190 : vector<8x32xf32>
    %cst_50 = arith.constant dense<0.000000e+00> : vector<8x128xf32>
    %192 = tpu.matmul %116, %9, %cst_50 {dimension_numbers = #tpu.dot_dimension_numbers<[1], [0], [0], [1], [0, 0, 1, 1], [], []>} : vector<8x32xf32>, vector<32x128xf32>, vector<8x128xf32> -> vector<8x128xf32>
    %cst_51 = arith.constant dense<0.000000e+00> : vector<8x128xf32>
    %193 = tpu.matmul %148, %8, %cst_51 {dimension_numbers = #tpu.dot_dimension_numbers<[1], [0], [0], [1], [0, 0, 1, 1], [], []>} : vector<8x32xf32>, vector<32x128xf32>, vector<8x128xf32> -> vector<8x128xf32>
    %194 = arith.addf %192, %193 : vector<8x128xf32>
    %195 = arith.addf %194, %12 : vector<8x128xf32>
    %196 = arith.negf %195 : vector<8x128xf32>
    %197 = math.exp %196 : vector<8x128xf32>
    %cst_52 = arith.constant 1.000000e+00 : f32
    %198 = vector.broadcast %cst_52 : f32 to vector<8x128xf32>
    %199 = arith.addf %198, %197 : vector<8x128xf32>
    %200 = arith.divf %198, %199 : vector<8x128xf32>
    %201 = math.tanh %195 : vector<8x128xf32>
    %202 = vector.extract_strided_slice %200 {offsets = [0, 0], sizes = [8, 32], strides = [1, 1]} : vector<8x128xf32> to vector<8x32xf32>
    %203 = vector.extract_strided_slice %200 {offsets = [0, 32], sizes = [8, 32], strides = [1, 1]} : vector<8x128xf32> to vector<8x32xf32>
    %204 = vector.extract_strided_slice %201 {offsets = [0, 64], sizes = [8, 32], strides = [1, 1]} : vector<8x128xf32> to vector<8x32xf32>
    %205 = vector.extract_strided_slice %200 {offsets = [0, 96], sizes = [8, 32], strides = [1, 1]} : vector<8x128xf32> to vector<8x32xf32>
    %206 = arith.mulf %203, %152 : vector<8x32xf32>
    %207 = arith.mulf %202, %204 : vector<8x32xf32>
    %208 = arith.addf %206, %207 : vector<8x32xf32>
    %209 = math.tanh %208 : vector<8x32xf32>
    %210 = arith.mulf %205, %209 : vector<8x32xf32>
    %c1_i32_53 = arith.constant 1 : i32
    %211 = arith.cmpi sge, %c2_i32, %c1_i32_53 : i32
    %c8_i32_54 = arith.constant 8 : i32
    %212 = arith.cmpi sle, %c2_i32, %c8_i32_54 : i32
    %213 = arith.andi %211, %212 : i1
    %214 = arith.extui %213 : i1 to i32
    %215 = arith.sitofp %214 : i32 to f32
    %216 = arith.subf %210, %148 : vector<8x32xf32>
    %217 = vector.broadcast %215 : f32 to vector<8x32xf32>
    %218 = arith.mulf %217, %216 : vector<8x32xf32>
    %219 = arith.addf %148, %218 : vector<8x32xf32>
    %220 = arith.subf %208, %152 : vector<8x32xf32>
    %221 = vector.broadcast %215 : f32 to vector<8x32xf32>
    %222 = arith.mulf %221, %220 : vector<8x32xf32>
    %223 = arith.addf %152, %222 : vector<8x32xf32>
    %c8_i32_55 = arith.constant 8 : i32
    %224 = arith.muli %c2_i32, %c8_i32_55 : i32
    %225 = tpu.assume_multiple %224, 8 : i32
    %226 = arith.index_cast %225 : i32 to index
    %c0_56 = arith.constant 0 : index
    %227 = vector.load %arg11[%226, %c0_56] : memref<72x32xf32, #tpu.memory_space<vmem>>, vector<8x32xf32>
    tpu.vector_store %arg11[%226, %c0_56], %219 {strides = array<i32>} : memref<72x32xf32, #tpu.memory_space<vmem>>, vector<8x32xf32>,
    %c3_i32 = arith.constant 3 : i32
    %c7_i32_57 = arith.constant 7 : i32
    %228 = arith.minsi %c3_i32, %c7_i32_57 : i32
    %c8_i32_58 = arith.constant 8 : i32
    %229 = arith.muli %228, %c8_i32_58 : i32
    %230 = tpu.assume_multiple %229, 8 : i32
    %231 = arith.index_cast %230 : i32 to index
    %c0_59 = arith.constant 0 : index
    %232 = vector.load %arg10[%231, %c0_59] : memref<64x128xf32, #tpu.memory_space<vmem>>, vector<8x128xf32>
    %cst_60 = arith.constant dense<0.000000e+00> : vector<8x128xf32>
    %233 = tpu.matmul %187, %7, %cst_60 {dimension_numbers = #tpu.dot_dimension_numbers<[1], [0], [0], [1], [0, 0, 1, 1], [], []>} : vector<8x32xf32>, vector<32x128xf32>, vector<8x128xf32> -> vector<8x128xf32>
    %234 = arith.addf %232, %233 : vector<8x128xf32>
    %235 = arith.negf %234 : vector<8x128xf32>
    %236 = math.exp %235 : vector<8x128xf32>
    %cst_61 = arith.constant 1.000000e+00 : f32
    %237 = vector.broadcast %cst_61 : f32 to vector<8x128xf32>
    %238 = arith.addf %237, %236 : vector<8x128xf32>
    %239 = arith.divf %237, %238 : vector<8x128xf32>
    %240 = math.tanh %234 : vector<8x128xf32>
    %241 = vector.extract_strided_slice %239 {offsets = [0, 0], sizes = [8, 32], strides = [1, 1]} : vector<8x128xf32> to vector<8x32xf32>
    %242 = vector.extract_strided_slice %239 {offsets = [0, 32], sizes = [8, 32], strides = [1, 1]} : vector<8x128xf32> to vector<8x32xf32>
    %243 = vector.extract_strided_slice %240 {offsets = [0, 64], sizes = [8, 32], strides = [1, 1]} : vector<8x128xf32> to vector<8x32xf32>
    %244 = vector.extract_strided_slice %239 {offsets = [0, 96], sizes = [8, 32], strides = [1, 1]} : vector<8x128xf32> to vector<8x32xf32>
    %245 = arith.mulf %242, %191 : vector<8x32xf32>
    %246 = arith.mulf %241, %243 : vector<8x32xf32>
    %247 = arith.addf %245, %246 : vector<8x32xf32>
    %248 = math.tanh %247 : vector<8x32xf32>
    %249 = arith.mulf %244, %248 : vector<8x32xf32>
    %c0_i32_62 = arith.constant 0 : i32
    %250 = arith.cmpi sge, %c3_i32, %c0_i32_62 : i32
    %c7_i32_63 = arith.constant 7 : i32
    %251 = arith.cmpi sle, %c3_i32, %c7_i32_63 : i32
    %252 = arith.andi %250, %251 : i1
    %253 = arith.extui %252 : i1 to i32
    %254 = arith.sitofp %253 : i32 to f32
    %255 = arith.subf %249, %187 : vector<8x32xf32>
    %256 = vector.broadcast %254 : f32 to vector<8x32xf32>
    %257 = arith.mulf %256, %255 : vector<8x32xf32>
    %258 = arith.addf %187, %257 : vector<8x32xf32>
    %259 = arith.subf %247, %191 : vector<8x32xf32>
    %260 = vector.broadcast %254 : f32 to vector<8x32xf32>
    %261 = arith.mulf %260, %259 : vector<8x32xf32>
    %262 = arith.addf %191, %261 : vector<8x32xf32>
    %cst_64 = arith.constant dense<0.000000e+00> : vector<8x128xf32>
    %263 = tpu.matmul %187, %9, %cst_64 {dimension_numbers = #tpu.dot_dimension_numbers<[1], [0], [0], [1], [0, 0, 1, 1], [], []>} : vector<8x32xf32>, vector<32x128xf32>, vector<8x128xf32> -> vector<8x128xf32>
    %cst_65 = arith.constant dense<0.000000e+00> : vector<8x128xf32>
    %264 = tpu.matmul %219, %8, %cst_65 {dimension_numbers = #tpu.dot_dimension_numbers<[1], [0], [0], [1], [0, 0, 1, 1], [], []>} : vector<8x32xf32>, vector<32x128xf32>, vector<8x128xf32> -> vector<8x128xf32>
    %265 = arith.addf %263, %264 : vector<8x128xf32>
    %266 = arith.addf %265, %12 : vector<8x128xf32>
    %267 = arith.negf %266 : vector<8x128xf32>
    %268 = math.exp %267 : vector<8x128xf32>
    %cst_66 = arith.constant 1.000000e+00 : f32
    %269 = vector.broadcast %cst_66 : f32 to vector<8x128xf32>
    %270 = arith.addf %269, %268 : vector<8x128xf32>
    %271 = arith.divf %269, %270 : vector<8x128xf32>
    %272 = math.tanh %266 : vector<8x128xf32>
    %273 = vector.extract_strided_slice %271 {offsets = [0, 0], sizes = [8, 32], strides = [1, 1]} : vector<8x128xf32> to vector<8x32xf32>
    %274 = vector.extract_strided_slice %271 {offsets = [0, 32], sizes = [8, 32], strides = [1, 1]} : vector<8x128xf32> to vector<8x32xf32>
    %275 = vector.extract_strided_slice %272 {offsets = [0, 64], sizes = [8, 32], strides = [1, 1]} : vector<8x128xf32> to vector<8x32xf32>
    %276 = vector.extract_strided_slice %271 {offsets = [0, 96], sizes = [8, 32], strides = [1, 1]} : vector<8x128xf32> to vector<8x32xf32>
    %277 = arith.mulf %274, %223 : vector<8x32xf32>
    %278 = arith.mulf %273, %275 : vector<8x32xf32>
    %279 = arith.addf %277, %278 : vector<8x32xf32>
    %280 = math.tanh %279 : vector<8x32xf32>
    %281 = arith.mulf %276, %280 : vector<8x32xf32>
    %c1_i32_67 = arith.constant 1 : i32
    %282 = arith.cmpi sge, %c3_i32, %c1_i32_67 : i32
    %c8_i32_68 = arith.constant 8 : i32
    %283 = arith.cmpi sle, %c3_i32, %c8_i32_68 : i32
    %284 = arith.andi %282, %283 : i1
    %285 = arith.extui %284 : i1 to i32
    %286 = arith.sitofp %285 : i32 to f32
    %287 = arith.subf %281, %219 : vector<8x32xf32>
    %288 = vector.broadcast %286 : f32 to vector<8x32xf32>
    %289 = arith.mulf %288, %287 : vector<8x32xf32>
    %290 = arith.addf %219, %289 : vector<8x32xf32>
    %291 = arith.subf %279, %223 : vector<8x32xf32>
    %292 = vector.broadcast %286 : f32 to vector<8x32xf32>
    %293 = arith.mulf %292, %291 : vector<8x32xf32>
    %294 = arith.addf %223, %293 : vector<8x32xf32>
    %c8_i32_69 = arith.constant 8 : i32
    %295 = arith.muli %c3_i32, %c8_i32_69 : i32
    %296 = tpu.assume_multiple %295, 8 : i32
    %297 = arith.index_cast %296 : i32 to index
    %c0_70 = arith.constant 0 : index
    %298 = vector.load %arg11[%297, %c0_70] : memref<72x32xf32, #tpu.memory_space<vmem>>, vector<8x32xf32>
    tpu.vector_store %arg11[%297, %c0_70], %290 {strides = array<i32>} : memref<72x32xf32, #tpu.memory_space<vmem>>, vector<8x32xf32>,
    %c4_i32 = arith.constant 4 : i32
    %c7_i32_71 = arith.constant 7 : i32
    %299 = arith.minsi %c4_i32, %c7_i32_71 : i32
    %c8_i32_72 = arith.constant 8 : i32
    %300 = arith.muli %299, %c8_i32_72 : i32
    %301 = tpu.assume_multiple %300, 8 : i32
    %302 = arith.index_cast %301 : i32 to index
    %c0_73 = arith.constant 0 : index
    %303 = vector.load %arg10[%302, %c0_73] : memref<64x128xf32, #tpu.memory_space<vmem>>, vector<8x128xf32>
    %cst_74 = arith.constant dense<0.000000e+00> : vector<8x128xf32>
    %304 = tpu.matmul %258, %7, %cst_74 {dimension_numbers = #tpu.dot_dimension_numbers<[1], [0], [0], [1], [0, 0, 1, 1], [], []>} : vector<8x32xf32>, vector<32x128xf32>, vector<8x128xf32> -> vector<8x128xf32>
    %305 = arith.addf %303, %304 : vector<8x128xf32>
    %306 = arith.negf %305 : vector<8x128xf32>
    %307 = math.exp %306 : vector<8x128xf32>
    %cst_75 = arith.constant 1.000000e+00 : f32
    %308 = vector.broadcast %cst_75 : f32 to vector<8x128xf32>
    %309 = arith.addf %308, %307 : vector<8x128xf32>
    %310 = arith.divf %308, %309 : vector<8x128xf32>
    %311 = math.tanh %305 : vector<8x128xf32>
    %312 = vector.extract_strided_slice %310 {offsets = [0, 0], sizes = [8, 32], strides = [1, 1]} : vector<8x128xf32> to vector<8x32xf32>
    %313 = vector.extract_strided_slice %310 {offsets = [0, 32], sizes = [8, 32], strides = [1, 1]} : vector<8x128xf32> to vector<8x32xf32>
    %314 = vector.extract_strided_slice %311 {offsets = [0, 64], sizes = [8, 32], strides = [1, 1]} : vector<8x128xf32> to vector<8x32xf32>
    %315 = vector.extract_strided_slice %310 {offsets = [0, 96], sizes = [8, 32], strides = [1, 1]} : vector<8x128xf32> to vector<8x32xf32>
    %316 = arith.mulf %313, %262 : vector<8x32xf32>
    %317 = arith.mulf %312, %314 : vector<8x32xf32>
    %318 = arith.addf %316, %317 : vector<8x32xf32>
    %319 = math.tanh %318 : vector<8x32xf32>
    %320 = arith.mulf %315, %319 : vector<8x32xf32>
    %c0_i32_76 = arith.constant 0 : i32
    %321 = arith.cmpi sge, %c4_i32, %c0_i32_76 : i32
    %c7_i32_77 = arith.constant 7 : i32
    %322 = arith.cmpi sle, %c4_i32, %c7_i32_77 : i32
    %323 = arith.andi %321, %322 : i1
    %324 = arith.extui %323 : i1 to i32
    %325 = arith.sitofp %324 : i32 to f32
    %326 = arith.subf %320, %258 : vector<8x32xf32>
    %327 = vector.broadcast %325 : f32 to vector<8x32xf32>
    %328 = arith.mulf %327, %326 : vector<8x32xf32>
    %329 = arith.addf %258, %328 : vector<8x32xf32>
    %330 = arith.subf %318, %262 : vector<8x32xf32>
    %331 = vector.broadcast %325 : f32 to vector<8x32xf32>
    %332 = arith.mulf %331, %330 : vector<8x32xf32>
    %333 = arith.addf %262, %332 : vector<8x32xf32>
    %cst_78 = arith.constant dense<0.000000e+00> : vector<8x128xf32>
    %334 = tpu.matmul %258, %9, %cst_78 {dimension_numbers = #tpu.dot_dimension_numbers<[1], [0], [0], [1], [0, 0, 1, 1], [], []>} : vector<8x32xf32>, vector<32x128xf32>, vector<8x128xf32> -> vector<8x128xf32>
    %cst_79 = arith.constant dense<0.000000e+00> : vector<8x128xf32>
    %335 = tpu.matmul %290, %8, %cst_79 {dimension_numbers = #tpu.dot_dimension_numbers<[1], [0], [0], [1], [0, 0, 1, 1], [], []>} : vector<8x32xf32>, vector<32x128xf32>, vector<8x128xf32> -> vector<8x128xf32>
    %336 = arith.addf %334, %335 : vector<8x128xf32>
    %337 = arith.addf %336, %12 : vector<8x128xf32>
    %338 = arith.negf %337 : vector<8x128xf32>
    %339 = math.exp %338 : vector<8x128xf32>
    %cst_80 = arith.constant 1.000000e+00 : f32
    %340 = vector.broadcast %cst_80 : f32 to vector<8x128xf32>
    %341 = arith.addf %340, %339 : vector<8x128xf32>
    %342 = arith.divf %340, %341 : vector<8x128xf32>
    %343 = math.tanh %337 : vector<8x128xf32>
    %344 = vector.extract_strided_slice %342 {offsets = [0, 0], sizes = [8, 32], strides = [1, 1]} : vector<8x128xf32> to vector<8x32xf32>
    %345 = vector.extract_strided_slice %342 {offsets = [0, 32], sizes = [8, 32], strides = [1, 1]} : vector<8x128xf32> to vector<8x32xf32>
    %346 = vector.extract_strided_slice %343 {offsets = [0, 64], sizes = [8, 32], strides = [1, 1]} : vector<8x128xf32> to vector<8x32xf32>
    %347 = vector.extract_strided_slice %342 {offsets = [0, 96], sizes = [8, 32], strides = [1, 1]} : vector<8x128xf32> to vector<8x32xf32>
    %348 = arith.mulf %345, %294 : vector<8x32xf32>
    %349 = arith.mulf %344, %346 : vector<8x32xf32>
    %350 = arith.addf %348, %349 : vector<8x32xf32>
    %351 = math.tanh %350 : vector<8x32xf32>
    %352 = arith.mulf %347, %351 : vector<8x32xf32>
    %c1_i32_81 = arith.constant 1 : i32
    %353 = arith.cmpi sge, %c4_i32, %c1_i32_81 : i32
    %c8_i32_82 = arith.constant 8 : i32
    %354 = arith.cmpi sle, %c4_i32, %c8_i32_82 : i32
    %355 = arith.andi %353, %354 : i1
    %356 = arith.extui %355 : i1 to i32
    %357 = arith.sitofp %356 : i32 to f32
    %358 = arith.subf %352, %290 : vector<8x32xf32>
    %359 = vector.broadcast %357 : f32 to vector<8x32xf32>
    %360 = arith.mulf %359, %358 : vector<8x32xf32>
    %361 = arith.addf %290, %360 : vector<8x32xf32>
    %362 = arith.subf %350, %294 : vector<8x32xf32>
    %363 = vector.broadcast %357 : f32 to vector<8x32xf32>
    %364 = arith.mulf %363, %362 : vector<8x32xf32>
    %365 = arith.addf %294, %364 : vector<8x32xf32>
    %c8_i32_83 = arith.constant 8 : i32
    %366 = arith.muli %c4_i32, %c8_i32_83 : i32
    %367 = tpu.assume_multiple %366, 8 : i32
    %368 = arith.index_cast %367 : i32 to index
    %c0_84 = arith.constant 0 : index
    %369 = vector.load %arg11[%368, %c0_84] : memref<72x32xf32, #tpu.memory_space<vmem>>, vector<8x32xf32>
    tpu.vector_store %arg11[%368, %c0_84], %361 {strides = array<i32>} : memref<72x32xf32, #tpu.memory_space<vmem>>, vector<8x32xf32>,
    %c5_i32 = arith.constant 5 : i32
    %c7_i32_85 = arith.constant 7 : i32
    %370 = arith.minsi %c5_i32, %c7_i32_85 : i32
    %c8_i32_86 = arith.constant 8 : i32
    %371 = arith.muli %370, %c8_i32_86 : i32
    %372 = tpu.assume_multiple %371, 8 : i32
    %373 = arith.index_cast %372 : i32 to index
    %c0_87 = arith.constant 0 : index
    %374 = vector.load %arg10[%373, %c0_87] : memref<64x128xf32, #tpu.memory_space<vmem>>, vector<8x128xf32>
    %cst_88 = arith.constant dense<0.000000e+00> : vector<8x128xf32>
    %375 = tpu.matmul %329, %7, %cst_88 {dimension_numbers = #tpu.dot_dimension_numbers<[1], [0], [0], [1], [0, 0, 1, 1], [], []>} : vector<8x32xf32>, vector<32x128xf32>, vector<8x128xf32> -> vector<8x128xf32>
    %376 = arith.addf %374, %375 : vector<8x128xf32>
    %377 = arith.negf %376 : vector<8x128xf32>
    %378 = math.exp %377 : vector<8x128xf32>
    %cst_89 = arith.constant 1.000000e+00 : f32
    %379 = vector.broadcast %cst_89 : f32 to vector<8x128xf32>
    %380 = arith.addf %379, %378 : vector<8x128xf32>
    %381 = arith.divf %379, %380 : vector<8x128xf32>
    %382 = math.tanh %376 : vector<8x128xf32>
    %383 = vector.extract_strided_slice %381 {offsets = [0, 0], sizes = [8, 32], strides = [1, 1]} : vector<8x128xf32> to vector<8x32xf32>
    %384 = vector.extract_strided_slice %381 {offsets = [0, 32], sizes = [8, 32], strides = [1, 1]} : vector<8x128xf32> to vector<8x32xf32>
    %385 = vector.extract_strided_slice %382 {offsets = [0, 64], sizes = [8, 32], strides = [1, 1]} : vector<8x128xf32> to vector<8x32xf32>
    %386 = vector.extract_strided_slice %381 {offsets = [0, 96], sizes = [8, 32], strides = [1, 1]} : vector<8x128xf32> to vector<8x32xf32>
    %387 = arith.mulf %384, %333 : vector<8x32xf32>
    %388 = arith.mulf %383, %385 : vector<8x32xf32>
    %389 = arith.addf %387, %388 : vector<8x32xf32>
    %390 = math.tanh %389 : vector<8x32xf32>
    %391 = arith.mulf %386, %390 : vector<8x32xf32>
    %c0_i32_90 = arith.constant 0 : i32
    %392 = arith.cmpi sge, %c5_i32, %c0_i32_90 : i32
    %c7_i32_91 = arith.constant 7 : i32
    %393 = arith.cmpi sle, %c5_i32, %c7_i32_91 : i32
    %394 = arith.andi %392, %393 : i1
    %395 = arith.extui %394 : i1 to i32
    %396 = arith.sitofp %395 : i32 to f32
    %397 = arith.subf %391, %329 : vector<8x32xf32>
    %398 = vector.broadcast %396 : f32 to vector<8x32xf32>
    %399 = arith.mulf %398, %397 : vector<8x32xf32>
    %400 = arith.addf %329, %399 : vector<8x32xf32>
    %401 = arith.subf %389, %333 : vector<8x32xf32>
    %402 = vector.broadcast %396 : f32 to vector<8x32xf32>
    %403 = arith.mulf %402, %401 : vector<8x32xf32>
    %404 = arith.addf %333, %403 : vector<8x32xf32>
    %cst_92 = arith.constant dense<0.000000e+00> : vector<8x128xf32>
    %405 = tpu.matmul %329, %9, %cst_92 {dimension_numbers = #tpu.dot_dimension_numbers<[1], [0], [0], [1], [0, 0, 1, 1], [], []>} : vector<8x32xf32>, vector<32x128xf32>, vector<8x128xf32> -> vector<8x128xf32>
    %cst_93 = arith.constant dense<0.000000e+00> : vector<8x128xf32>
    %406 = tpu.matmul %361, %8, %cst_93 {dimension_numbers = #tpu.dot_dimension_numbers<[1], [0], [0], [1], [0, 0, 1, 1], [], []>} : vector<8x32xf32>, vector<32x128xf32>, vector<8x128xf32> -> vector<8x128xf32>
    %407 = arith.addf %405, %406 : vector<8x128xf32>
    %408 = arith.addf %407, %12 : vector<8x128xf32>
    %409 = arith.negf %408 : vector<8x128xf32>
    %410 = math.exp %409 : vector<8x128xf32>
    %cst_94 = arith.constant 1.000000e+00 : f32
    %411 = vector.broadcast %cst_94 : f32 to vector<8x128xf32>
    %412 = arith.addf %411, %410 : vector<8x128xf32>
    %413 = arith.divf %411, %412 : vector<8x128xf32>
    %414 = math.tanh %408 : vector<8x128xf32>
    %415 = vector.extract_strided_slice %413 {offsets = [0, 0], sizes = [8, 32], strides = [1, 1]} : vector<8x128xf32> to vector<8x32xf32>
    %416 = vector.extract_strided_slice %413 {offsets = [0, 32], sizes = [8, 32], strides = [1, 1]} : vector<8x128xf32> to vector<8x32xf32>
    %417 = vector.extract_strided_slice %414 {offsets = [0, 64], sizes = [8, 32], strides = [1, 1]} : vector<8x128xf32> to vector<8x32xf32>
    %418 = vector.extract_strided_slice %413 {offsets = [0, 96], sizes = [8, 32], strides = [1, 1]} : vector<8x128xf32> to vector<8x32xf32>
    %419 = arith.mulf %416, %365 : vector<8x32xf32>
    %420 = arith.mulf %415, %417 : vector<8x32xf32>
    %421 = arith.addf %419, %420 : vector<8x32xf32>
    %422 = math.tanh %421 : vector<8x32xf32>
    %423 = arith.mulf %418, %422 : vector<8x32xf32>
    %c1_i32_95 = arith.constant 1 : i32
    %424 = arith.cmpi sge, %c5_i32, %c1_i32_95 : i32
    %c8_i32_96 = arith.constant 8 : i32
    %425 = arith.cmpi sle, %c5_i32, %c8_i32_96 : i32
    %426 = arith.andi %424, %425 : i1
    %427 = arith.extui %426 : i1 to i32
    %428 = arith.sitofp %427 : i32 to f32
    %429 = arith.subf %423, %361 : vector<8x32xf32>
    %430 = vector.broadcast %428 : f32 to vector<8x32xf32>
    %431 = arith.mulf %430, %429 : vector<8x32xf32>
    %432 = arith.addf %361, %431 : vector<8x32xf32>
    %433 = arith.subf %421, %365 : vector<8x32xf32>
    %434 = vector.broadcast %428 : f32 to vector<8x32xf32>
    %435 = arith.mulf %434, %433 : vector<8x32xf32>
    %436 = arith.addf %365, %435 : vector<8x32xf32>
    %c8_i32_97 = arith.constant 8 : i32
    %437 = arith.muli %c5_i32, %c8_i32_97 : i32
    %438 = tpu.assume_multiple %437, 8 : i32
    %439 = arith.index_cast %438 : i32 to index
    %c0_98 = arith.constant 0 : index
    %440 = vector.load %arg11[%439, %c0_98] : memref<72x32xf32, #tpu.memory_space<vmem>>, vector<8x32xf32>
    tpu.vector_store %arg11[%439, %c0_98], %432 {strides = array<i32>} : memref<72x32xf32, #tpu.memory_space<vmem>>, vector<8x32xf32>,
    %c6_i32 = arith.constant 6 : i32
    %c7_i32_99 = arith.constant 7 : i32
    %441 = arith.minsi %c6_i32, %c7_i32_99 : i32
    %c8_i32_100 = arith.constant 8 : i32
    %442 = arith.muli %441, %c8_i32_100 : i32
    %443 = tpu.assume_multiple %442, 8 : i32
    %444 = arith.index_cast %443 : i32 to index
    %c0_101 = arith.constant 0 : index
    %445 = vector.load %arg10[%444, %c0_101] : memref<64x128xf32, #tpu.memory_space<vmem>>, vector<8x128xf32>
    %cst_102 = arith.constant dense<0.000000e+00> : vector<8x128xf32>
    %446 = tpu.matmul %400, %7, %cst_102 {dimension_numbers = #tpu.dot_dimension_numbers<[1], [0], [0], [1], [0, 0, 1, 1], [], []>} : vector<8x32xf32>, vector<32x128xf32>, vector<8x128xf32> -> vector<8x128xf32>
    %447 = arith.addf %445, %446 : vector<8x128xf32>
    %448 = arith.negf %447 : vector<8x128xf32>
    %449 = math.exp %448 : vector<8x128xf32>
    %cst_103 = arith.constant 1.000000e+00 : f32
    %450 = vector.broadcast %cst_103 : f32 to vector<8x128xf32>
    %451 = arith.addf %450, %449 : vector<8x128xf32>
    %452 = arith.divf %450, %451 : vector<8x128xf32>
    %453 = math.tanh %447 : vector<8x128xf32>
    %454 = vector.extract_strided_slice %452 {offsets = [0, 0], sizes = [8, 32], strides = [1, 1]} : vector<8x128xf32> to vector<8x32xf32>
    %455 = vector.extract_strided_slice %452 {offsets = [0, 32], sizes = [8, 32], strides = [1, 1]} : vector<8x128xf32> to vector<8x32xf32>
    %456 = vector.extract_strided_slice %453 {offsets = [0, 64], sizes = [8, 32], strides = [1, 1]} : vector<8x128xf32> to vector<8x32xf32>
    %457 = vector.extract_strided_slice %452 {offsets = [0, 96], sizes = [8, 32], strides = [1, 1]} : vector<8x128xf32> to vector<8x32xf32>
    %458 = arith.mulf %455, %404 : vector<8x32xf32>
    %459 = arith.mulf %454, %456 : vector<8x32xf32>
    %460 = arith.addf %458, %459 : vector<8x32xf32>
    %461 = math.tanh %460 : vector<8x32xf32>
    %462 = arith.mulf %457, %461 : vector<8x32xf32>
    %c0_i32_104 = arith.constant 0 : i32
    %463 = arith.cmpi sge, %c6_i32, %c0_i32_104 : i32
    %c7_i32_105 = arith.constant 7 : i32
    %464 = arith.cmpi sle, %c6_i32, %c7_i32_105 : i32
    %465 = arith.andi %463, %464 : i1
    %466 = arith.extui %465 : i1 to i32
    %467 = arith.sitofp %466 : i32 to f32
    %468 = arith.subf %462, %400 : vector<8x32xf32>
    %469 = vector.broadcast %467 : f32 to vector<8x32xf32>
    %470 = arith.mulf %469, %468 : vector<8x32xf32>
    %471 = arith.addf %400, %470 : vector<8x32xf32>
    %472 = arith.subf %460, %404 : vector<8x32xf32>
    %473 = vector.broadcast %467 : f32 to vector<8x32xf32>
    %474 = arith.mulf %473, %472 : vector<8x32xf32>
    %475 = arith.addf %404, %474 : vector<8x32xf32>
    %cst_106 = arith.constant dense<0.000000e+00> : vector<8x128xf32>
    %476 = tpu.matmul %400, %9, %cst_106 {dimension_numbers = #tpu.dot_dimension_numbers<[1], [0], [0], [1], [0, 0, 1, 1], [], []>} : vector<8x32xf32>, vector<32x128xf32>, vector<8x128xf32> -> vector<8x128xf32>
    %cst_107 = arith.constant dense<0.000000e+00> : vector<8x128xf32>
    %477 = tpu.matmul %432, %8, %cst_107 {dimension_numbers = #tpu.dot_dimension_numbers<[1], [0], [0], [1], [0, 0, 1, 1], [], []>} : vector<8x32xf32>, vector<32x128xf32>, vector<8x128xf32> -> vector<8x128xf32>
    %478 = arith.addf %476, %477 : vector<8x128xf32>
    %479 = arith.addf %478, %12 : vector<8x128xf32>
    %480 = arith.negf %479 : vector<8x128xf32>
    %481 = math.exp %480 : vector<8x128xf32>
    %cst_108 = arith.constant 1.000000e+00 : f32
    %482 = vector.broadcast %cst_108 : f32 to vector<8x128xf32>
    %483 = arith.addf %482, %481 : vector<8x128xf32>
    %484 = arith.divf %482, %483 : vector<8x128xf32>
    %485 = math.tanh %479 : vector<8x128xf32>
    %486 = vector.extract_strided_slice %484 {offsets = [0, 0], sizes = [8, 32], strides = [1, 1]} : vector<8x128xf32> to vector<8x32xf32>
    %487 = vector.extract_strided_slice %484 {offsets = [0, 32], sizes = [8, 32], strides = [1, 1]} : vector<8x128xf32> to vector<8x32xf32>
    %488 = vector.extract_strided_slice %485 {offsets = [0, 64], sizes = [8, 32], strides = [1, 1]} : vector<8x128xf32> to vector<8x32xf32>
    %489 = vector.extract_strided_slice %484 {offsets = [0, 96], sizes = [8, 32], strides = [1, 1]} : vector<8x128xf32> to vector<8x32xf32>
    %490 = arith.mulf %487, %436 : vector<8x32xf32>
    %491 = arith.mulf %486, %488 : vector<8x32xf32>
    %492 = arith.addf %490, %491 : vector<8x32xf32>
    %493 = math.tanh %492 : vector<8x32xf32>
    %494 = arith.mulf %489, %493 : vector<8x32xf32>
    %c1_i32_109 = arith.constant 1 : i32
    %495 = arith.cmpi sge, %c6_i32, %c1_i32_109 : i32
    %c8_i32_110 = arith.constant 8 : i32
    %496 = arith.cmpi sle, %c6_i32, %c8_i32_110 : i32
    %497 = arith.andi %495, %496 : i1
    %498 = arith.extui %497 : i1 to i32
    %499 = arith.sitofp %498 : i32 to f32
    %500 = arith.subf %494, %432 : vector<8x32xf32>
    %501 = vector.broadcast %499 : f32 to vector<8x32xf32>
    %502 = arith.mulf %501, %500 : vector<8x32xf32>
    %503 = arith.addf %432, %502 : vector<8x32xf32>
    %504 = arith.subf %492, %436 : vector<8x32xf32>
    %505 = vector.broadcast %499 : f32 to vector<8x32xf32>
    %506 = arith.mulf %505, %504 : vector<8x32xf32>
    %507 = arith.addf %436, %506 : vector<8x32xf32>
    %c8_i32_111 = arith.constant 8 : i32
    %508 = arith.muli %c6_i32, %c8_i32_111 : i32
    %509 = tpu.assume_multiple %508, 8 : i32
    %510 = arith.index_cast %509 : i32 to index
    %c0_112 = arith.constant 0 : index
    %511 = vector.load %arg11[%510, %c0_112] : memref<72x32xf32, #tpu.memory_space<vmem>>, vector<8x32xf32>
    tpu.vector_store %arg11[%510, %c0_112], %503 {strides = array<i32>} : memref<72x32xf32, #tpu.memory_space<vmem>>, vector<8x32xf32>,
    %c7_i32_113 = arith.constant 7 : i32
    %c7_i32_114 = arith.constant 7 : i32
    %512 = arith.minsi %c7_i32_113, %c7_i32_114 : i32
    %c8_i32_115 = arith.constant 8 : i32
    %513 = arith.muli %512, %c8_i32_115 : i32
    %514 = tpu.assume_multiple %513, 8 : i32
    %515 = arith.index_cast %514 : i32 to index
    %c0_116 = arith.constant 0 : index
    %516 = vector.load %arg10[%515, %c0_116] : memref<64x128xf32, #tpu.memory_space<vmem>>, vector<8x128xf32>
    %cst_117 = arith.constant dense<0.000000e+00> : vector<8x128xf32>
    %517 = tpu.matmul %471, %7, %cst_117 {dimension_numbers = #tpu.dot_dimension_numbers<[1], [0], [0], [1], [0, 0, 1, 1], [], []>} : vector<8x32xf32>, vector<32x128xf32>, vector<8x128xf32> -> vector<8x128xf32>
    %518 = arith.addf %516, %517 : vector<8x128xf32>
    %519 = arith.negf %518 : vector<8x128xf32>
    %520 = math.exp %519 : vector<8x128xf32>
    %cst_118 = arith.constant 1.000000e+00 : f32
    %521 = vector.broadcast %cst_118 : f32 to vector<8x128xf32>
    %522 = arith.addf %521, %520 : vector<8x128xf32>
    %523 = arith.divf %521, %522 : vector<8x128xf32>
    %524 = math.tanh %518 : vector<8x128xf32>
    %525 = vector.extract_strided_slice %523 {offsets = [0, 0], sizes = [8, 32], strides = [1, 1]} : vector<8x128xf32> to vector<8x32xf32>
    %526 = vector.extract_strided_slice %523 {offsets = [0, 32], sizes = [8, 32], strides = [1, 1]} : vector<8x128xf32> to vector<8x32xf32>
    %527 = vector.extract_strided_slice %524 {offsets = [0, 64], sizes = [8, 32], strides = [1, 1]} : vector<8x128xf32> to vector<8x32xf32>
    %528 = vector.extract_strided_slice %523 {offsets = [0, 96], sizes = [8, 32], strides = [1, 1]} : vector<8x128xf32> to vector<8x32xf32>
    %529 = arith.mulf %526, %475 : vector<8x32xf32>
    %530 = arith.mulf %525, %527 : vector<8x32xf32>
    %531 = arith.addf %529, %530 : vector<8x32xf32>
    %532 = math.tanh %531 : vector<8x32xf32>
    %533 = arith.mulf %528, %532 : vector<8x32xf32>
    %c0_i32_119 = arith.constant 0 : i32
    %534 = arith.cmpi sge, %c7_i32_113, %c0_i32_119 : i32
    %c7_i32_120 = arith.constant 7 : i32
    %535 = arith.cmpi sle, %c7_i32_113, %c7_i32_120 : i32
    %536 = arith.andi %534, %535 : i1
    %537 = arith.extui %536 : i1 to i32
    %538 = arith.sitofp %537 : i32 to f32
    %539 = arith.subf %533, %471 : vector<8x32xf32>
    %540 = vector.broadcast %538 : f32 to vector<8x32xf32>
    %541 = arith.mulf %540, %539 : vector<8x32xf32>
    %542 = arith.addf %471, %541 : vector<8x32xf32>
    %543 = arith.subf %531, %475 : vector<8x32xf32>
    %544 = vector.broadcast %538 : f32 to vector<8x32xf32>
    %545 = arith.mulf %544, %543 : vector<8x32xf32>
    %546 = arith.addf %475, %545 : vector<8x32xf32>
    %cst_121 = arith.constant dense<0.000000e+00> : vector<8x128xf32>
    %547 = tpu.matmul %471, %9, %cst_121 {dimension_numbers = #tpu.dot_dimension_numbers<[1], [0], [0], [1], [0, 0, 1, 1], [], []>} : vector<8x32xf32>, vector<32x128xf32>, vector<8x128xf32> -> vector<8x128xf32>
    %cst_122 = arith.constant dense<0.000000e+00> : vector<8x128xf32>
    %548 = tpu.matmul %503, %8, %cst_122 {dimension_numbers = #tpu.dot_dimension_numbers<[1], [0], [0], [1], [0, 0, 1, 1], [], []>} : vector<8x32xf32>, vector<32x128xf32>, vector<8x128xf32> -> vector<8x128xf32>
    %549 = arith.addf %547, %548 : vector<8x128xf32>
    %550 = arith.addf %549, %12 : vector<8x128xf32>
    %551 = arith.negf %550 : vector<8x128xf32>
    %552 = math.exp %551 : vector<8x128xf32>
    %cst_123 = arith.constant 1.000000e+00 : f32
    %553 = vector.broadcast %cst_123 : f32 to vector<8x128xf32>
    %554 = arith.addf %553, %552 : vector<8x128xf32>
    %555 = arith.divf %553, %554 : vector<8x128xf32>
    %556 = math.tanh %550 : vector<8x128xf32>
    %557 = vector.extract_strided_slice %555 {offsets = [0, 0], sizes = [8, 32], strides = [1, 1]} : vector<8x128xf32> to vector<8x32xf32>
    %558 = vector.extract_strided_slice %555 {offsets = [0, 32], sizes = [8, 32], strides = [1, 1]} : vector<8x128xf32> to vector<8x32xf32>
    %559 = vector.extract_strided_slice %556 {offsets = [0, 64], sizes = [8, 32], strides = [1, 1]} : vector<8x128xf32> to vector<8x32xf32>
    %560 = vector.extract_strided_slice %555 {offsets = [0, 96], sizes = [8, 32], strides = [1, 1]} : vector<8x128xf32> to vector<8x32xf32>
    %561 = arith.mulf %558, %507 : vector<8x32xf32>
    %562 = arith.mulf %557, %559 : vector<8x32xf32>
    %563 = arith.addf %561, %562 : vector<8x32xf32>
    %564 = math.tanh %563 : vector<8x32xf32>
    %565 = arith.mulf %560, %564 : vector<8x32xf32>
    %c1_i32_124 = arith.constant 1 : i32
    %566 = arith.cmpi sge, %c7_i32_113, %c1_i32_124 : i32
    %c8_i32_125 = arith.constant 8 : i32
    %567 = arith.cmpi sle, %c7_i32_113, %c8_i32_125 : i32
    %568 = arith.andi %566, %567 : i1
    %569 = arith.extui %568 : i1 to i32
    %570 = arith.sitofp %569 : i32 to f32
    %571 = arith.subf %565, %503 : vector<8x32xf32>
    %572 = vector.broadcast %570 : f32 to vector<8x32xf32>
    %573 = arith.mulf %572, %571 : vector<8x32xf32>
    %574 = arith.addf %503, %573 : vector<8x32xf32>
    %575 = arith.subf %563, %507 : vector<8x32xf32>
    %576 = vector.broadcast %570 : f32 to vector<8x32xf32>
    %577 = arith.mulf %576, %575 : vector<8x32xf32>
    %578 = arith.addf %507, %577 : vector<8x32xf32>
    %c8_i32_126 = arith.constant 8 : i32
    %579 = arith.muli %c7_i32_113, %c8_i32_126 : i32
    %580 = tpu.assume_multiple %579, 8 : i32
    %581 = arith.index_cast %580 : i32 to index
    %c0_127 = arith.constant 0 : index
    %582 = vector.load %arg11[%581, %c0_127] : memref<72x32xf32, #tpu.memory_space<vmem>>, vector<8x32xf32>
    tpu.vector_store %arg11[%581, %c0_127], %574 {strides = array<i32>} : memref<72x32xf32, #tpu.memory_space<vmem>>, vector<8x32xf32>,
    %c8_i32_128 = arith.constant 8 : i32
    %c7_i32_129 = arith.constant 7 : i32
    %583 = arith.minsi %c8_i32_128, %c7_i32_129 : i32
    %c8_i32_130 = arith.constant 8 : i32
    %584 = arith.muli %583, %c8_i32_130 : i32
    %585 = tpu.assume_multiple %584, 8 : i32
    %586 = arith.index_cast %585 : i32 to index
    %c0_131 = arith.constant 0 : index
    %587 = vector.load %arg10[%586, %c0_131] : memref<64x128xf32, #tpu.memory_space<vmem>>, vector<8x128xf32>
    %cst_132 = arith.constant dense<0.000000e+00> : vector<8x128xf32>
    %588 = tpu.matmul %542, %7, %cst_132 {dimension_numbers = #tpu.dot_dimension_numbers<[1], [0], [0], [1], [0, 0, 1, 1], [], []>} : vector<8x32xf32>, vector<32x128xf32>, vector<8x128xf32> -> vector<8x128xf32>
    %589 = arith.addf %587, %588 : vector<8x128xf32>
    %590 = arith.negf %589 : vector<8x128xf32>
    %591 = math.exp %590 : vector<8x128xf32>
    %cst_133 = arith.constant 1.000000e+00 : f32
    %592 = vector.broadcast %cst_133 : f32 to vector<8x128xf32>
    %593 = arith.addf %592, %591 : vector<8x128xf32>
    %594 = arith.divf %592, %593 : vector<8x128xf32>
    %595 = math.tanh %589 : vector<8x128xf32>
    %596 = vector.extract_strided_slice %594 {offsets = [0, 0], sizes = [8, 32], strides = [1, 1]} : vector<8x128xf32> to vector<8x32xf32>
    %597 = vector.extract_strided_slice %594 {offsets = [0, 32], sizes = [8, 32], strides = [1, 1]} : vector<8x128xf32> to vector<8x32xf32>
    %598 = vector.extract_strided_slice %595 {offsets = [0, 64], sizes = [8, 32], strides = [1, 1]} : vector<8x128xf32> to vector<8x32xf32>
    %599 = vector.extract_strided_slice %594 {offsets = [0, 96], sizes = [8, 32], strides = [1, 1]} : vector<8x128xf32> to vector<8x32xf32>
    %600 = arith.mulf %597, %546 : vector<8x32xf32>
    %601 = arith.mulf %596, %598 : vector<8x32xf32>
    %602 = arith.addf %600, %601 : vector<8x32xf32>
    %603 = math.tanh %602 : vector<8x32xf32>
    %604 = arith.mulf %599, %603 : vector<8x32xf32>
    %c0_i32_134 = arith.constant 0 : i32
    %605 = arith.cmpi sge, %c8_i32_128, %c0_i32_134 : i32
    %c7_i32_135 = arith.constant 7 : i32
    %606 = arith.cmpi sle, %c8_i32_128, %c7_i32_135 : i32
    %607 = arith.andi %605, %606 : i1
    %608 = arith.extui %607 : i1 to i32
    %609 = arith.sitofp %608 : i32 to f32
    %610 = arith.subf %604, %542 : vector<8x32xf32>
    %611 = vector.broadcast %609 : f32 to vector<8x32xf32>
    %612 = arith.mulf %611, %610 : vector<8x32xf32>
    %613 = arith.addf %542, %612 : vector<8x32xf32>
    %614 = arith.subf %602, %546 : vector<8x32xf32>
    %615 = vector.broadcast %609 : f32 to vector<8x32xf32>
    %616 = arith.mulf %615, %614 : vector<8x32xf32>
    %617 = arith.addf %546, %616 : vector<8x32xf32>
    %cst_136 = arith.constant dense<0.000000e+00> : vector<8x128xf32>
    %618 = tpu.matmul %542, %9, %cst_136 {dimension_numbers = #tpu.dot_dimension_numbers<[1], [0], [0], [1], [0, 0, 1, 1], [], []>} : vector<8x32xf32>, vector<32x128xf32>, vector<8x128xf32> -> vector<8x128xf32>
    %cst_137 = arith.constant dense<0.000000e+00> : vector<8x128xf32>
    %619 = tpu.matmul %574, %8, %cst_137 {dimension_numbers = #tpu.dot_dimension_numbers<[1], [0], [0], [1], [0, 0, 1, 1], [], []>} : vector<8x32xf32>, vector<32x128xf32>, vector<8x128xf32> -> vector<8x128xf32>
    %620 = arith.addf %618, %619 : vector<8x128xf32>
    %621 = arith.addf %620, %12 : vector<8x128xf32>
    %622 = arith.negf %621 : vector<8x128xf32>
    %623 = math.exp %622 : vector<8x128xf32>
    %cst_138 = arith.constant 1.000000e+00 : f32
    %624 = vector.broadcast %cst_138 : f32 to vector<8x128xf32>
    %625 = arith.addf %624, %623 : vector<8x128xf32>
    %626 = arith.divf %624, %625 : vector<8x128xf32>
    %627 = math.tanh %621 : vector<8x128xf32>
    %628 = vector.extract_strided_slice %626 {offsets = [0, 0], sizes = [8, 32], strides = [1, 1]} : vector<8x128xf32> to vector<8x32xf32>
    %629 = vector.extract_strided_slice %626 {offsets = [0, 32], sizes = [8, 32], strides = [1, 1]} : vector<8x128xf32> to vector<8x32xf32>
    %630 = vector.extract_strided_slice %627 {offsets = [0, 64], sizes = [8, 32], strides = [1, 1]} : vector<8x128xf32> to vector<8x32xf32>
    %631 = vector.extract_strided_slice %626 {offsets = [0, 96], sizes = [8, 32], strides = [1, 1]} : vector<8x128xf32> to vector<8x32xf32>
    %632 = arith.mulf %629, %578 : vector<8x32xf32>
    %633 = arith.mulf %628, %630 : vector<8x32xf32>
    %634 = arith.addf %632, %633 : vector<8x32xf32>
    %635 = math.tanh %634 : vector<8x32xf32>
    %636 = arith.mulf %631, %635 : vector<8x32xf32>
    %c1_i32_139 = arith.constant 1 : i32
    %637 = arith.cmpi sge, %c8_i32_128, %c1_i32_139 : i32
    %c8_i32_140 = arith.constant 8 : i32
    %638 = arith.cmpi sle, %c8_i32_128, %c8_i32_140 : i32
    %639 = arith.andi %637, %638 : i1
    %640 = arith.extui %639 : i1 to i32
    %641 = arith.sitofp %640 : i32 to f32
    %642 = arith.subf %636, %574 : vector<8x32xf32>
    %643 = vector.broadcast %641 : f32 to vector<8x32xf32>
    %644 = arith.mulf %643, %642 : vector<8x32xf32>
    %645 = arith.addf %574, %644 : vector<8x32xf32>
    %646 = arith.subf %634, %578 : vector<8x32xf32>
    %647 = vector.broadcast %641 : f32 to vector<8x32xf32>
    %648 = arith.mulf %647, %646 : vector<8x32xf32>
    %649 = arith.addf %578, %648 : vector<8x32xf32>
    %c8_i32_141 = arith.constant 8 : i32
    %650 = arith.muli %c8_i32_128, %c8_i32_141 : i32
    %651 = tpu.assume_multiple %650, 8 : i32
    %652 = arith.index_cast %651 : i32 to index
    %c0_142 = arith.constant 0 : index
    %653 = vector.load %arg11[%652, %c0_142] : memref<72x32xf32, #tpu.memory_space<vmem>>, vector<8x32xf32>
    tpu.vector_store %arg11[%652, %c0_142], %645 {strides = array<i32>} : memref<72x32xf32, #tpu.memory_space<vmem>>, vector<8x32xf32>,
    %c9_i32 = arith.constant 9 : i32
    %c8 = arith.constant 8 : index
    %c0_143 = arith.constant 0 : index
    %654 = vector.load %arg11[%c8, %c0_143] : memref<72x32xf32, #tpu.memory_space<vmem>>, vector<64x32xf32>
    %655 = arith.truncf %654 : vector<64x32xf32> to vector<64x32xbf16>
    %c0_144 = arith.constant 0 : index
    %c0_145 = arith.constant 0 : index
    %656 = vector.load %arg7[%c0_144, %c0_145] : memref<32x64xbf16, #tpu.memory_space<vmem>>, vector<32x64xbf16>
    %cst_146 = arith.constant dense<0.000000e+00> : vector<64x64xf32>
    %657 = tpu.matmul %655, %656, %cst_146 {dimension_numbers = #tpu.dot_dimension_numbers<[1], [0], [0], [1], [0, 0, 1, 1], [], []>} : vector<64x32xbf16>, vector<32x64xbf16>, vector<64x64xf32> -> vector<64x64xf32>
    %c0_147 = arith.constant 0 : index
    %c0_148 = arith.constant 0 : index
    %658 = vector.load %arg8[%c0_147, %c0_148] : memref<1x64xf32, #tpu.memory_space<vmem>>, vector<1x64xf32>
    %659 = vector.broadcast %658 : vector<1x64xf32> to vector<64x64xf32>
    %660 = arith.addf %657, %659 : vector<64x64xf32>
    %c0_149 = arith.constant 0 : index
    %c0_150 = arith.constant 0 : index
    %661 = vector.load %arg9[%c0_149, %c0_150] : memref<64x64xf32, #tpu.memory_space<vmem>>, vector<64x64xf32>
    tpu.vector_store %arg9[%c0_149, %c0_150], %660 {strides = array<i32>} : memref<64x64xf32, #tpu.memory_space<vmem>>, vector<64x64xf32>,
    return
  }
}

</mosaic_0001>

<llo_original>
// kernel: tt_rnn_forward.1
$region0: #{tt_rnn_forward.1}
  #allocation0 [shape = 'u32[]', space=smem, size = 0x4, offset = 0x4, fixed_abs, tag = 'smem constant byte address 0x4 - core index']
  #allocation1 [shape = 'u32[144,128]{1,0:T(1,128)}', space=vmem, size = 0x12000, scoped, tag = 'internal scratch']
  #allocation2 [shape = 'f32[64,128]{1,0:T(8,128)}', space=vmem, size = 0x8000, scoped, tag = 'scratch operand']
  #allocation3 [shape = 'f32[72,32]{1,0:T(8,128)}', space=vmem, size = 0x9000, scoped, tag = 'scratch operand']
  %s0 = inlined_call_operand.vmem [shape: bf16[64,32], index: 0, kind: input, shape index: {}]
  %s1 = inlined_call_operand.vmem [shape: bf16[32,128], index: 1, kind: input, shape index: {}]
  %s2 = inlined_call_operand.vmem [shape: f32[32,128], index: 2, kind: input, shape index: {}]
  %s3 = inlined_call_operand.vmem [shape: f32[1,128], index: 3, kind: input, shape index: {}]
  %s4 = inlined_call_operand.vmem [shape: f32[32,128], index: 4, kind: input, shape index: {}]
  %s5 = inlined_call_operand.vmem [shape: f32[32,128], index: 5, kind: input, shape index: {}]
  %s6 = inlined_call_operand.vmem [shape: f32[1,128], index: 6, kind: input, shape index: {}]
  %s7 = inlined_call_operand.vmem [shape: bf16[32,64], index: 7, kind: input, shape index: {}]
  %s8 = inlined_call_operand.vmem [shape: f32[1,64], index: 8, kind: input, shape index: {}]
  %s9 = inlined_call_operand.vmem [shape: f32[64,64], index: 9, kind: output, shape index: {}]
  %s10 = sld [smem:[#allocation0]]
  $region46: #{tt_rnn_forward.1} parent=0
    _
  %s12 = ssub.s32 1, %s10
  %s13 = scalar_select 0, %s12, %s10
  // Predicated region
  $region2: #{tt_rnn_forward.1} parent=0 // pred_check
    _
  $region3: #{tt_rnn_forward.1} parent=0 // pred_check_branch
    %15 = sbr.rel (0) target = $region5
  $region4: #{tt_rnn_forward.1} parent=0 // pred_region
    _
  $region5: #{tt_rnn_forward.1} parent=0 // pred_fallthru
    _
  // Predicated region
  $region6: #{tt_rnn_forward.1} parent=0 // pred_check
    _
  $region7: #{tt_rnn_forward.1} parent=0 // pred_check_branch
    %17 = sbr.rel (0) target = $region9
  $region8: #{tt_rnn_forward.1} parent=0 // pred_region
    _
  $region9: #{tt_rnn_forward.1} parent=0 // pred_fallthru
    _
  // Predicated region
  $region10: #{tt_rnn_forward.1} parent=0 // pred_check
    _
  $region11: #{tt_rnn_forward.1} parent=0 // pred_check_branch
    %19 = sbr.rel (0) target = $region13
  $region12: #{tt_rnn_forward.1} parent=0 // pred_region
    _
  $region13: #{tt_rnn_forward.1} parent=0 // pred_fallthru
    _
  // Predicated region
  $region14: #{tt_rnn_forward.1} parent=0 // pred_check
    _
  $region15: #{tt_rnn_forward.1} parent=0 // pred_check_branch
    %21 = sbr.rel (0) target = $region17
  $region16: #{tt_rnn_forward.1} parent=0 // pred_region
    _
  $region17: #{tt_rnn_forward.1} parent=0 // pred_fallthru
    _
  // Predicated region
  $region18: #{tt_rnn_forward.1} parent=0 // pred_check
    _
  $region19: #{tt_rnn_forward.1} parent=0 // pred_check_branch
    %23 = sbr.rel (0) target = $region21
  $region20: #{tt_rnn_forward.1} parent=0 // pred_region
    _
  $region21: #{tt_rnn_forward.1} parent=0 // pred_fallthru
    _
  // Predicated region
  $region22: #{tt_rnn_forward.1} parent=0 // pred_check
    _
  $region23: #{tt_rnn_forward.1} parent=0 // pred_check_branch
    %25 = sbr.rel (0) target = $region25
  $region24: #{tt_rnn_forward.1} parent=0 // pred_region
    _
  $region25: #{tt_rnn_forward.1} parent=0 // pred_fallthru
    _
  // Predicated region
  $region26: #{tt_rnn_forward.1} parent=0 // pred_check
    _
  $region27: #{tt_rnn_forward.1} parent=0 // pred_check_branch
    %27 = sbr.rel (0) target = $region29
  $region28: #{tt_rnn_forward.1} parent=0 // pred_region
    _
  $region29: #{tt_rnn_forward.1} parent=0 // pred_fallthru
    _
  // Predicated region
  $region30: #{tt_rnn_forward.1} parent=0 // pred_check
    _
  $region31: #{tt_rnn_forward.1} parent=0 // pred_check_branch
    %29 = sbr.rel (0) target = $region33
  $region32: #{tt_rnn_forward.1} parent=0 // pred_region
    _
  $region33: #{tt_rnn_forward.1} parent=0 // pred_fallthru
    _
  // Predicated region
  $region34: #{tt_rnn_forward.1} parent=0 // pred_check
    _
  $region35: #{tt_rnn_forward.1} parent=0 // pred_check_branch
    %31 = sbr.rel (0) target = $region37
  $region36: #{tt_rnn_forward.1} parent=0 // pred_region
    _
  $region37: #{tt_rnn_forward.1} parent=0 // pred_fallthru
    _
  %v33 = vld [vmem:[%s0] sm:$0xf]
  %v34 = vld [vmem:[%s0 + $0x4] sm:$0xf]
  %v35 = vld [vmem:[%s0 + $0x8] sm:$0xf]
  %v36 = vld [vmem:[%s0 + $0xc] sm:$0xf]
  %v37 = vld [vmem:[%s0 + $0x10] sm:$0xf]
  %v38 = vld [vmem:[%s0 + $0x14] sm:$0xf]
  %v39 = vld [vmem:[%s0 + $0x18] sm:$0xf]
  %v40 = vld [vmem:[%s0 + $0x1c] sm:$0xf]
  %v41 = vld [vmem:[%s1] sm:$0xf]
  %v42 = vld [vmem:[%s1 + $0x4] sm:$0xf]
  %v43 = vld [vmem:[%s1 + $0x8] sm:$0xf]
  %v44 = vld [vmem:[%s1 + $0xc] sm:$0xf]
  %v45 = vld [vmem:[%s3] sm:$0x1]
  %v47 = vlaneseq
  %v48 = vshrl.u32 %v47, 7
  %v49 = vsub.s32 0, %v48
  %v50 = vrot.slane %v45, %v49
  %v60 = vunpack.c.l.b16 %v33
  %v61 = vunpack.c.l.b16 %v34
  %v62 = vunpack.c.l.b16 %v35
  %v63 = vunpack.c.l.b16 %v36
  %v64 = vunpack.c.l.b16 %v37
  %v65 = vunpack.c.l.b16 %v38
  %v66 = vunpack.c.l.b16 %v39
  %v67 = vunpack.c.l.b16 %v40
  %v68 = vpack.c.b16 %v61, %v60
  %v69 = vpack.c.b16 %v63, %v62
  %v70 = vpack.c.b16 %v65, %v64
  %v71 = vpack.c.b16 %v67, %v66
  %v76 = vunpack.c.l.b16 %v41
  %v77 = vunpack.c.l.b16 %v42
  %v78 = vunpack.c.l.b16 %v43
  %v79 = vunpack.c.l.b16 %v44
  %v80 = vpack.c.b16 %v77, %v76
  %v81 = vpack.c.b16 %v79, %v78
  %vm84 = vcmask 261120
  %v86 = vsel %vm84, %v68, 0
  %v89 = vsel %vm84, %v69, 0
  %v92 = vsel %vm84, %v70, 0
  %v95 = vsel %vm84, %v71, 0
  %97 = vmatprep.subr.bf16.mxu0 0
  %98 = vmatpush1.bf16.msra.mxu0 0
  %99 = vmatprep.subr.bf16.mxu0 0
  %100 = vmatpush1.bf16.msra.mxu0 0
  %101 = vmatprep.subr.bf16.mxu0 0
  %102 = vmatpush1.bf16.msra.mxu0 0
  %103 = vmatprep.subr.bf16.mxu0 0
  %104 = vmatpush1.bf16.msra.mxu0 0
  %105 = vmatprep.subr.bf16.mxu0 0
  %106 = vmatpush1.bf16.msra.mxu0 0
  %107 = vmatprep.subr.bf16.mxu0 0
  %108 = vmatpush1.bf16.msra.mxu0 0
  %109 = vmatprep.subr.bf16.mxu0 0
  %110 = vmatpush1.bf16.msra.mxu0 %v81
  %111 = vmatprep.subr.bf16.mxu0 0
  %112 = vmatpush1.bf16.msra.mxu0 %v80
  %113 = vmatprep.subr.bf16.mxu0 0
  %114 = vmatpush2.bf16.msra.mxu0 0
  %115 = vmatprep.subr.bf16.mxu0 0
  %116 = vmatpush2.bf16.msra.mxu0 0
  %117 = vmatprep.subr.bf16.mxu0 0
  %118 = vmatpush2.bf16.msra.mxu0 0
  %119 = vmatprep.subr.bf16.mxu0 0
  %120 = vmatpush2.bf16.msra.mxu0 0
  %121 = vmatprep.subr.bf16.mxu0 0
  %122 = vmatpush2.bf16.msra.mxu0 0
  %123 = vmatprep.subr.bf16.mxu0 0
  %124 = vmatpush2.bf16.msra.mxu0 0
  %125 = vmatprep.subr.bf16.mxu0 0
  %126 = vmatpush2.bf16.msra.mxu0 0
  %127 = vmatprep.subr.bf16.mxu0 0
  %128 = vmatpush2.bf16.msra.mxu0 0
  %129 = vmatprep.mubr.bf16.mxu0 0
  %130 = vmatmul.mubr.bf16.gmra.mxu0 %v86
  %v131 = vpop.f32.mrf.mxu0
  %v132 = vadd.f32 %v50, %v131
  %v133 = vpop.f32.mrf.mxu0
  %v134 = vpop.f32.mrf.mxu0
  %v135 = vadd.f32 %v50, %v134
  %v136 = vpop.f32.mrf.mxu0
  %137 = vmatprep.mubr.bf16.mxu0 0
  %138 = vmatmul.mubr.bf16.gmra.mxu0 %v89
  %v139 = vpop.f32.mrf.mxu0
  %v140 = vadd.f32 %v50, %v139
  %v141 = vpop.f32.mrf.mxu0
  %v142 = vpop.f32.mrf.mxu0
  %v143 = vadd.f32 %v50, %v142
  %v144 = vpop.f32.mrf.mxu0
  %145 = vmatprep.mubr.bf16.mxu0 0
  %146 = vmatmul.mubr.bf16.gmra.mxu0 %v92
  %v147 = vpop.f32.mrf.mxu0
  %v148 = vadd.f32 %v50, %v147
  %v149 = vpop.f32.mrf.mxu0
  %v150 = vpop.f32.mrf.mxu0
  %v151 = vadd.f32 %v50, %v150
  %v152 = vpop.f32.mrf.mxu0
  %153 = vmatprep.mubr.bf16.mxu0 0
  %154 = vmatmul.mubr.bf16.gmra.mxu0 %v95
  %v155 = vpop.f32.mrf.mxu0
  %v156 = vadd.f32 %v50, %v155
  %v157 = vpop.f32.mrf.mxu0
  %v158 = vpop.f32.mrf.mxu0
  %v159 = vadd.f32 %v50, %v158
  %v160 = vpop.f32.mrf.mxu0
  %161 = vdwg.mxu0
  %162 = vst [vmem:[#allocation2] sm:$0xff] %v132
  %163 = vst [vmem:[#allocation2 + $0x8] sm:$0xff] %v135
  %164 = vst [vmem:[#allocation2 + $0x10] sm:$0xff] %v140
  %165 = vst [vmem:[#allocation2 + $0x18] sm:$0xff] %v143
  %166 = vst [vmem:[#allocation2 + $0x20] sm:$0xff] %v148
  %167 = vst [vmem:[#allocation2 + $0x28] sm:$0xff] %v151
  %168 = vst [vmem:[#allocation2 + $0x30] sm:$0xff] %v156
  %169 = vst [vmem:[#allocation2 + $0x38] sm:$0xff] %v159
  %v170 = vld [vmem:[%s2] sm:$0xff]
  %v171 = vld [vmem:[%s2 + $0x8] sm:$0xff]
  %v172 = vld [vmem:[%s2 + $0x10] sm:$0xff]
  %v173 = vld [vmem:[%s2 + $0x18] sm:$0xff]
  %v174 = vld [vmem:[%s5] sm:$0xff]
  %v175 = vld [vmem:[%s5 + $0x8] sm:$0xff]
  %v176 = vld [vmem:[%s5 + $0x10] sm:$0xff]
  %v177 = vld [vmem:[%s5 + $0x18] sm:$0xff]
  %v178 = vld [vmem:[%s4] sm:$0xff]
  %v179 = vld [vmem:[%s4 + $0x8] sm:$0xff]
  %v180 = vld [vmem:[%s4 + $0x10] sm:$0xff]
  %v181 = vld [vmem:[%s4 + $0x18] sm:$0xff]
  %v182 = vld [vmem:[%s6] sm:$0x1]
  %v184 = vlaneseq
  %v185 = vshrl.u32 %v184, 7
  %v186 = vsub.s32 0, %v185
  %v187 = vrot.slane %v182, %v186
  %v189 = vld [vmem:[#allocation2] sm:$0xff]
  %v191 = vsel %vm84, 0.0, 0
  %193 = vmatprep.subr.mxu0 0.0
  %194 = vmatpush1.msra.mxu0 0.0
  %195 = vmatprep.subr.mxu0 0.0
  %196 = vmatpush1.msra.mxu0 0.0
  %197 = vmatprep.subr.mxu0 0.0
  %198 = vmatpush1.msra.mxu0 0.0
  %199 = vmatprep.subr.mxu0 0.0
  %200 = vmatpush1.msra.mxu0 0.0
  %201 = vmatprep.subr.mxu0 0.0
  %202 = vmatpush1.msra.mxu0 0.0
  %203 = vmatprep.subr.mxu0 0.0
  %204 = vmatpush1.msra.mxu0 0.0
  %205 = vmatprep.subr.mxu0 0.0
  %206 = vmatpush1.msra.mxu0 0.0
  %207 = vmatprep.subr.mxu0 0.0
  %208 = vmatpush1.msra.mxu0 0.0
  %209 = vmatprep.subr.mxu0 0.0
  %210 = vmatpush1.msra.mxu0 0.0
  %211 = vmatprep.subr.mxu0 0.0
  %212 = vmatpush1.msra.mxu0 0.0
  %213 = vmatprep.subr.mxu0 0.0
  %214 = vmatpush1.msra.mxu0 0.0
  %215 = vmatprep.subr.mxu0 0.0
  %216 = vmatpush1.msra.mxu0 0.0
  %217 = vmatprep.subr.mxu0 0.0
  %218 = vmatpush1.msra.mxu0 %v173
  %219 = vmatprep.subr.mxu0 0.0
  %220 = vmatpush1.msra.mxu0 %v172
  %221 = vmatprep.subr.mxu0 0.0
  %222 = vmatpush1.msra.mxu0 %v171
  %223 = vmatprep.subr.mxu0 0.0
  %224 = vmatpush1.msra.mxu0 %v170
  %225 = vmatprep.subr.mxu0 0.0
  %226 = vmatpush2.msra.mxu0 0.0
  %227 = vmatprep.subr.mxu0 0.0
  %228 = vmatpush2.msra.mxu0 0.0
  %229 = vmatprep.subr.mxu0 0.0
  %230 = vmatpush2.msra.mxu0 0.0
  %231 = vmatprep.subr.mxu0 0.0
  %232 = vmatpush2.msra.mxu0 0.0
  %233 = vmatprep.subr.mxu0 0.0
  %234 = vmatpush2.msra.mxu0 0.0
  %235 = vmatprep.subr.mxu0 0.0
  %236 = vmatpush2.msra.mxu0 0.0
  %237 = vmatprep.subr.mxu0 0.0
  %238 = vmatpush2.msra.mxu0 0.0
  %239 = vmatprep.subr.mxu0 0.0
  %240 = vmatpush2.msra.mxu0 0.0
  %241 = vmatprep.subr.mxu0 0.0
  %242 = vmatpush2.msra.mxu0 0.0
  %243 = vmatprep.subr.mxu0 0.0
  %244 = vmatpush2.msra.mxu0 0.0
  %245 = vmatprep.subr.mxu0 0.0
  %246 = vmatpush2.msra.mxu0 0.0
  %247 = vmatprep.subr.mxu0 0.0
  %248 = vmatpush2.msra.mxu0 0.0
  %249 = vmatprep.subr.mxu0 0.0
  %250 = vmatpush2.msra.mxu0 0.0
  %251 = vmatprep.subr.mxu0 0.0
  %252 = vmatpush2.msra.mxu0 0.0
  %253 = vmatprep.subr.mxu0 0.0
  %254 = vmatpush2.msra.mxu0 0.0
  %255 = vmatprep.subr.mxu0 0.0
  %256 = vmatpush2.msra.mxu0 0.0
  %257 = vmatprep.mubr.f32.mxu0 0.0
  %258 = vmatmul.mubr.f32.gmra.mxu0 %v191
  %v259 = vpop.f32.mrf.mxu0
  %v260 = vadd.f32 0.0, %v259
  %v261 = vpop.f32.mrf.mxu0
  %262 = vdwg.mxu0
  %v263 = vadd.f32 %v189, %v260
  %v264 = vxor.u32 %v263, 2147483648
  %v265 = vmul.f32 %v264, 1.442695
  %v266 = vpow.pop %v265
  %v267 = vadd.f32 %v266, 1.0
  %v268 = vrcp.pop %v267
  %v269 = vmul.f32 1.0, %v268
  %v270 = vtanh.pop %v263
  %v271 = vmul.f32 %v269, 0.0
  %273 = vrot.lane.b32.xlu0 %v270, 64
  %v274 = vpop.permute.xlu0 %273
  %v276 = vmul.f32 %v269, %v274
  %278 = vrot.lane.b32.xlu0 %v276, 32
  %v279 = vpop.permute.xlu0 %278
  %v281 = vadd.f32 %v271, %v279
  %v282 = vtanh.pop %v281
  %284 = vrot.lane.b32.xlu0 %v282, 64
  %v285 = vpop.permute.xlu0 %284
  %v287 = vmul.f32 %v269, %v285
  %v288 = vadd.f32 %v287, 0.0
  %v289 = vadd.f32 %v281, 0.0
  %290 = vmatprep.subr.mxu0 0.0
  %291 = vmatpush1.msra.mxu0 0.0
  %292 = vmatprep.subr.mxu0 0.0
  %293 = vmatpush1.msra.mxu0 0.0
  %294 = vmatprep.subr.mxu0 0.0
  %295 = vmatpush1.msra.mxu0 0.0
  %296 = vmatprep.subr.mxu0 0.0
  %297 = vmatpush1.msra.mxu0 0.0
  %298 = vmatprep.subr.mxu0 0.0
  %299 = vmatpush1.msra.mxu0 0.0
  %300 = vmatprep.subr.mxu0 0.0
  %301 = vmatpush1.msra.mxu0 0.0
  %302 = vmatprep.subr.mxu0 0.0
  %303 = vmatpush1.msra.mxu0 0.0
  %304 = vmatprep.subr.mxu0 0.0
  %305 = vmatpush1.msra.mxu0 0.0
  %306 = vmatprep.subr.mxu0 0.0
  %307 = vmatpush1.msra.mxu0 0.0
  %308 = vmatprep.subr.mxu0 0.0
  %309 = vmatpush1.msra.mxu0 0.0
  %310 = vmatprep.subr.mxu0 0.0
  %311 = vmatpush1.msra.mxu0 0.0
  %312 = vmatprep.subr.mxu0 0.0
  %313 = vmatpush1.msra.mxu0 0.0
  %314 = vmatprep.subr.mxu0 0.0
  %315 = vmatpush1.msra.mxu0 %v177
  %316 = vmatprep.subr.mxu0 0.0
  %317 = vmatpush1.msra.mxu0 %v176
  %318 = vmatprep.subr.mxu0 0.0
  %319 = vmatpush1.msra.mxu0 %v175
  %320 = vmatprep.subr.mxu0 0.0
  %321 = vmatpush1.msra.mxu0 %v174
  %322 = vmatprep.subr.mxu0 0.0
  %323 = vmatpush2.msra.mxu0 0.0
  %324 = vmatprep.subr.mxu0 0.0
  %325 = vmatpush2.msra.mxu0 0.0
  %326 = vmatprep.subr.mxu0 0.0
  %327 = vmatpush2.msra.mxu0 0.0
  %328 = vmatprep.subr.mxu0 0.0
  %329 = vmatpush2.msra.mxu0 0.0
  %330 = vmatprep.subr.mxu0 0.0
  %331 = vmatpush2.msra.mxu0 0.0
  %332 = vmatprep.subr.mxu0 0.0
  %333 = vmatpush2.msra.mxu0 0.0
  %334 = vmatprep.subr.mxu0 0.0
  %335 = vmatpush2.msra.mxu0 0.0
  %336 = vmatprep.subr.mxu0 0.0
  %337 = vmatpush2.msra.mxu0 0.0
  %338 = vmatprep.subr.mxu0 0.0
  %339 = vmatpush2.msra.mxu0 0.0
  %340 = vmatprep.subr.mxu0 0.0
  %341 = vmatpush2.msra.mxu0 0.0
  %342 = vmatprep.subr.mxu0 0.0
  %343 = vmatpush2.msra.mxu0 0.0
  %344 = vmatprep.subr.mxu0 0.0
  %345 = vmatpush2.msra.mxu0 0.0
  %346 = vmatprep.subr.mxu0 0.0
  %347 = vmatpush2.msra.mxu0 0.0
  %348 = vmatprep.subr.mxu0 0.0
  %349 = vmatpush2.msra.mxu0 0.0
  %350 = vmatprep.subr.mxu0 0.0
  %351 = vmatpush2.msra.mxu0 0.0
  %352 = vmatprep.subr.mxu0 0.0
  %353 = vmatpush2.msra.mxu0 0.0
  %354 = vmatprep.mubr.f32.mxu0 0.0
  %355 = vmatmul.mubr.f32.gmra.mxu0 %v191
  %v356 = vpop.f32.mrf.mxu0
  %v357 = vadd.f32 0.0, %v356
  %v358 = vpop.f32.mrf.mxu0
  %359 = vdwg.mxu0
  %360 = vmatprep.subr.mxu0 0.0
  %361 = vmatpush1.msra.mxu0 0.0
  %362 = vmatprep.subr.mxu0 0.0
  %363 = vmatpush1.msra.mxu0 0.0
  %364 = vmatprep.subr.mxu0 0.0
  %365 = vmatpush1.msra.mxu0 0.0
  %366 = vmatprep.subr.mxu0 0.0
  %367 = vmatpush1.msra.mxu0 0.0
  %368 = vmatprep.subr.mxu0 0.0
  %369 = vmatpush1.msra.mxu0 0.0
  %370 = vmatprep.subr.mxu0 0.0
  %371 = vmatpush1.msra.mxu0 0.0
  %372 = vmatprep.subr.mxu0 0.0
  %373 = vmatpush1.msra.mxu0 0.0
  %374 = vmatprep.subr.mxu0 0.0
  %375 = vmatpush1.msra.mxu0 0.0
  %376 = vmatprep.subr.mxu0 0.0
  %377 = vmatpush1.msra.mxu0 0.0
  %378 = vmatprep.subr.mxu0 0.0
  %379 = vmatpush1.msra.mxu0 0.0
  %380 = vmatprep.subr.mxu0 0.0
  %381 = vmatpush1.msra.mxu0 0.0
  %382 = vmatprep.subr.mxu0 0.0
  %383 = vmatpush1.msra.mxu0 0.0
  %384 = vmatprep.subr.mxu0 0.0
  %385 = vmatpush1.msra.mxu0 %v181
  %386 = vmatprep.subr.mxu0 0.0
  %387 = vmatpush1.msra.mxu0 %v180
  %388 = vmatprep.subr.mxu0 0.0
  %389 = vmatpush1.msra.mxu0 %v179
  %390 = vmatprep.subr.mxu0 0.0
  %391 = vmatpush1.msra.mxu0 %v178
  %392 = vmatprep.subr.mxu0 0.0
  %393 = vmatpush2.msra.mxu0 0.0
  %394 = vmatprep.subr.mxu0 0.0
  %395 = vmatpush2.msra.mxu0 0.0
  %396 = vmatprep.subr.mxu0 0.0
  %397 = vmatpush2.msra.mxu0 0.0
  %398 = vmatprep.subr.mxu0 0.0
  %399 = vmatpush2.msra.mxu0 0.0
  %400 = vmatprep.subr.mxu0 0.0
  %401 = vmatpush2.msra.mxu0 0.0
  %402 = vmatprep.subr.mxu0 0.0
  %403 = vmatpush2.msra.mxu0 0.0
  %404 = vmatprep.subr.mxu0 0.0
  %405 = vmatpush2.msra.mxu0 0.0
  %406 = vmatprep.subr.mxu0 0.0
  %407 = vmatpush2.msra.mxu0 0.0
  %408 = vmatprep.subr.mxu0 0.0
  %409 = vmatpush2.msra.mxu0 0.0
  %410 = vmatprep.subr.mxu0 0.0
  %411 = vmatpush2.msra.mxu0 0.0
  %412 = vmatprep.subr.mxu0 0.0
  %413 = vmatpush2.msra.mxu0 0.0
  %414 = vmatprep.subr.mxu0 0.0
  %415 = vmatpush2.msra.mxu0 0.0
  %416 = vmatprep.subr.mxu0 0.0
  %417 = vmatpush2.msra.mxu0 0.0
  %418 = vmatprep.subr.mxu0 0.0
  %419 = vmatpush2.msra.mxu0 0.0
  %420 = vmatprep.subr.mxu0 0.0
  %421 = vmatpush2.msra.mxu0 0.0
  %422 = vmatprep.subr.mxu0 0.0
  %423 = vmatpush2.msra.mxu0 0.0
  %424 = vmatprep.mubr.f32.mxu0 0.0
  %425 = vmatmul.mubr.f32.gmra.mxu0 %v191
  %v426 = vpop.f32.mrf.mxu0
  %v427 = vadd.f32 %v357, %v426
  %v428 = vpop.f32.mrf.mxu0
  %429 = vdwg.mxu0
  %v430 = vadd.f32 %v427, %v187
  %v431 = vxor.u32 %v430, 2147483648
  %v432 = vmul.f32 %v431, 1.442695
  %v433 = vpow.pop %v432
  %v434 = vadd.f32 %v433, 1.0
  %v435 = vrcp.pop %v434
  %v436 = vmul.f32 1.0, %v435
  %v437 = vtanh.pop %v430
  %v438 = vmul.f32 %v436, 0.0
  %440 = vrot.lane.b32.xlu0 %v437, 64
  %v441 = vpop.permute.xlu0 %440
  %v443 = vmul.f32 %v436, %v441
  %445 = vrot.lane.b32.xlu0 %v443, 32
  %v446 = vpop.permute.xlu0 %445
  %v448 = vadd.f32 %v438, %v446
  %v449 = vtanh.pop %v448
  %451 = vrot.lane.b32.xlu0 %v449, 64
  %v452 = vpop.permute.xlu0 %451
  %v454 = vmul.f32 %v436, %v452
  %v455 = vmul.f32 %v454, 0.0
  %v456 = vadd.f32 %v455, 0.0
  %v457 = vmul.f32 %v448, 0.0
  %v458 = vadd.f32 %v457, 0.0
  %460 = vrot.lane.b32.xlu0 %v456, 32
  %v461 = vpop.permute.xlu0 %460
  %463 = vst.msk [vmem:[#allocation3] sm:$0xff] %vm84, %v461
  %s464 = scalar_lea.vmem [#allocation2], 8
  %v465 = vld [vmem:[%s464] sm:$0xff]
  %467 = vrot.lane.b32.xlu0 %v288, 32
  %v468 = vpop.permute.xlu0 %467
  %v469 = vsel %vm84, %v468, 0
  %471 = vmatprep.subr.mxu0 0.0
  %472 = vmatpush1.msra.mxu0 0.0
  %473 = vmatprep.subr.mxu0 0.0
  %474 = vmatpush1.msra.mxu0 0.0
  %475 = vmatprep.subr.mxu0 0.0
  %476 = vmatpush1.msra.mxu0 0.0
  %477 = vmatprep.subr.mxu0 0.0
  %478 = vmatpush1.msra.mxu0 0.0
  %479 = vmatprep.subr.mxu0 0.0
  %480 = vmatpush1.msra.mxu0 0.0
  %481 = vmatprep.subr.mxu0 0.0
  %482 = vmatpush1.msra.mxu0 0.0
  %483 = vmatprep.subr.mxu0 0.0
  %484 = vmatpush1.msra.mxu0 0.0
  %485 = vmatprep.subr.mxu0 0.0
  %486 = vmatpush1.msra.mxu0 0.0
  %487 = vmatprep.subr.mxu0 0.0
  %488 = vmatpush1.msra.mxu0 0.0
  %489 = vmatprep.subr.mxu0 0.0
  %490 = vmatpush1.msra.mxu0 0.0
  %491 = vmatprep.subr.mxu0 0.0
  %492 = vmatpush1.msra.mxu0 0.0
  %493 = vmatprep.subr.mxu0 0.0
  %494 = vmatpush1.msra.mxu0 0.0
  %495 = vmatprep.subr.mxu0 0.0
  %496 = vmatpush1.msra.mxu0 %v173
  %497 = vmatprep.subr.mxu0 0.0
  %498 = vmatpush1.msra.mxu0 %v172
  %499 = vmatprep.subr.mxu0 0.0
  %500 = vmatpush1.msra.mxu0 %v171
  %501 = vmatprep.subr.mxu0 0.0
  %502 = vmatpush1.msra.mxu0 %v170
  %503 = vmatprep.subr.mxu0 0.0
  %504 = vmatpush2.msra.mxu0 0.0
  %505 = vmatprep.subr.mxu0 0.0
  %506 = vmatpush2.msra.mxu0 0.0
  %507 = vmatprep.subr.mxu0 0.0
  %508 = vmatpush2.msra.mxu0 0.0
  %509 = vmatprep.subr.mxu0 0.0
  %510 = vmatpush2.msra.mxu0 0.0
  %511 = vmatprep.subr.mxu0 0.0
  %512 = vmatpush2.msra.mxu0 0.0
  %513 = vmatprep.subr.mxu0 0.0
  %514 = vmatpush2.msra.mxu0 0.0
  %515 = vmatprep.subr.mxu0 0.0
  %516 = vmatpush2.msra.mxu0 0.0
  %517 = vmatprep.subr.mxu0 0.0
  %518 = vmatpush2.msra.mxu0 0.0
  %519 = vmatprep.subr.mxu0 0.0
  %520 = vmatpush2.msra.mxu0 0.0
  %521 = vmatprep.subr.mxu0 0.0
  %522 = vmatpush2.msra.mxu0 0.0
  %523 = vmatprep.subr.mxu0 0.0
  %524 = vmatpush2.msra.mxu0 0.0
  %525 = vmatprep.subr.mxu0 0.0
  %526 = vmatpush2.msra.mxu0 0.0
  %527 = vmatprep.subr.mxu0 0.0
  %528 = vmatpush2.msra.mxu0 0.0
  %529 = vmatprep.subr.mxu0 0.0
  %530 = vmatpush2.msra.mxu0 0.0
  %531 = vmatprep.subr.mxu0 0.0
  %532 = vmatpush2.msra.mxu0 0.0
  %533 = vmatprep.subr.mxu0 0.0
  %534 = vmatpush2.msra.mxu0 0.0
  %535 = vmatprep.mubr.f32.mxu0 0.0
  %536 = vmatmul.mubr.f32.gmra.mxu0 %v469
  %v537 = vpop.f32.mrf.mxu0
  %v538 = vadd.f32 0.0, %v537
  %v539 = vpop.f32.mrf.mxu0
  %540 = vdwg.mxu0
  %v541 = vadd.f32 %v465, %v538
  %v542 = vxor.u32 %v541, 2147483648
  %v543 = vmul.f32 %v542, 1.442695
  %v544 = vpow.pop %v543
  %v545 = vadd.f32 %v544, 1.0
  %v546 = vrcp.pop %v545
  %v547 = vmul.f32 1.0, %v546
  %v548 = vtanh.pop %v541
  %v549 = vmul.f32 %v547, %v289
  %551 = vrot.lane.b32.xlu0 %v548, 64
  %v552 = vpop.permute.xlu0 %551
  %v554 = vmul.f32 %v547, %v552
  %556 = vrot.lane.b32.xlu0 %v554, 32
  %v557 = vpop.permute.xlu0 %556
  %v559 = vadd.f32 %v549, %v557
  %v560 = vtanh.pop %v559
  %562 = vrot.lane.b32.xlu0 %v560, 64
  %v563 = vpop.permute.xlu0 %562
  %v565 = vmul.f32 %v547, %v563
  %v566 = vsub.f32 %v565, %v288
  %v567 = vadd.f32 %v288, %v566
  %v568 = vsub.f32 %v559, %v289
  %v569 = vadd.f32 %v289, %v568
  %v570 = vsel %vm84, %v461, 0
  %572 = vmatprep.subr.mxu0 0.0
  %573 = vmatpush1.msra.mxu0 0.0
  %574 = vmatprep.subr.mxu0 0.0
  %575 = vmatpush1.msra.mxu0 0.0
  %576 = vmatprep.subr.mxu0 0.0
  %577 = vmatpush1.msra.mxu0 0.0
  %578 = vmatprep.subr.mxu0 0.0
  %579 = vmatpush1.msra.mxu0 0.0
  %580 = vmatprep.subr.mxu0 0.0
  %581 = vmatpush1.msra.mxu0 0.0
  %582 = vmatprep.subr.mxu0 0.0
  %583 = vmatpush1.msra.mxu0 0.0
  %584 = vmatprep.subr.mxu0 0.0
  %585 = vmatpush1.msra.mxu0 0.0
  %586 = vmatprep.subr.mxu0 0.0
  %587 = vmatpush1.msra.mxu0 0.0
  %588 = vmatprep.subr.mxu0 0.0
  %589 = vmatpush1.msra.mxu0 0.0
  %590 = vmatprep.subr.mxu0 0.0
  %591 = vmatpush1.msra.mxu0 0.0
  %592 = vmatprep.subr.mxu0 0.0
  %593 = vmatpush1.msra.mxu0 0.0
  %594 = vmatprep.subr.mxu0 0.0
  %595 = vmatpush1.msra.mxu0 0.0
  %596 = vmatprep.subr.mxu0 0.0
  %597 = vmatpush1.msra.mxu0 %v177
  %598 = vmatprep.subr.mxu0 0.0
  %599 = vmatpush1.msra.mxu0 %v176
  %600 = vmatprep.subr.mxu0 0.0
  %601 = vmatpush1.msra.mxu0 %v175
  %602 = vmatprep.subr.mxu0 0.0
  %603 = vmatpush1.msra.mxu0 %v174
  %604 = vmatprep.subr.mxu0 0.0
  %605 = vmatpush2.msra.mxu0 0.0
  %606 = vmatprep.subr.mxu0 0.0
  %607 = vmatpush2.msra.mxu0 0.0
  %608 = vmatprep.subr.mxu0 0.0
  %609 = vmatpush2.msra.mxu0 0.0
  %610 = vmatprep.subr.mxu0 0.0
  %611 = vmatpush2.msra.mxu0 0.0
  %612 = vmatprep.subr.mxu0 0.0
  %613 = vmatpush2.msra.mxu0 0.0
  %614 = vmatprep.subr.mxu0 0.0
  %615 = vmatpush2.msra.mxu0 0.0
  %616 = vmatprep.subr.mxu0 0.0
  %617 = vmatpush2.msra.mxu0 0.0
  %618 = vmatprep.subr.mxu0 0.0
  %619 = vmatpush2.msra.mxu0 0.0
  %620 = vmatprep.subr.mxu0 0.0
  %621 = vmatpush2.msra.mxu0 0.0
  %622 = vmatprep.subr.mxu0 0.0
  %623 = vmatpush2.msra.mxu0 0.0
  %624 = vmatprep.subr.mxu0 0.0
  %625 = vmatpush2.msra.mxu0 0.0
  %626 = vmatprep.subr.mxu0 0.0
  %627 = vmatpush2.msra.mxu0 0.0
  %628 = vmatprep.subr.mxu0 0.0
  %629 = vmatpush2.msra.mxu0 0.0
  %630 = vmatprep.subr.mxu0 0.0
  %631 = vmatpush2.msra.mxu0 0.0
  %632 = vmatprep.subr.mxu0 0.0
  %633 = vmatpush2.msra.mxu0 0.0
  %634 = vmatprep.subr.mxu0 0.0
  %635 = vmatpush2.msra.mxu0 0.0
  %636 = vmatprep.mubr.f32.mxu0 0.0
  %637 = vmatmul.mubr.f32.gmra.mxu0 %v570
  %v638 = vpop.f32.mrf.mxu0
  %v639 = vadd.f32 0.0, %v638
  %v640 = vpop.f32.mrf.mxu0
  %641 = vdwg.mxu0
  %642 = vmatprep.subr.mxu0 0.0
  %643 = vmatpush1.msra.mxu0 0.0
  %644 = vmatprep.subr.mxu0 0.0
  %645 = vmatpush1.msra.mxu0 0.0
  %646 = vmatprep.subr.mxu0 0.0
  %647 = vmatpush1.msra.mxu0 0.0
  %648 = vmatprep.subr.mxu0 0.0
  %649 = vmatpush1.msra.mxu0 0.0
  %650 = vmatprep.subr.mxu0 0.0
  %651 = vmatpush1.msra.mxu0 0.0
  %652 = vmatprep.subr.mxu0 0.0
  %653 = vmatpush1.msra.mxu0 0.0
  %654 = vmatprep.subr.mxu0 0.0
  %655 = vmatpush1.msra.mxu0 0.0
  %656 = vmatprep.subr.mxu0 0.0
  %657 = vmatpush1.msra.mxu0 0.0
  %658 = vmatprep.subr.mxu0 0.0
  %659 = vmatpush1.msra.mxu0 0.0
  %660 = vmatprep.subr.mxu0 0.0
  %661 = vmatpush1.msra.mxu0 0.0
  %662 = vmatprep.subr.mxu0 0.0
  %663 = vmatpush1.msra.mxu0 0.0
  %664 = vmatprep.subr.mxu0 0.0
  %665 = vmatpush1.msra.mxu0 0.0
  %666 = vmatprep.subr.mxu0 0.0
  %667 = vmatpush1.msra.mxu0 %v181
  %668 = vmatprep.subr.mxu0 0.0
  %669 = vmatpush1.msra.mxu0 %v180
  %670 = vmatprep.subr.mxu0 0.0
  %671 = vmatpush1.msra.mxu0 %v179
  %672 = vmatprep.subr.mxu0 0.0
  %673 = vmatpush1.msra.mxu0 %v178
  %674 = vmatprep.subr.mxu0 0.0
  %675 = vmatpush2.msra.mxu0 0.0
  %676 = vmatprep.subr.mxu0 0.0
  %677 = vmatpush2.msra.mxu0 0.0
  %678 = vmatprep.subr.mxu0 0.0
  %679 = vmatpush2.msra.mxu0 0.0
  %680 = vmatprep.subr.mxu0 0.0
  %681 = vmatpush2.msra.mxu0 0.0
  %682 = vmatprep.subr.mxu0 0.0
  %683 = vmatpush2.msra.mxu0 0.0
  %684 = vmatprep.subr.mxu0 0.0
  %685 = vmatpush2.msra.mxu0 0.0
  %686 = vmatprep.subr.mxu0 0.0
  %687 = vmatpush2.msra.mxu0 0.0
  %688 = vmatprep.subr.mxu0 0.0
  %689 = vmatpush2.msra.mxu0 0.0
  %690 = vmatprep.subr.mxu0 0.0
  %691 = vmatpush2.msra.mxu0 0.0
  %692 = vmatprep.subr.mxu0 0.0
  %693 = vmatpush2.msra.mxu0 0.0
  %694 = vmatprep.subr.mxu0 0.0
  %695 = vmatpush2.msra.mxu0 0.0
  %696 = vmatprep.subr.mxu0 0.0
  %697 = vmatpush2.msra.mxu0 0.0
  %698 = vmatprep.subr.mxu0 0.0
  %699 = vmatpush2.msra.mxu0 0.0
  %700 = vmatprep.subr.mxu0 0.0
  %701 = vmatpush2.msra.mxu0 0.0
  %702 = vmatprep.subr.mxu0 0.0
  %703 = vmatpush2.msra.mxu0 0.0
  %704 = vmatprep.subr.mxu0 0.0
  %705 = vmatpush2.msra.mxu0 0.0
  %706 = vmatprep.mubr.f32.mxu0 0.0
  %707 = vmatmul.mubr.f32.gmra.mxu0 %v469
  %v708 = vpop.f32.mrf.mxu0
  %v709 = vadd.f32 %v639, %v708
  %v710 = vpop.f32.mrf.mxu0
  %711 = vdwg.mxu0
  %v712 = vadd.f32 %v709, %v187
  %v713 = vxor.u32 %v712, 2147483648
  %v714 = vmul.f32 %v713, 1.442695
  %v715 = vpow.pop %v714
  %v716 = vadd.f32 %v715, 1.0
  %v717 = vrcp.pop %v716
  %v718 = vmul.f32 1.0, %v717
  %v719 = vtanh.pop %v712
  %v720 = vmul.f32 %v718, %v458
  %722 = vrot.lane.b32.xlu0 %v719, 64
  %v723 = vpop.permute.xlu0 %722
  %v725 = vmul.f32 %v718, %v723
  %727 = vrot.lane.b32.xlu0 %v725, 32
  %v728 = vpop.permute.xlu0 %727
  %v730 = vadd.f32 %v720, %v728
  %v731 = vtanh.pop %v730
  %733 = vrot.lane.b32.xlu0 %v731, 64
  %v734 = vpop.permute.xlu0 %733
  %v736 = vmul.f32 %v718, %v734
  %v737 = vsub.f32 %v736, %v456
  %v738 = vadd.f32 %v456, %v737
  %v739 = vsub.f32 %v730, %v458
  %v740 = vadd.f32 %v458, %v739
  %742 = vrot.lane.b32.xlu0 %v738, 32
  %v743 = vpop.permute.xlu0 %742
  %s745 = scalar_lea.vmem [#allocation3], 8
  %746 = vst.msk [vmem:[%s745] sm:$0xff] %vm84, %v743
  %s747 = scalar_lea.vmem [#allocation2], 16
  %v748 = vld [vmem:[%s747] sm:$0xff]
  %750 = vrot.lane.b32.xlu0 %v567, 32
  %v751 = vpop.permute.xlu0 %750
  %v752 = vsel %vm84, %v751, 0
  %754 = vmatprep.subr.mxu0 0.0
  %755 = vmatpush1.msra.mxu0 0.0
  %756 = vmatprep.subr.mxu0 0.0
  %757 = vmatpush1.msra.mxu0 0.0
  %758 = vmatprep.subr.mxu0 0.0
  %759 = vmatpush1.msra.mxu0 0.0
  %760 = vmatprep.subr.mxu0 0.0
  %761 = vmatpush1.msra.mxu0 0.0
  %762 = vmatprep.subr.mxu0 0.0
  %763 = vmatpush1.msra.mxu0 0.0
  %764 = vmatprep.subr.mxu0 0.0
  %765 = vmatpush1.msra.mxu0 0.0
  %766 = vmatprep.subr.mxu0 0.0
  %767 = vmatpush1.msra.mxu0 0.0
  %768 = vmatprep.subr.mxu0 0.0
  %769 = vmatpush1.msra.mxu0 0.0
  %770 = vmatprep.subr.mxu0 0.0
  %771 = vmatpush1.msra.mxu0 0.0
  %772 = vmatprep.subr.mxu0 0.0
  %773 = vmatpush1.msra.mxu0 0.0
  %774 = vmatprep.subr.mxu0 0.0
  %775 = vmatpush1.msra.mxu0 0.0
  %776 = vmatprep.subr.mxu0 0.0
  %777 = vmatpush1.msra.mxu0 0.0
  %778 = vmatprep.subr.mxu0 0.0
  %779 = vmatpush1.msra.mxu0 %v173
  %780 = vmatprep.subr.mxu0 0.0
  %781 = vmatpush1.msra.mxu0 %v172
  %782 = vmatprep.subr.mxu0 0.0
  %783 = vmatpush1.msra.mxu0 %v171
  %784 = vmatprep.subr.mxu0 0.0
  %785 = vmatpush1.msra.mxu0 %v170
  %786 = vmatprep.subr.mxu0 0.0
  %787 = vmatpush2.msra.mxu0 0.0
  %788 = vmatprep.subr.mxu0 0.0
  %789 = vmatpush2.msra.mxu0 0.0
  %790 = vmatprep.subr.mxu0 0.0
  %791 = vmatpush2.msra.mxu0 0.0
  %792 = vmatprep.subr.mxu0 0.0
  %793 = vmatpush2.msra.mxu0 0.0
  %794 = vmatprep.subr.mxu0 0.0
  %795 = vmatpush2.msra.mxu0 0.0
  %796 = vmatprep.subr.mxu0 0.0
  %797 = vmatpush2.msra.mxu0 0.0
  %798 = vmatprep.subr.mxu0 0.0
  %799 = vmatpush2.msra.mxu0 0.0
  %800 = vmatprep.subr.mxu0 0.0
  %801 = vmatpush2.msra.mxu0 0.0
  %802 = vmatprep.subr.mxu0 0.0
  %803 = vmatpush2.msra.mxu0 0.0
  %804 = vmatprep.subr.mxu0 0.0
  %805 = vmatpush2.msra.mxu0 0.0
  %806 = vmatprep.subr.mxu0 0.0
  %807 = vmatpush2.msra.mxu0 0.0
  %808 = vmatprep.subr.mxu0 0.0
  %809 = vmatpush2.msra.mxu0 0.0
  %810 = vmatprep.subr.mxu0 0.0
  %811 = vmatpush2.msra.mxu0 0.0
  %812 = vmatprep.subr.mxu0 0.0
  %813 = vmatpush2.msra.mxu0 0.0
  %814 = vmatprep.subr.mxu0 0.0
  %815 = vmatpush2.msra.mxu0 0.0
  %816 = vmatprep.subr.mxu0 0.0
  %817 = vmatpush2.msra.mxu0 0.0
  %818 = vmatprep.mubr.f32.mxu0 0.0
  %819 = vmatmul.mubr.f32.gmra.mxu0 %v752
  %v820 = vpop.f32.mrf.mxu0
  %v821 = vadd.f32 0.0, %v820
  %v822 = vpop.f32.mrf.mxu0
  %823 = vdwg.mxu0
  %v824 = vadd.f32 %v748, %v821
  %v825 = vxor.u32 %v824, 2147483648
  %v826 = vmul.f32 %v825, 1.442695
  %v827 = vpow.pop %v826
  %v828 = vadd.f32 %v827, 1.0
  %v829 = vrcp.pop %v828
  %v830 = vmul.f32 1.0, %v829
  %v831 = vtanh.pop %v824
  %v832 = vmul.f32 %v830, %v569
  %834 = vrot.lane.b32.xlu0 %v831, 64
  %v835 = vpop.permute.xlu0 %834
  %v837 = vmul.f32 %v830, %v835
  %839 = vrot.lane.b32.xlu0 %v837, 32
  %v840 = vpop.permute.xlu0 %839
  %v842 = vadd.f32 %v832, %v840
  %v843 = vtanh.pop %v842
  %845 = vrot.lane.b32.xlu0 %v843, 64
  %v846 = vpop.permute.xlu0 %845
  %v848 = vmul.f32 %v830, %v846
  %v849 = vsub.f32 %v848, %v567
  %v850 = vadd.f32 %v567, %v849
  %v851 = vsub.f32 %v842, %v569
  %v852 = vadd.f32 %v569, %v851
  %v853 = vsel %vm84, %v743, 0
  %855 = vmatprep.subr.mxu0 0.0
  %856 = vmatpush1.msra.mxu0 0.0
  %857 = vmatprep.subr.mxu0 0.0
  %858 = vmatpush1.msra.mxu0 0.0
  %859 = vmatprep.subr.mxu0 0.0
  %860 = vmatpush1.msra.mxu0 0.0
  %861 = vmatprep.subr.mxu0 0.0
  %862 = vmatpush1.msra.mxu0 0.0
  %863 = vmatprep.subr.mxu0 0.0
  %864 = vmatpush1.msra.mxu0 0.0
  %865 = vmatprep.subr.mxu0 0.0
  %866 = vmatpush1.msra.mxu0 0.0
  %867 = vmatprep.subr.mxu0 0.0
  %868 = vmatpush1.msra.mxu0 0.0
  %869 = vmatprep.subr.mxu0 0.0
  %870 = vmatpush1.msra.mxu0 0.0
  %871 = vmatprep.subr.mxu0 0.0
  %872 = vmatpush1.msra.mxu0 0.0
  %873 = vmatprep.subr.mxu0 0.0
  %874 = vmatpush1.msra.mxu0 0.0
  %875 = vmatprep.subr.mxu0 0.0
  %876 = vmatpush1.msra.mxu0 0.0
  %877 = vmatprep.subr.mxu0 0.0
  %878 = vmatpush1.msra.mxu0 0.0
  %879 = vmatprep.subr.mxu0 0.0
  %880 = vmatpush1.msra.mxu0 %v177
  %881 = vmatprep.subr.mxu0 0.0
  %882 = vmatpush1.msra.mxu0 %v176
  %883 = vmatprep.subr.mxu0 0.0
  %884 = vmatpush1.msra.mxu0 %v175
  %885 = vmatprep.subr.mxu0 0.0
  %886 = vmatpush1.msra.mxu0 %v174
  %887 = vmatprep.subr.mxu0 0.0
  %888 = vmatpush2.msra.mxu0 0.0
  %889 = vmatprep.subr.mxu0 0.0
  %890 = vmatpush2.msra.mxu0 0.0
  %891 = vmatprep.subr.mxu0 0.0
  %892 = vmatpush2.msra.mxu0 0.0
  %893 = vmatprep.subr.mxu0 0.0
  %894 = vmatpush2.msra.mxu0 0.0
  %895 = vmatprep.subr.mxu0 0.0
  %896 = vmatpush2.msra.mxu0 0.0
  %897 = vmatprep.subr.mxu0 0.0
  %898 = vmatpush2.msra.mxu0 0.0
  %899 = vmatprep.subr.mxu0 0.0
  %900 = vmatpush2.msra.mxu0 0.0
  %901 = vmatprep.subr.mxu0 0.0
  %902 = vmatpush2.msra.mxu0 0.0
  %903 = vmatprep.subr.mxu0 0.0
  %904 = vmatpush2.msra.mxu0 0.0
  %905 = vmatprep.subr.mxu0 0.0
  %906 = vmatpush2.msra.mxu0 0.0
  %907 = vmatprep.subr.mxu0 0.0
  %908 = vmatpush2.msra.mxu0 0.0
  %909 = vmatprep.subr.mxu0 0.0
  %910 = vmatpush2.msra.mxu0 0.0
  %911 = vmatprep.subr.mxu0 0.0
  %912 = vmatpush2.msra.mxu0 0.0
  %913 = vmatprep.subr.mxu0 0.0
  %914 = vmatpush2.msra.mxu0 0.0
  %915 = vmatprep.subr.mxu0 0.0
  %916 = vmatpush2.msra.mxu0 0.0
  %917 = vmatprep.subr.mxu0 0.0
  %918 = vmatpush2.msra.mxu0 0.0
  %919 = vmatprep.mubr.f32.mxu0 0.0
  %920 = vmatmul.mubr.f32.gmra.mxu0 %v853
  %v921 = vpop.f32.mrf.mxu0
  %v922 = vadd.f32 0.0, %v921
  %v923 = vpop.f32.mrf.mxu0
  %924 = vdwg.mxu0
  %925 = vmatprep.subr.mxu0 0.0
  %926 = vmatpush1.msra.mxu0 0.0
  %927 = vmatprep.subr.mxu0 0.0
  %928 = vmatpush1.msra.mxu0 0.0
  %929 = vmatprep.subr.mxu0 0.0
  %930 = vmatpush1.msra.mxu0 0.0
  %931 = vmatprep.subr.mxu0 0.0
  %932 = vmatpush1.msra.mxu0 0.0
  %933 = vmatprep.subr.mxu0 0.0
  %934 = vmatpush1.msra.mxu0 0.0
  %935 = vmatprep.subr.mxu0 0.0
  %936 = vmatpush1.msra.mxu0 0.0
  %937 = vmatprep.subr.mxu0 0.0
  %938 = vmatpush1.msra.mxu0 0.0
  %939 = vmatprep.subr.mxu0 0.0
  %940 = vmatpush1.msra.mxu0 0.0
  %941 = vmatprep.subr.mxu0 0.0
  %942 = vmatpush1.msra.mxu0 0.0
  %943 = vmatprep.subr.mxu0 0.0
  %944 = vmatpush1.msra.mxu0 0.0
  %945 = vmatprep.subr.mxu0 0.0
  %946 = vmatpush1.msra.mxu0 0.0
  %947 = vmatprep.subr.mxu0 0.0
  %948 = vmatpush1.msra.mxu0 0.0
  %949 = vmatprep.subr.mxu0 0.0
  %950 = vmatpush1.msra.mxu0 %v181
  %951 = vmatprep.subr.mxu0 0.0
  %952 = vmatpush1.msra.mxu0 %v180
  %953 = vmatprep.subr.mxu0 0.0
  %954 = vmatpush1.msra.mxu0 %v179
  %955 = vmatprep.subr.mxu0 0.0
  %956 = vmatpush1.msra.mxu0 %v178
  %957 = vmatprep.subr.mxu0 0.0
  %958 = vmatpush2.msra.mxu0 0.0
  %959 = vmatprep.subr.mxu0 0.0
  %960 = vmatpush2.msra.mxu0 0.0
  %961 = vmatprep.subr.mxu0 0.0
  %962 = vmatpush2.msra.mxu0 0.0
  %963 = vmatprep.subr.mxu0 0.0
  %964 = vmatpush2.msra.mxu0 0.0
  %965 = vmatprep.subr.mxu0 0.0
  %966 = vmatpush2.msra.mxu0 0.0
  %967 = vmatprep.subr.mxu0 0.0
  %968 = vmatpush2.msra.mxu0 0.0
  %969 = vmatprep.subr.mxu0 0.0
  %970 = vmatpush2.msra.mxu0 0.0
  %971 = vmatprep.subr.mxu0 0.0
  %972 = vmatpush2.msra.mxu0 0.0
  %973 = vmatprep.subr.mxu0 0.0
  %974 = vmatpush2.msra.mxu0 0.0
  %975 = vmatprep.subr.mxu0 0.0
  %976 = vmatpush2.msra.mxu0 0.0
  %977 = vmatprep.subr.mxu0 0.0
  %978 = vmatpush2.msra.mxu0 0.0
  %979 = vmatprep.subr.mxu0 0.0
  %980 = vmatpush2.msra.mxu0 0.0
  %981 = vmatprep.subr.mxu0 0.0
  %982 = vmatpush2.msra.mxu0 0.0
  %983 = vmatprep.subr.mxu0 0.0
  %984 = vmatpush2.msra.mxu0 0.0
  %985 = vmatprep.subr.mxu0 0.0
  %986 = vmatpush2.msra.mxu0 0.0
  %987 = vmatprep.subr.mxu0 0.0
  %988 = vmatpush2.msra.mxu0 0.0
  %989 = vmatprep.mubr.f32.mxu0 0.0
  %990 = vmatmul.mubr.f32.gmra.mxu0 %v752
  %v991 = vpop.f32.mrf.mxu0
  %v992 = vadd.f32 %v922, %v991
  %v993 = vpop.f32.mrf.mxu0
  %994 = vdwg.mxu0
  %v995 = vadd.f32 %v992, %v187
  %v996 = vxor.u32 %v995, 2147483648
  %v997 = vmul.f32 %v996, 1.442695
  %v998 = vpow.pop %v997
  %v999 = vadd.f32 %v998, 1.0
  %v1000 = vrcp.pop %v999
  %v1001 = vmul.f32 1.0, %v1000
  %v1002 = vtanh.pop %v995
  %v1003 = vmul.f32 %v1001, %v740
  %1005 = vrot.lane.b32.xlu0 %v1002, 64
  %v1006 = vpop.permute.xlu0 %1005
  %v1008 = vmul.f32 %v1001, %v1006
  %1010 = vrot.lane.b32.xlu0 %v1008, 32
  %v1011 = vpop.permute.xlu0 %1010
  %v1013 = vadd.f32 %v1003, %v1011
  %v1014 = vtanh.pop %v1013
  %1016 = vrot.lane.b32.xlu0 %v1014, 64
  %v1017 = vpop.permute.xlu0 %1016
  %v1019 = vmul.f32 %v1001, %v1017
  %v1020 = vsub.f32 %v1019, %v738
  %v1021 = vadd.f32 %v738, %v1020
  %v1022 = vsub.f32 %v1013, %v740
  %v1023 = vadd.f32 %v740, %v1022
  %1025 = vrot.lane.b32.xlu0 %v1021, 32
  %v1026 = vpop.permute.xlu0 %1025
  %s1028 = scalar_lea.vmem [#allocation3], 16
  %1029 = vst.msk [vmem:[%s1028] sm:$0xff] %vm84, %v1026
  %s1030 = scalar_lea.vmem [#allocation2], 24
  %v1031 = vld [vmem:[%s1030] sm:$0xff]
  %1033 = vrot.lane.b32.xlu0 %v850, 32
  %v1034 = vpop.permute.xlu0 %1033
  %v1035 = vsel %vm84, %v1034, 0
  %1037 = vmatprep.subr.mxu0 0.0
  %1038 = vmatpush1.msra.mxu0 0.0
  %1039 = vmatprep.subr.mxu0 0.0
  %1040 = vmatpush1.msra.mxu0 0.0
  %1041 = vmatprep.subr.mxu0 0.0
  %1042 = vmatpush1.msra.mxu0 0.0
  %1043 = vmatprep.subr.mxu0 0.0
  %1044 = vmatpush1.msra.mxu0 0.0
  %1045 = vmatprep.subr.mxu0 0.0
  %1046 = vmatpush1.msra.mxu0 0.0
  %1047 = vmatprep.subr.mxu0 0.0
  %1048 = vmatpush1.msra.mxu0 0.0
  %1049 = vmatprep.subr.mxu0 0.0
  %1050 = vmatpush1.msra.mxu0 0.0
  %1051 = vmatprep.subr.mxu0 0.0
  %1052 = vmatpush1.msra.mxu0 0.0
  %1053 = vmatprep.subr.mxu0 0.0
  %1054 = vmatpush1.msra.mxu0 0.0
  %1055 = vmatprep.subr.mxu0 0.0
  %1056 = vmatpush1.msra.mxu0 0.0
  %1057 = vmatprep.subr.mxu0 0.0
  %1058 = vmatpush1.msra.mxu0 0.0
  %1059 = vmatprep.subr.mxu0 0.0
  %1060 = vmatpush1.msra.mxu0 0.0
  %1061 = vmatprep.subr.mxu0 0.0
  %1062 = vmatpush1.msra.mxu0 %v173
  %1063 = vmatprep.subr.mxu0 0.0
  %1064 = vmatpush1.msra.mxu0 %v172
  %1065 = vmatprep.subr.mxu0 0.0
  %1066 = vmatpush1.msra.mxu0 %v171
  %1067 = vmatprep.subr.mxu0 0.0
  %1068 = vmatpush1.msra.mxu0 %v170
  %1069 = vmatprep.subr.mxu0 0.0
  %1070 = vmatpush2.msra.mxu0 0.0
  %1071 = vmatprep.subr.mxu0 0.0
  %1072 = vmatpush2.msra.mxu0 0.0
  %1073 = vmatprep.subr.mxu0 0.0
  %1074 = vmatpush2.msra.mxu0 0.0
  %1075 = vmatprep.subr.mxu0 0.0
  %1076 = vmatpush2.msra.mxu0 0.0
  %1077 = vmatprep.subr.mxu0 0.0
  %1078 = vmatpush2.msra.mxu0 0.0
  %1079 = vmatprep.subr.mxu0 0.0
  %1080 = vmatpush2.msra.mxu0 0.0
  %1081 = vmatprep.subr.mxu0 0.0
  %1082 = vmatpush2.msra.mxu0 0.0
  %1083 = vmatprep.subr.mxu0 0.0
  %1084 = vmatpush2.msra.mxu0 0.0
  %1085 = vmatprep.subr.mxu0 0.0
  %1086 = vmatpush2.msra.mxu0 0.0
  %1087 = vmatprep.subr.mxu0 0.0
  %1088 = vmatpush2.msra.mxu0 0.0
  %1089 = vmatprep.subr.mxu0 0.0
  %1090 = vmatpush2.msra.mxu0 0.0
  %1091 = vmatprep.subr.mxu0 0.0
  %1092 = vmatpush2.msra.mxu0 0.0
  %1093 = vmatprep.subr.mxu0 0.0
  %1094 = vmatpush2.msra.mxu0 0.0
  %1095 = vmatprep.subr.mxu0 0.0
  %1096 = vmatpush2.msra.mxu0 0.0
  %1097 = vmatprep.subr.mxu0 0.0
  %1098 = vmatpush2.msra.mxu0 0.0
  %1099 = vmatprep.subr.mxu0 0.0
  %1100 = vmatpush2.msra.mxu0 0.0
  %1101 = vmatprep.mubr.f32.mxu0 0.0
  %1102 = vmatmul.mubr.f32.gmra.mxu0 %v1035
  %v1103 = vpop.f32.mrf.mxu0
  %v1104 = vadd.f32 0.0, %v1103
  %v1105 = vpop.f32.mrf.mxu0
  %1106 = vdwg.mxu0
  %v1107 = vadd.f32 %v1031, %v1104
  %v1108 = vxor.u32 %v1107, 2147483648
  %v1109 = vmul.f32 %v1108, 1.442695
  %v1110 = vpow.pop %v1109
  %v1111 = vadd.f32 %v1110, 1.0
  %v1112 = vrcp.pop %v1111
  %v1113 = vmul.f32 1.0, %v1112
  %v1114 = vtanh.pop %v1107
  %v1115 = vmul.f32 %v1113, %v852
  %1117 = vrot.lane.b32.xlu0 %v1114, 64
  %v1118 = vpop.permute.xlu0 %1117
  %v1120 = vmul.f32 %v1113, %v1118
  %1122 = vrot.lane.b32.xlu0 %v1120, 32
  %v1123 = vpop.permute.xlu0 %1122
  %v1125 = vadd.f32 %v1115, %v1123
  %v1126 = vtanh.pop %v1125
  %1128 = vrot.lane.b32.xlu0 %v1126, 64
  %v1129 = vpop.permute.xlu0 %1128
  %v1131 = vmul.f32 %v1113, %v1129
  %v1132 = vsub.f32 %v1131, %v850
  %v1133 = vadd.f32 %v850, %v1132
  %v1134 = vsub.f32 %v1125, %v852
  %v1135 = vadd.f32 %v852, %v1134
  %v1136 = vsel %vm84, %v1026, 0
  %1138 = vmatprep.subr.mxu0 0.0
  %1139 = vmatpush1.msra.mxu0 0.0
  %1140 = vmatprep.subr.mxu0 0.0
  %1141 = vmatpush1.msra.mxu0 0.0
  %1142 = vmatprep.subr.mxu0 0.0
  %1143 = vmatpush1.msra.mxu0 0.0
  %1144 = vmatprep.subr.mxu0 0.0
  %1145 = vmatpush1.msra.mxu0 0.0
  %1146 = vmatprep.subr.mxu0 0.0
  %1147 = vmatpush1.msra.mxu0 0.0
  %1148 = vmatprep.subr.mxu0 0.0
  %1149 = vmatpush1.msra.mxu0 0.0
  %1150 = vmatprep.subr.mxu0 0.0
  %1151 = vmatpush1.msra.mxu0 0.0
  %1152 = vmatprep.subr.mxu0 0.0
  %1153 = vmatpush1.msra.mxu0 0.0
  %1154 = vmatprep.subr.mxu0 0.0
  %1155 = vmatpush1.msra.mxu0 0.0
  %1156 = vmatprep.subr.mxu0 0.0
  %1157 = vmatpush1.msra.mxu0 0.0
  %1158 = vmatprep.subr.mxu0 0.0
  %1159 = vmatpush1.msra.mxu0 0.0
  %1160 = vmatprep.subr.mxu0 0.0
  %1161 = vmatpush1.msra.mxu0 0.0
  %1162 = vmatprep.subr.mxu0 0.0
  %1163 = vmatpush1.msra.mxu0 %v177
  %1164 = vmatprep.subr.mxu0 0.0
  %1165 = vmatpush1.msra.mxu0 %v176
  %1166 = vmatprep.subr.mxu0 0.0
  %1167 = vmatpush1.msra.mxu0 %v175
  %1168 = vmatprep.subr.mxu0 0.0
  %1169 = vmatpush1.msra.mxu0 %v174
  %1170 = vmatprep.subr.mxu0 0.0
  %1171 = vmatpush2.msra.mxu0 0.0
  %1172 = vmatprep.subr.mxu0 0.0
  %1173 = vmatpush2.msra.mxu0 0.0
  %1174 = vmatprep.subr.mxu0 0.0
  %1175 = vmatpush2.msra.mxu0 0.0
  %1176 = vmatprep.subr.mxu0 0.0
  %1177 = vmatpush2.msra.mxu0 0.0
  %1178 = vmatprep.subr.mxu0 0.0
  %1179 = vmatpush2.msra.mxu0 0.0
  %1180 = vmatprep.subr.mxu0 0.0
  %1181 = vmatpush2.msra.mxu0 0.0
  %1182 = vmatprep.subr.mxu0 0.0
  %1183 = vmatpush2.msra.mxu0 0.0
  %1184 = vmatprep.subr.mxu0 0.0
  %1185 = vmatpush2.msra.mxu0 0.0
  %1186 = vmatprep.subr.mxu0 0.0
  %1187 = vmatpush2.msra.mxu0 0.0
  %1188 = vmatprep.subr.mxu0 0.0
  %1189 = vmatpush2.msra.mxu0 0.0
  %1190 = vmatprep.subr.mxu0 0.0
  %1191 = vmatpush2.msra.mxu0 0.0
  %1192 = vmatprep.subr.mxu0 0.0
  %1193 = vmatpush2.msra.mxu0 0.0
  %1194 = vmatprep.subr.mxu0 0.0
  %1195 = vmatpush2.msra.mxu0 0.0
  %1196 = vmatprep.subr.mxu0 0.0
  %1197 = vmatpush2.msra.mxu0 0.0
  %1198 = vmatprep.subr.mxu0 0.0
  %1199 = vmatpush2.msra.mxu0 0.0
  %1200 = vmatprep.subr.mxu0 0.0
  %1201 = vmatpush2.msra.mxu0 0.0
  %1202 = vmatprep.mubr.f32.mxu0 0.0
  %1203 = vmatmul.mubr.f32.gmra.mxu0 %v1136
  %v1204 = vpop.f32.mrf.mxu0
  %v1205 = vadd.f32 0.0, %v1204
  %v1206 = vpop.f32.mrf.mxu0
  %1207 = vdwg.mxu0
  %1208 = vmatprep.subr.mxu0 0.0
  %1209 = vmatpush1.msra.mxu0 0.0
  %1210 = vmatprep.subr.mxu0 0.0
  %1211 = vmatpush1.msra.mxu0 0.0
  %1212 = vmatprep.subr.mxu0 0.0
  %1213 = vmatpush1.msra.mxu0 0.0
  %1214 = vmatprep.subr.mxu0 0.0
  %1215 = vmatpush1.msra.mxu0 0.0
  %1216 = vmatprep.subr.mxu0 0.0
  %1217 = vmatpush1.msra.mxu0 0.0
  %1218 = vmatprep.subr.mxu0 0.0
  %1219 = vmatpush1.msra.mxu0 0.0
  %1220 = vmatprep.subr.mxu0 0.0
  %1221 = vmatpush1.msra.mxu0 0.0
  %1222 = vmatprep.subr.mxu0 0.0
  %1223 = vmatpush1.msra.mxu0 0.0
  %1224 = vmatprep.subr.mxu0 0.0
  %1225 = vmatpush1.msra.mxu0 0.0
  %1226 = vmatprep.subr.mxu0 0.0
  %1227 = vmatpush1.msra.mxu0 0.0
  %1228 = vmatprep.subr.mxu0 0.0
  %1229 = vmatpush1.msra.mxu0 0.0
  %1230 = vmatprep.subr.mxu0 0.0
  %1231 = vmatpush1.msra.mxu0 0.0
  %1232 = vmatprep.subr.mxu0 0.0
  %1233 = vmatpush1.msra.mxu0 %v181
  %1234 = vmatprep.subr.mxu0 0.0
  %1235 = vmatpush1.msra.mxu0 %v180
  %1236 = vmatprep.subr.mxu0 0.0
  %1237 = vmatpush1.msra.mxu0 %v179
  %1238 = vmatprep.subr.mxu0 0.0
  %1239 = vmatpush1.msra.mxu0 %v178
  %1240 = vmatprep.subr.mxu0 0.0
  %1241 = vmatpush2.msra.mxu0 0.0
  %1242 = vmatprep.subr.mxu0 0.0
  %1243 = vmatpush2.msra.mxu0 0.0
  %1244 = vmatprep.subr.mxu0 0.0
  %1245 = vmatpush2.msra.mxu0 0.0
  %1246 = vmatprep.subr.mxu0 0.0
  %1247 = vmatpush2.msra.mxu0 0.0
  %1248 = vmatprep.subr.mxu0 0.0
  %1249 = vmatpush2.msra.mxu0 0.0
  %1250 = vmatprep.subr.mxu0 0.0
  %1251 = vmatpush2.msra.mxu0 0.0
  %1252 = vmatprep.subr.mxu0 0.0
  %1253 = vmatpush2.msra.mxu0 0.0
  %1254 = vmatprep.subr.mxu0 0.0
  %1255 = vmatpush2.msra.mxu0 0.0
  %1256 = vmatprep.subr.mxu0 0.0
  %1257 = vmatpush2.msra.mxu0 0.0
  %1258 = vmatprep.subr.mxu0 0.0
  %1259 = vmatpush2.msra.mxu0 0.0
  %1260 = vmatprep.subr.mxu0 0.0
  %1261 = vmatpush2.msra.mxu0 0.0
  %1262 = vmatprep.subr.mxu0 0.0
  %1263 = vmatpush2.msra.mxu0 0.0
  %1264 = vmatprep.subr.mxu0 0.0
  %1265 = vmatpush2.msra.mxu0 0.0
  %1266 = vmatprep.subr.mxu0 0.0
  %1267 = vmatpush2.msra.mxu0 0.0
  %1268 = vmatprep.subr.mxu0 0.0
  %1269 = vmatpush2.msra.mxu0 0.0
  %1270 = vmatprep.subr.mxu0 0.0
  %1271 = vmatpush2.msra.mxu0 0.0
  %1272 = vmatprep.mubr.f32.mxu0 0.0
  %1273 = vmatmul.mubr.f32.gmra.mxu0 %v1035
  %v1274 = vpop.f32.mrf.mxu0
  %v1275 = vadd.f32 %v1205, %v1274
  %v1276 = vpop.f32.mrf.mxu0
  %1277 = vdwg.mxu0
  %v1278 = vadd.f32 %v1275, %v187
  %v1279 = vxor.u32 %v1278, 2147483648
  %v1280 = vmul.f32 %v1279, 1.442695
  %v1281 = vpow.pop %v1280
  %v1282 = vadd.f32 %v1281, 1.0
  %v1283 = vrcp.pop %v1282
  %v1284 = vmul.f32 1.0, %v1283
  %v1285 = vtanh.pop %v1278
  %v1286 = vmul.f32 %v1284, %v1023
  %1288 = vrot.lane.b32.xlu0 %v1285, 64
  %v1289 = vpop.permute.xlu0 %1288
  %v1291 = vmul.f32 %v1284, %v1289
  %1293 = vrot.lane.b32.xlu0 %v1291, 32
  %v1294 = vpop.permute.xlu0 %1293
  %v1296 = vadd.f32 %v1286, %v1294
  %v1297 = vtanh.pop %v1296
  %1299 = vrot.lane.b32.xlu0 %v1297, 64
  %v1300 = vpop.permute.xlu0 %1299
  %v1302 = vmul.f32 %v1284, %v1300
  %v1303 = vsub.f32 %v1302, %v1021
  %v1304 = vadd.f32 %v1021, %v1303
  %v1305 = vsub.f32 %v1296, %v1023
  %v1306 = vadd.f32 %v1023, %v1305
  %1308 = vrot.lane.b32.xlu0 %v1304, 32
  %v1309 = vpop.permute.xlu0 %1308
  %s1311 = scalar_lea.vmem [#allocation3], 24
  %1312 = vst.msk [vmem:[%s1311] sm:$0xff] %vm84, %v1309
  %s1313 = scalar_lea.vmem [#allocation2], 32
  %v1314 = vld [vmem:[%s1313] sm:$0xff]
  %1316 = vrot.lane.b32.xlu0 %v1133, 32
  %v1317 = vpop.permute.xlu0 %1316
  %v1318 = vsel %vm84, %v1317, 0
  %1320 = vmatprep.subr.mxu0 0.0
  %1321 = vmatpush1.msra.mxu0 0.0
  %1322 = vmatprep.subr.mxu0 0.0
  %1323 = vmatpush1.msra.mxu0 0.0
  %1324 = vmatprep.subr.mxu0 0.0
  %1325 = vmatpush1.msra.mxu0 0.0
  %1326 = vmatprep.subr.mxu0 0.0
  %1327 = vmatpush1.msra.mxu0 0.0
  %1328 = vmatprep.subr.mxu0 0.0
  %1329 = vmatpush1.msra.mxu0 0.0
  %1330 = vmatprep.subr.mxu0 0.0
  %1331 = vmatpush1.msra.mxu0 0.0
  %1332 = vmatprep.subr.mxu0 0.0
  %1333 = vmatpush1.msra.mxu0 0.0
  %1334 = vmatprep.subr.mxu0 0.0
  %1335 = vmatpush1.msra.mxu0 0.0
  %1336 = vmatprep.subr.mxu0 0.0
  %1337 = vmatpush1.msra.mxu0 0.0
  %1338 = vmatprep.subr.mxu0 0.0
  %1339 = vmatpush1.msra.mxu0 0.0
  %1340 = vmatprep.subr.mxu0 0.0
  %1341 = vmatpush1.msra.mxu0 0.0
  %1342 = vmatprep.subr.mxu0 0.0
  %1343 = vmatpush1.msra.mxu0 0.0
  %1344 = vmatprep.subr.mxu0 0.0
  %1345 = vmatpush1.msra.mxu0 %v173
  %1346 = vmatprep.subr.mxu0 0.0
  %1347 = vmatpush1.msra.mxu0 %v172
  %1348 = vmatprep.subr.mxu0 0.0
  %1349 = vmatpush1.msra.mxu0 %v171
  %1350 = vmatprep.subr.mxu0 0.0
  %1351 = vmatpush1.msra.mxu0 %v170
  %1352 = vmatprep.subr.mxu0 0.0
  %1353 = vmatpush2.msra.mxu0 0.0
  %1354 = vmatprep.subr.mxu0 0.0
  %1355 = vmatpush2.msra.mxu0 0.0
  %1356 = vmatprep.subr.mxu0 0.0
  %1357 = vmatpush2.msra.mxu0 0.0
  %1358 = vmatprep.subr.mxu0 0.0
  %1359 = vmatpush2.msra.mxu0 0.0
  %1360 = vmatprep.subr.mxu0 0.0
  %1361 = vmatpush2.msra.mxu0 0.0
  %1362 = vmatprep.subr.mxu0 0.0
  %1363 = vmatpush2.msra.mxu0 0.0
  %1364 = vmatprep.subr.mxu0 0.0
  %1365 = vmatpush2.msra.mxu0 0.0
  %1366 = vmatprep.subr.mxu0 0.0
  %1367 = vmatpush2.msra.mxu0 0.0
  %1368 = vmatprep.subr.mxu0 0.0
  %1369 = vmatpush2.msra.mxu0 0.0
  %1370 = vmatprep.subr.mxu0 0.0
  %1371 = vmatpush2.msra.mxu0 0.0
  %1372 = vmatprep.subr.mxu0 0.0
  %1373 = vmatpush2.msra.mxu0 0.0
  %1374 = vmatprep.subr.mxu0 0.0
  %1375 = vmatpush2.msra.mxu0 0.0
  %1376 = vmatprep.subr.mxu0 0.0
  %1377 = vmatpush2.msra.mxu0 0.0
  %1378 = vmatprep.subr.mxu0 0.0
  %1379 = vmatpush2.msra.mxu0 0.0
  %1380 = vmatprep.subr.mxu0 0.0
  %1381 = vmatpush2.msra.mxu0 0.0
  %1382 = vmatprep.subr.mxu0 0.0
  %1383 = vmatpush2.msra.mxu0 0.0
  %1384 = vmatprep.mubr.f32.mxu0 0.0
  %1385 = vmatmul.mubr.f32.gmra.mxu0 %v1318
  %v1386 = vpop.f32.mrf.mxu0
  %v1387 = vadd.f32 0.0, %v1386
  %v1388 = vpop.f32.mrf.mxu0
  %1389 = vdwg.mxu0
  %v1390 = vadd.f32 %v1314, %v1387
  %v1391 = vxor.u32 %v1390, 2147483648
  %v1392 = vmul.f32 %v1391, 1.442695
  %v1393 = vpow.pop %v1392
  %v1394 = vadd.f32 %v1393, 1.0
  %v1395 = vrcp.pop %v1394
  %v1396 = vmul.f32 1.0, %v1395
  %v1397 = vtanh.pop %v1390
  %v1398 = vmul.f32 %v1396, %v1135
  %1400 = vrot.lane.b32.xlu0 %v1397, 64
  %v1401 = vpop.permute.xlu0 %1400
  %v1403 = vmul.f32 %v1396, %v1401
  %1405 = vrot.lane.b32.xlu0 %v1403, 32
  %v1406 = vpop.permute.xlu0 %1405
  %v1408 = vadd.f32 %v1398, %v1406
  %v1409 = vtanh.pop %v1408
  %1411 = vrot.lane.b32.xlu0 %v1409, 64
  %v1412 = vpop.permute.xlu0 %1411
  %v1414 = vmul.f32 %v1396, %v1412
  %v1415 = vsub.f32 %v1414, %v1133
  %v1416 = vadd.f32 %v1133, %v1415
  %v1417 = vsub.f32 %v1408, %v1135
  %v1418 = vadd.f32 %v1135, %v1417
  %v1419 = vsel %vm84, %v1309, 0
  %1421 = vmatprep.subr.mxu0 0.0
  %1422 = vmatpush1.msra.mxu0 0.0
  %1423 = vmatprep.subr.mxu0 0.0
  %1424 = vmatpush1.msra.mxu0 0.0
  %1425 = vmatprep.subr.mxu0 0.0
  %1426 = vmatpush1.msra.mxu0 0.0
  %1427 = vmatprep.subr.mxu0 0.0
  %1428 = vmatpush1.msra.mxu0 0.0
  %1429 = vmatprep.subr.mxu0 0.0
  %1430 = vmatpush1.msra.mxu0 0.0
  %1431 = vmatprep.subr.mxu0 0.0
  %1432 = vmatpush1.msra.mxu0 0.0
  %1433 = vmatprep.subr.mxu0 0.0
  %1434 = vmatpush1.msra.mxu0 0.0
  %1435 = vmatprep.subr.mxu0 0.0
  %1436 = vmatpush1.msra.mxu0 0.0
  %1437 = vmatprep.subr.mxu0 0.0
  %1438 = vmatpush1.msra.mxu0 0.0
  %1439 = vmatprep.subr.mxu0 0.0
  %1440 = vmatpush1.msra.mxu0 0.0
  %1441 = vmatprep.subr.mxu0 0.0
  %1442 = vmatpush1.msra.mxu0 0.0
  %1443 = vmatprep.subr.mxu0 0.0
  %1444 = vmatpush1.msra.mxu0 0.0
  %1445 = vmatprep.subr.mxu0 0.0
  %1446 = vmatpush1.msra.mxu0 %v177
  %1447 = vmatprep.subr.mxu0 0.0
  %1448 = vmatpush1.msra.mxu0 %v176
  %1449 = vmatprep.subr.mxu0 0.0
  %1450 = vmatpush1.msra.mxu0 %v175
  %1451 = vmatprep.subr.mxu0 0.0
  %1452 = vmatpush1.msra.mxu0 %v174
  %1453 = vmatprep.subr.mxu0 0.0
  %1454 = vmatpush2.msra.mxu0 0.0
  %1455 = vmatprep.subr.mxu0 0.0
  %1456 = vmatpush2.msra.mxu0 0.0
  %1457 = vmatprep.subr.mxu0 0.0
  %1458 = vmatpush2.msra.mxu0 0.0
  %1459 = vmatprep.subr.mxu0 0.0
  %1460 = vmatpush2.msra.mxu0 0.0
  %1461 = vmatprep.subr.mxu0 0.0
  %1462 = vmatpush2.msra.mxu0 0.0
  %1463 = vmatprep.subr.mxu0 0.0
  %1464 = vmatpush2.msra.mxu0 0.0
  %1465 = vmatprep.subr.mxu0 0.0
  %1466 = vmatpush2.msra.mxu0 0.0
  %1467 = vmatprep.subr.mxu0 0.0
  %1468 = vmatpush2.msra.mxu0 0.0
  %1469 = vmatprep.subr.mxu0 0.0
  %1470 = vmatpush2.msra.mxu0 0.0
  %1471 = vmatprep.subr.mxu0 0.0
  %1472 = vmatpush2.msra.mxu0 0.0
  %1473 = vmatprep.subr.mxu0 0.0
  %1474 = vmatpush2.msra.mxu0 0.0
  %1475 = vmatprep.subr.mxu0 0.0
  %1476 = vmatpush2.msra.mxu0 0.0
  %1477 = vmatprep.subr.mxu0 0.0
  %1478 = vmatpush2.msra.mxu0 0.0
  %1479 = vmatprep.subr.mxu0 0.0
  %1480 = vmatpush2.msra.mxu0 0.0
  %1481 = vmatprep.subr.mxu0 0.0
  %1482 = vmatpush2.msra.mxu0 0.0
  %1483 = vmatprep.subr.mxu0 0.0
  %1484 = vmatpush2.msra.mxu0 0.0
  %1485 = vmatprep.mubr.f32.mxu0 0.0
  %1486 = vmatmul.mubr.f32.gmra.mxu0 %v1419
  %v1487 = vpop.f32.mrf.mxu0
  %v1488 = vadd.f32 0.0, %v1487
  %v1489 = vpop.f32.mrf.mxu0
  %1490 = vdwg.mxu0
  %1491 = vmatprep.subr.mxu0 0.0
  %1492 = vmatpush1.msra.mxu0 0.0
  %1493 = vmatprep.subr.mxu0 0.0
  %1494 = vmatpush1.msra.mxu0 0.0
  %1495 = vmatprep.subr.mxu0 0.0
  %1496 = vmatpush1.msra.mxu0 0.0
  %1497 = vmatprep.subr.mxu0 0.0
  %1498 = vmatpush1.msra.mxu0 0.0
  %1499 = vmatprep.subr.mxu0 0.0
  %1500 = vmatpush1.msra.mxu0 0.0
  %1501 = vmatprep.subr.mxu0 0.0
  %1502 = vmatpush1.msra.mxu0 0.0
  %1503 = vmatprep.subr.mxu0 0.0
  %1504 = vmatpush1.msra.mxu0 0.0
  %1505 = vmatprep.subr.mxu0 0.0
  %1506 = vmatpush1.msra.mxu0 0.0
  %1507 = vmatprep.subr.mxu0 0.0
  %1508 = vmatpush1.msra.mxu0 0.0
  %1509 = vmatprep.subr.mxu0 0.0
  %1510 = vmatpush1.msra.mxu0 0.0
  %1511 = vmatprep.subr.mxu0 0.0
  %1512 = vmatpush1.msra.mxu0 0.0
  %1513 = vmatprep.subr.mxu0 0.0
  %1514 = vmatpush1.msra.mxu0 0.0
  %1515 = vmatprep.subr.mxu0 0.0
  %1516 = vmatpush1.msra.mxu0 %v181
  %1517 = vmatprep.subr.mxu0 0.0
  %1518 = vmatpush1.msra.mxu0 %v180
  %1519 = vmatprep.subr.mxu0 0.0
  %1520 = vmatpush1.msra.mxu0 %v179
  %1521 = vmatprep.subr.mxu0 0.0
  %1522 = vmatpush1.msra.mxu0 %v178
  %1523 = vmatprep.subr.mxu0 0.0
  %1524 = vmatpush2.msra.mxu0 0.0
  %1525 = vmatprep.subr.mxu0 0.0
  %1526 = vmatpush2.msra.mxu0 0.0
  %1527 = vmatprep.subr.mxu0 0.0
  %1528 = vmatpush2.msra.mxu0 0.0
  %1529 = vmatprep.subr.mxu0 0.0
  %1530 = vmatpush2.msra.mxu0 0.0
  %1531 = vmatprep.subr.mxu0 0.0
  %1532 = vmatpush2.msra.mxu0 0.0
  %1533 = vmatprep.subr.mxu0 0.0
  %1534 = vmatpush2.msra.mxu0 0.0
  %1535 = vmatprep.subr.mxu0 0.0
  %1536 = vmatpush2.msra.mxu0 0.0
  %1537 = vmatprep.subr.mxu0 0.0
  %1538 = vmatpush2.msra.mxu0 0.0
  %1539 = vmatprep.subr.mxu0 0.0
  %1540 = vmatpush2.msra.mxu0 0.0
  %1541 = vmatprep.subr.mxu0 0.0
  %1542 = vmatpush2.msra.mxu0 0.0
  %1543 = vmatprep.subr.mxu0 0.0
  %1544 = vmatpush2.msra.mxu0 0.0
  %1545 = vmatprep.subr.mxu0 0.0
  %1546 = vmatpush2.msra.mxu0 0.0
  %1547 = vmatprep.subr.mxu0 0.0
  %1548 = vmatpush2.msra.mxu0 0.0
  %1549 = vmatprep.subr.mxu0 0.0
  %1550 = vmatpush2.msra.mxu0 0.0
  %1551 = vmatprep.subr.mxu0 0.0
  %1552 = vmatpush2.msra.mxu0 0.0
  %1553 = vmatprep.subr.mxu0 0.0
  %1554 = vmatpush2.msra.mxu0 0.0
  %1555 = vmatprep.mubr.f32.mxu0 0.0
  %1556 = vmatmul.mubr.f32.gmra.mxu0 %v1318
  %v1557 = vpop.f32.mrf.mxu0
  %v1558 = vadd.f32 %v1488, %v1557
  %v1559 = vpop.f32.mrf.mxu0
  %1560 = vdwg.mxu0
  %v1561 = vadd.f32 %v1558, %v187
  %v1562 = vxor.u32 %v1561, 2147483648
  %v1563 = vmul.f32 %v1562, 1.442695
  %v1564 = vpow.pop %v1563
  %v1565 = vadd.f32 %v1564, 1.0
  %v1566 = vrcp.pop %v1565
  %v1567 = vmul.f32 1.0, %v1566
  %v1568 = vtanh.pop %v1561
  %v1569 = vmul.f32 %v1567, %v1306
  %1571 = vrot.lane.b32.xlu0 %v1568, 64
  %v1572 = vpop.permute.xlu0 %1571
  %v1574 = vmul.f32 %v1567, %v1572
  %1576 = vrot.lane.b32.xlu0 %v1574, 32
  %v1577 = vpop.permute.xlu0 %1576
  %v1579 = vadd.f32 %v1569, %v1577
  %v1580 = vtanh.pop %v1579
  %1582 = vrot.lane.b32.xlu0 %v1580, 64
  %v1583 = vpop.permute.xlu0 %1582
  %v1585 = vmul.f32 %v1567, %v1583
  %v1586 = vsub.f32 %v1585, %v1304
  %v1587 = vadd.f32 %v1304, %v1586
  %v1588 = vsub.f32 %v1579, %v1306
  %v1589 = vadd.f32 %v1306, %v1588
  %1591 = vrot.lane.b32.xlu0 %v1587, 32
  %v1592 = vpop.permute.xlu0 %1591
  %s1594 = scalar_lea.vmem [#allocation3], 32
  %1595 = vst.msk [vmem:[%s1594] sm:$0xff] %vm84, %v1592
  %s1596 = scalar_lea.vmem [#allocation2], 40
  %v1597 = vld [vmem:[%s1596] sm:$0xff]
  %1599 = vrot.lane.b32.xlu0 %v1416, 32
  %v1600 = vpop.permute.xlu0 %1599
  %v1601 = vsel %vm84, %v1600, 0
  %1603 = vmatprep.subr.mxu0 0.0
  %1604 = vmatpush1.msra.mxu0 0.0
  %1605 = vmatprep.subr.mxu0 0.0
  %1606 = vmatpush1.msra.mxu0 0.0
  %1607 = vmatprep.subr.mxu0 0.0
  %1608 = vmatpush1.msra.mxu0 0.0
  %1609 = vmatprep.subr.mxu0 0.0
  %1610 = vmatpush1.msra.mxu0 0.0
  %1611 = vmatprep.subr.mxu0 0.0
  %1612 = vmatpush1.msra.mxu0 0.0
  %1613 = vmatprep.subr.mxu0 0.0
  %1614 = vmatpush1.msra.mxu0 0.0
  %1615 = vmatprep.subr.mxu0 0.0
  %1616 = vmatpush1.msra.mxu0 0.0
  %1617 = vmatprep.subr.mxu0 0.0
  %1618 = vmatpush1.msra.mxu0 0.0
  %1619 = vmatprep.subr.mxu0 0.0
  %1620 = vmatpush1.msra.mxu0 0.0
  %1621 = vmatprep.subr.mxu0 0.0
  %1622 = vmatpush1.msra.mxu0 0.0
  %1623 = vmatprep.subr.mxu0 0.0
  %1624 = vmatpush1.msra.mxu0 0.0
  %1625 = vmatprep.subr.mxu0 0.0
  %1626 = vmatpush1.msra.mxu0 0.0
  %1627 = vmatprep.subr.mxu0 0.0
  %1628 = vmatpush1.msra.mxu0 %v173
  %1629 = vmatprep.subr.mxu0 0.0
  %1630 = vmatpush1.msra.mxu0 %v172
  %1631 = vmatprep.subr.mxu0 0.0
  %1632 = vmatpush1.msra.mxu0 %v171
  %1633 = vmatprep.subr.mxu0 0.0
  %1634 = vmatpush1.msra.mxu0 %v170
  %1635 = vmatprep.subr.mxu0 0.0
  %1636 = vmatpush2.msra.mxu0 0.0
  %1637 = vmatprep.subr.mxu0 0.0
  %1638 = vmatpush2.msra.mxu0 0.0
  %1639 = vmatprep.subr.mxu0 0.0
  %1640 = vmatpush2.msra.mxu0 0.0
  %1641 = vmatprep.subr.mxu0 0.0
  %1642 = vmatpush2.msra.mxu0 0.0
  %1643 = vmatprep.subr.mxu0 0.0
  %1644 = vmatpush2.msra.mxu0 0.0
  %1645 = vmatprep.subr.mxu0 0.0
  %1646 = vmatpush2.msra.mxu0 0.0
  %1647 = vmatprep.subr.mxu0 0.0
  %1648 = vmatpush2.msra.mxu0 0.0
  %1649 = vmatprep.subr.mxu0 0.0
  %1650 = vmatpush2.msra.mxu0 0.0
  %1651 = vmatprep.subr.mxu0 0.0
  %1652 = vmatpush2.msra.mxu0 0.0
  %1653 = vmatprep.subr.mxu0 0.0
  %1654 = vmatpush2.msra.mxu0 0.0
  %1655 = vmatprep.subr.mxu0 0.0
  %1656 = vmatpush2.msra.mxu0 0.0
  %1657 = vmatprep.subr.mxu0 0.0
  %1658 = vmatpush2.msra.mxu0 0.0
  %1659 = vmatprep.subr.mxu0 0.0
  %1660 = vmatpush2.msra.mxu0 0.0
  %1661 = vmatprep.subr.mxu0 0.0
  %1662 = vmatpush2.msra.mxu0 0.0
  %1663 = vmatprep.subr.mxu0 0.0
  %1664 = vmatpush2.msra.mxu0 0.0
  %1665 = vmatprep.subr.mxu0 0.0
  %1666 = vmatpush2.msra.mxu0 0.0
  %1667 = vmatprep.mubr.f32.mxu0 0.0
  %1668 = vmatmul.mubr.f32.gmra.mxu0 %v1601
  %v1669 = vpop.f32.mrf.mxu0
  %v1670 = vadd.f32 0.0, %v1669
  %v1671 = vpop.f32.mrf.mxu0
  %1672 = vdwg.mxu0
  %v1673 = vadd.f32 %v1597, %v1670
  %v1674 = vxor.u32 %v1673, 2147483648
  %v1675 = vmul.f32 %v1674, 1.442695
  %v1676 = vpow.pop %v1675
  %v1677 = vadd.f32 %v1676, 1.0
  %v1678 = vrcp.pop %v1677
  %v1679 = vmul.f32 1.0, %v1678
  %v1680 = vtanh.pop %v1673
  %v1681 = vmul.f32 %v1679, %v1418
  %1683 = vrot.lane.b32.xlu0 %v1680, 64
  %v1684 = vpop.permute.xlu0 %1683
  %v1686 = vmul.f32 %v1679, %v1684
  %1688 = vrot.lane.b32.xlu0 %v1686, 32
  %v1689 = vpop.permute.xlu0 %1688
  %v1691 = vadd.f32 %v1681, %v1689
  %v1692 = vtanh.pop %v1691
  %1694 = vrot.lane.b32.xlu0 %v1692, 64
  %v1695 = vpop.permute.xlu0 %1694
  %v1697 = vmul.f32 %v1679, %v1695
  %v1698 = vsub.f32 %v1697, %v1416
  %v1699 = vadd.f32 %v1416, %v1698
  %v1700 = vsub.f32 %v1691, %v1418
  %v1701 = vadd.f32 %v1418, %v1700
  %v1702 = vsel %vm84, %v1592, 0
  %1704 = vmatprep.subr.mxu0 0.0
  %1705 = vmatpush1.msra.mxu0 0.0
  %1706 = vmatprep.subr.mxu0 0.0
  %1707 = vmatpush1.msra.mxu0 0.0
  %1708 = vmatprep.subr.mxu0 0.0
  %1709 = vmatpush1.msra.mxu0 0.0
  %1710 = vmatprep.subr.mxu0 0.0
  %1711 = vmatpush1.msra.mxu0 0.0
  %1712 = vmatprep.subr.mxu0 0.0
  %1713 = vmatpush1.msra.mxu0 0.0
  %1714 = vmatprep.subr.mxu0 0.0
  %1715 = vmatpush1.msra.mxu0 0.0
  %1716 = vmatprep.subr.mxu0 0.0
  %1717 = vmatpush1.msra.mxu0 0.0
  %1718 = vmatprep.subr.mxu0 0.0
  %1719 = vmatpush1.msra.mxu0 0.0
  %1720 = vmatprep.subr.mxu0 0.0
  %1721 = vmatpush1.msra.mxu0 0.0
  %1722 = vmatprep.subr.mxu0 0.0
  %1723 = vmatpush1.msra.mxu0 0.0
  %1724 = vmatprep.subr.mxu0 0.0
  %1725 = vmatpush1.msra.mxu0 0.0
  %1726 = vmatprep.subr.mxu0 0.0
  %1727 = vmatpush1.msra.mxu0 0.0
  %1728 = vmatprep.subr.mxu0 0.0
  %1729 = vmatpush1.msra.mxu0 %v177
  %1730 = vmatprep.subr.mxu0 0.0
  %1731 = vmatpush1.msra.mxu0 %v176
  %1732 = vmatprep.subr.mxu0 0.0
  %1733 = vmatpush1.msra.mxu0 %v175
  %1734 = vmatprep.subr.mxu0 0.0
  %1735 = vmatpush1.msra.mxu0 %v174
  %1736 = vmatprep.subr.mxu0 0.0
  %1737 = vmatpush2.msra.mxu0 0.0
  %1738 = vmatprep.subr.mxu0 0.0
  %1739 = vmatpush2.msra.mxu0 0.0
  %1740 = vmatprep.subr.mxu0 0.0
  %1741 = vmatpush2.msra.mxu0 0.0
  %1742 = vmatprep.subr.mxu0 0.0
  %1743 = vmatpush2.msra.mxu0 0.0
  %1744 = vmatprep.subr.mxu0 0.0
  %1745 = vmatpush2.msra.mxu0 0.0
  %1746 = vmatprep.subr.mxu0 0.0
  %1747 = vmatpush2.msra.mxu0 0.0
  %1748 = vmatprep.subr.mxu0 0.0
  %1749 = vmatpush2.msra.mxu0 0.0
  %1750 = vmatprep.subr.mxu0 0.0
  %1751 = vmatpush2.msra.mxu0 0.0
  %1752 = vmatprep.subr.mxu0 0.0
  %1753 = vmatpush2.msra.mxu0 0.0
  %1754 = vmatprep.subr.mxu0 0.0
  %1755 = vmatpush2.msra.mxu0 0.0
  %1756 = vmatprep.subr.mxu0 0.0
  %1757 = vmatpush2.msra.mxu0 0.0
  %1758 = vmatprep.subr.mxu0 0.0
  %1759 = vmatpush2.msra.mxu0 0.0
  %1760 = vmatprep.subr.mxu0 0.0
  %1761 = vmatpush2.msra.mxu0 0.0
  %1762 = vmatprep.subr.mxu0 0.0
  %1763 = vmatpush2.msra.mxu0 0.0
  %1764 = vmatprep.subr.mxu0 0.0
  %1765 = vmatpush2.msra.mxu0 0.0
  %1766 = vmatprep.subr.mxu0 0.0
  %1767 = vmatpush2.msra.mxu0 0.0
  %1768 = vmatprep.mubr.f32.mxu0 0.0
  %1769 = vmatmul.mubr.f32.gmra.mxu0 %v1702
  %v1770 = vpop.f32.mrf.mxu0
  %v1771 = vadd.f32 0.0, %v1770
  %v1772 = vpop.f32.mrf.mxu0
  %1773 = vdwg.mxu0
  %1774 = vmatprep.subr.mxu0 0.0
  %1775 = vmatpush1.msra.mxu0 0.0
  %1776 = vmatprep.subr.mxu0 0.0
  %1777 = vmatpush1.msra.mxu0 0.0
  %1778 = vmatprep.subr.mxu0 0.0
  %1779 = vmatpush1.msra.mxu0 0.0
  %1780 = vmatprep.subr.mxu0 0.0
  %1781 = vmatpush1.msra.mxu0 0.0
  %1782 = vmatprep.subr.mxu0 0.0
  %1783 = vmatpush1.msra.mxu0 0.0
  %1784 = vmatprep.subr.mxu0 0.0
  %1785 = vmatpush1.msra.mxu0 0.0
  %1786 = vmatprep.subr.mxu0 0.0
  %1787 = vmatpush1.msra.mxu0 0.0
  %1788 = vmatprep.subr.mxu0 0.0
  %1789 = vmatpush1.msra.mxu0 0.0
  %1790 = vmatprep.subr.mxu0 0.0
  %1791 = vmatpush1.msra.mxu0 0.0
  %1792 = vmatprep.subr.mxu0 0.0
  %1793 = vmatpush1.msra.mxu0 0.0
  %1794 = vmatprep.subr.mxu0 0.0
  %1795 = vmatpush1.msra.mxu0 0.0
  %1796 = vmatprep.subr.mxu0 0.0
  %1797 = vmatpush1.msra.mxu0 0.0
  %1798 = vmatprep.subr.mxu0 0.0
  %1799 = vmatpush1.msra.mxu0 %v181
  %1800 = vmatprep.subr.mxu0 0.0
  %1801 = vmatpush1.msra.mxu0 %v180
  %1802 = vmatprep.subr.mxu0 0.0
  %1803 = vmatpush1.msra.mxu0 %v179
  %1804 = vmatprep.subr.mxu0 0.0
  %1805 = vmatpush1.msra.mxu0 %v178
  %1806 = vmatprep.subr.mxu0 0.0
  %1807 = vmatpush2.msra.mxu0 0.0
  %1808 = vmatprep.subr.mxu0 0.0
  %1809 = vmatpush2.msra.mxu0 0.0
  %1810 = vmatprep.subr.mxu0 0.0
  %1811 = vmatpush2.msra.mxu0 0.0
  %1812 = vmatprep.subr.mxu0 0.0
  %1813 = vmatpush2.msra.mxu0 0.0
  %1814 = vmatprep.subr.mxu0 0.0
  %1815 = vmatpush2.msra.mxu0 0.0
  %1816 = vmatprep.subr.mxu0 0.0
  %1817 = vmatpush2.msra.mxu0 0.0
  %1818 = vmatprep.subr.mxu0 0.0
  %1819 = vmatpush2.msra.mxu0 0.0
  %1820 = vmatprep.subr.mxu0 0.0
  %1821 = vmatpush2.msra.mxu0 0.0
  %1822 = vmatprep.subr.mxu0 0.0
  %1823 = vmatpush2.msra.mxu0 0.0
  %1824 = vmatprep.subr.mxu0 0.0
  %1825 = vmatpush2.msra.mxu0 0.0
  %1826 = vmatprep.subr.mxu0 0.0
  %1827 = vmatpush2.msra.mxu0 0.0
  %1828 = vmatprep.subr.mxu0 0.0
  %1829 = vmatpush2.msra.mxu0 0.0
  %1830 = vmatprep.subr.mxu0 0.0
  %1831 = vmatpush2.msra.mxu0 0.0
  %1832 = vmatprep.subr.mxu0 0.0
  %1833 = vmatpush2.msra.mxu0 0.0
  %1834 = vmatprep.subr.mxu0 0.0
  %1835 = vmatpush2.msra.mxu0 0.0
  %1836 = vmatprep.subr.mxu0 0.0
  %1837 = vmatpush2.msra.mxu0 0.0
  %1838 = vmatprep.mubr.f32.mxu0 0.0
  %1839 = vmatmul.mubr.f32.gmra.mxu0 %v1601
  %v1840 = vpop.f32.mrf.mxu0
  %v1841 = vadd.f32 %v1771, %v1840
  %v1842 = vpop.f32.mrf.mxu0
  %1843 = vdwg.mxu0
  %v1844 = vadd.f32 %v1841, %v187
  %v1845 = vxor.u32 %v1844, 2147483648
  %v1846 = vmul.f32 %v1845, 1.442695
  %v1847 = vpow.pop %v1846
  %v1848 = vadd.f32 %v1847, 1.0
  %v1849 = vrcp.pop %v1848
  %v1850 = vmul.f32 1.0, %v1849
  %v1851 = vtanh.pop %v1844
  %v1852 = vmul.f32 %v1850, %v1589
  %1854 = vrot.lane.b32.xlu0 %v1851, 64
  %v1855 = vpop.permute.xlu0 %1854
  %v1857 = vmul.f32 %v1850, %v1855
  %1859 = vrot.lane.b32.xlu0 %v1857, 32
  %v1860 = vpop.permute.xlu0 %1859
  %v1862 = vadd.f32 %v1852, %v1860
  %v1863 = vtanh.pop %v1862
  %1865 = vrot.lane.b32.xlu0 %v1863, 64
  %v1866 = vpop.permute.xlu0 %1865
  %v1868 = vmul.f32 %v1850, %v1866
  %v1869 = vsub.f32 %v1868, %v1587
  %v1870 = vadd.f32 %v1587, %v1869
  %v1871 = vsub.f32 %v1862, %v1589
  %v1872 = vadd.f32 %v1589, %v1871
  %1874 = vrot.lane.b32.xlu0 %v1870, 32
  %v1875 = vpop.permute.xlu0 %1874
  %s1877 = scalar_lea.vmem [#allocation3], 40
  %1878 = vst.msk [vmem:[%s1877] sm:$0xff] %vm84, %v1875
  %s1879 = scalar_lea.vmem [#allocation2], 48
  %v1880 = vld [vmem:[%s1879] sm:$0xff]
  %1882 = vrot.lane.b32.xlu0 %v1699, 32
  %v1883 = vpop.permute.xlu0 %1882
  %v1884 = vsel %vm84, %v1883, 0
  %1886 = vmatprep.subr.mxu0 0.0
  %1887 = vmatpush1.msra.mxu0 0.0
  %1888 = vmatprep.subr.mxu0 0.0
  %1889 = vmatpush1.msra.mxu0 0.0
  %1890 = vmatprep.subr.mxu0 0.0
  %1891 = vmatpush1.msra.mxu0 0.0
  %1892 = vmatprep.subr.mxu0 0.0
  %1893 = vmatpush1.msra.mxu0 0.0
  %1894 = vmatprep.subr.mxu0 0.0
  %1895 = vmatpush1.msra.mxu0 0.0
  %1896 = vmatprep.subr.mxu0 0.0
  %1897 = vmatpush1.msra.mxu0 0.0
  %1898 = vmatprep.subr.mxu0 0.0
  %1899 = vmatpush1.msra.mxu0 0.0
  %1900 = vmatprep.subr.mxu0 0.0
  %1901 = vmatpush1.msra.mxu0 0.0
  %1902 = vmatprep.subr.mxu0 0.0
  %1903 = vmatpush1.msra.mxu0 0.0
  %1904 = vmatprep.subr.mxu0 0.0
  %1905 = vmatpush1.msra.mxu0 0.0
  %1906 = vmatprep.subr.mxu0 0.0
  %1907 = vmatpush1.msra.mxu0 0.0
  %1908 = vmatprep.subr.mxu0 0.0
  %1909 = vmatpush1.msra.mxu0 0.0
  %1910 = vmatprep.subr.mxu0 0.0
  %1911 = vmatpush1.msra.mxu0 %v173
  %1912 = vmatprep.subr.mxu0 0.0
  %1913 = vmatpush1.msra.mxu0 %v172
  %1914 = vmatprep.subr.mxu0 0.0
  %1915 = vmatpush1.msra.mxu0 %v171
  %1916 = vmatprep.subr.mxu0 0.0
  %1917 = vmatpush1.msra.mxu0 %v170
  %1918 = vmatprep.subr.mxu0 0.0
  %1919 = vmatpush2.msra.mxu0 0.0
  %1920 = vmatprep.subr.mxu0 0.0
  %1921 = vmatpush2.msra.mxu0 0.0
  %1922 = vmatprep.subr.mxu0 0.0
  %1923 = vmatpush2.msra.mxu0 0.0
  %1924 = vmatprep.subr.mxu0 0.0
  %1925 = vmatpush2.msra.mxu0 0.0
  %1926 = vmatprep.subr.mxu0 0.0
  %1927 = vmatpush2.msra.mxu0 0.0
  %1928 = vmatprep.subr.mxu0 0.0
  %1929 = vmatpush2.msra.mxu0 0.0
  %1930 = vmatprep.subr.mxu0 0.0
  %1931 = vmatpush2.msra.mxu0 0.0
  %1932 = vmatprep.subr.mxu0 0.0
  %1933 = vmatpush2.msra.mxu0 0.0
  %1934 = vmatprep.subr.mxu0 0.0
  %1935 = vmatpush2.msra.mxu0 0.0
  %1936 = vmatprep.subr.mxu0 0.0
  %1937 = vmatpush2.msra.mxu0 0.0
  %1938 = vmatprep.subr.mxu0 0.0
  %1939 = vmatpush2.msra.mxu0 0.0
  %1940 = vmatprep.subr.mxu0 0.0
  %1941 = vmatpush2.msra.mxu0 0.0
  %1942 = vmatprep.subr.mxu0 0.0
  %1943 = vmatpush2.msra.mxu0 0.0
  %1944 = vmatprep.subr.mxu0 0.0
  %1945 = vmatpush2.msra.mxu0 0.0
  %1946 = vmatprep.subr.mxu0 0.0
  %1947 = vmatpush2.msra.mxu0 0.0
  %1948 = vmatprep.subr.mxu0 0.0
  %1949 = vmatpush2.msra.mxu0 0.0
  %1950 = vmatprep.mubr.f32.mxu0 0.0
  %1951 = vmatmul.mubr.f32.gmra.mxu0 %v1884
  %v1952 = vpop.f32.mrf.mxu0
  %v1953 = vadd.f32 0.0, %v1952
  %v1954 = vpop.f32.mrf.mxu0
  %1955 = vdwg.mxu0
  %v1956 = vadd.f32 %v1880, %v1953
  %v1957 = vxor.u32 %v1956, 2147483648
  %v1958 = vmul.f32 %v1957, 1.442695
  %v1959 = vpow.pop %v1958
  %v1960 = vadd.f32 %v1959, 1.0
  %v1961 = vrcp.pop %v1960
  %v1962 = vmul.f32 1.0, %v1961
  %v1963 = vtanh.pop %v1956
  %v1964 = vmul.f32 %v1962, %v1701
  %1966 = vrot.lane.b32.xlu0 %v1963, 64
  %v1967 = vpop.permute.xlu0 %1966
  %v1969 = vmul.f32 %v1962, %v1967
  %1971 = vrot.lane.b32.xlu0 %v1969, 32
  %v1972 = vpop.permute.xlu0 %1971
  %v1974 = vadd.f32 %v1964, %v1972
  %v1975 = vtanh.pop %v1974
  %1977 = vrot.lane.b32.xlu0 %v1975, 64
  %v1978 = vpop.permute.xlu0 %1977
  %v1980 = vmul.f32 %v1962, %v1978
  %v1981 = vsub.f32 %v1980, %v1699
  %v1982 = vadd.f32 %v1699, %v1981
  %v1983 = vsub.f32 %v1974, %v1701
  %v1984 = vadd.f32 %v1701, %v1983
  %v1985 = vsel %vm84, %v1875, 0
  %1987 = vmatprep.subr.mxu0 0.0
  %1988 = vmatpush1.msra.mxu0 0.0
  %1989 = vmatprep.subr.mxu0 0.0
  %1990 = vmatpush1.msra.mxu0 0.0
  %1991 = vmatprep.subr.mxu0 0.0
  %1992 = vmatpush1.msra.mxu0 0.0
  %1993 = vmatprep.subr.mxu0 0.0
  %1994 = vmatpush1.msra.mxu0 0.0
  %1995 = vmatprep.subr.mxu0 0.0
  %1996 = vmatpush1.msra.mxu0 0.0
  %1997 = vmatprep.subr.mxu0 0.0
  %1998 = vmatpush1.msra.mxu0 0.0
  %1999 = vmatprep.subr.mxu0 0.0
  %2000 = vmatpush1.msra.mxu0 0.0
  %2001 = vmatprep.subr.mxu0 0.0
  %2002 = vmatpush1.msra.mxu0 0.0
  %2003 = vmatprep.subr.mxu0 0.0
  %2004 = vmatpush1.msra.mxu0 0.0
  %2005 = vmatprep.subr.mxu0 0.0
  %2006 = vmatpush1.msra.mxu0 0.0
  %2007 = vmatprep.subr.mxu0 0.0
  %2008 = vmatpush1.msra.mxu0 0.0
  %2009 = vmatprep.subr.mxu0 0.0
  %2010 = vmatpush1.msra.mxu0 0.0
  %2011 = vmatprep.subr.mxu0 0.0
  %2012 = vmatpush1.msra.mxu0 %v177
  %2013 = vmatprep.subr.mxu0 0.0
  %2014 = vmatpush1.msra.mxu0 %v176
  %2015 = vmatprep.subr.mxu0 0.0
  %2016 = vmatpush1.msra.mxu0 %v175
  %2017 = vmatprep.subr.mxu0 0.0
  %2018 = vmatpush1.msra.mxu0 %v174
  %2019 = vmatprep.subr.mxu0 0.0
  %2020 = vmatpush2.msra.mxu0 0.0
  %2021 = vmatprep.subr.mxu0 0.0
  %2022 = vmatpush2.msra.mxu0 0.0
  %2023 = vmatprep.subr.mxu0 0.0
  %2024 = vmatpush2.msra.mxu0 0.0
  %2025 = vmatprep.subr.mxu0 0.0
  %2026 = vmatpush2.msra.mxu0 0.0
  %2027 = vmatprep.subr.mxu0 0.0
  %2028 = vmatpush2.msra.mxu0 0.0
  %2029 = vmatprep.subr.mxu0 0.0
  %2030 = vmatpush2.msra.mxu0 0.0
  %2031 = vmatprep.subr.mxu0 0.0
  %2032 = vmatpush2.msra.mxu0 0.0
  %2033 = vmatprep.subr.mxu0 0.0
  %2034 = vmatpush2.msra.mxu0 0.0
  %2035 = vmatprep.subr.mxu0 0.0
  %2036 = vmatpush2.msra.mxu0 0.0
  %2037 = vmatprep.subr.mxu0 0.0
  %2038 = vmatpush2.msra.mxu0 0.0
  %2039 = vmatprep.subr.mxu0 0.0
  %2040 = vmatpush2.msra.mxu0 0.0
  %2041 = vmatprep.subr.mxu0 0.0
  %2042 = vmatpush2.msra.mxu0 0.0
  %2043 = vmatprep.subr.mxu0 0.0
  %2044 = vmatpush2.msra.mxu0 0.0
  %2045 = vmatprep.subr.mxu0 0.0
  %2046 = vmatpush2.msra.mxu0 0.0
  %2047 = vmatprep.subr.mxu0 0.0
  %2048 = vmatpush2.msra.mxu0 0.0
  %2049 = vmatprep.subr.mxu0 0.0
  %2050 = vmatpush2.msra.mxu0 0.0
  %2051 = vmatprep.mubr.f32.mxu0 0.0
  %2052 = vmatmul.mubr.f32.gmra.mxu0 %v1985
  %v2053 = vpop.f32.mrf.mxu0
  %v2054 = vadd.f32 0.0, %v2053
  %v2055 = vpop.f32.mrf.mxu0
  %2056 = vdwg.mxu0
  %2057 = vmatprep.subr.mxu0 0.0
  %2058 = vmatpush1.msra.mxu0 0.0
  %2059 = vmatprep.subr.mxu0 0.0
  %2060 = vmatpush1.msra.mxu0 0.0
  %2061 = vmatprep.subr.mxu0 0.0
  %2062 = vmatpush1.msra.mxu0 0.0
  %2063 = vmatprep.subr.mxu0 0.0
  %2064 = vmatpush1.msra.mxu0 0.0
  %2065 = vmatprep.subr.mxu0 0.0
  %2066 = vmatpush1.msra.mxu0 0.0
  %2067 = vmatprep.subr.mxu0 0.0
  %2068 = vmatpush1.msra.mxu0 0.0
  %2069 = vmatprep.subr.mxu0 0.0
  %2070 = vmatpush1.msra.mxu0 0.0
  %2071 = vmatprep.subr.mxu0 0.0
  %2072 = vmatpush1.msra.mxu0 0.0
  %2073 = vmatprep.subr.mxu0 0.0
  %2074 = vmatpush1.msra.mxu0 0.0
  %2075 = vmatprep.subr.mxu0 0.0
  %2076 = vmatpush1.msra.mxu0 0.0
  %2077 = vmatprep.subr.mxu0 0.0
  %2078 = vmatpush1.msra.mxu0 0.0
  %2079 = vmatprep.subr.mxu0 0.0
  %2080 = vmatpush1.msra.mxu0 0.0
  %2081 = vmatprep.subr.mxu0 0.0
  %2082 = vmatpush1.msra.mxu0 %v181
  %2083 = vmatprep.subr.mxu0 0.0
  %2084 = vmatpush1.msra.mxu0 %v180
  %2085 = vmatprep.subr.mxu0 0.0
  %2086 = vmatpush1.msra.mxu0 %v179
  %2087 = vmatprep.subr.mxu0 0.0
  %2088 = vmatpush1.msra.mxu0 %v178
  %2089 = vmatprep.subr.mxu0 0.0
  %2090 = vmatpush2.msra.mxu0 0.0
  %2091 = vmatprep.subr.mxu0 0.0
  %2092 = vmatpush2.msra.mxu0 0.0
  %2093 = vmatprep.subr.mxu0 0.0
  %2094 = vmatpush2.msra.mxu0 0.0
  %2095 = vmatprep.subr.mxu0 0.0
  %2096 = vmatpush2.msra.mxu0 0.0
  %2097 = vmatprep.subr.mxu0 0.0
  %2098 = vmatpush2.msra.mxu0 0.0
  %2099 = vmatprep.subr.mxu0 0.0
  %2100 = vmatpush2.msra.mxu0 0.0
  %2101 = vmatprep.subr.mxu0 0.0
  %2102 = vmatpush2.msra.mxu0 0.0
  %2103 = vmatprep.subr.mxu0 0.0
  %2104 = vmatpush2.msra.mxu0 0.0
  %2105 = vmatprep.subr.mxu0 0.0
  %2106 = vmatpush2.msra.mxu0 0.0
  %2107 = vmatprep.subr.mxu0 0.0
  %2108 = vmatpush2.msra.mxu0 0.0
  %2109 = vmatprep.subr.mxu0 0.0
  %2110 = vmatpush2.msra.mxu0 0.0
  %2111 = vmatprep.subr.mxu0 0.0
  %2112 = vmatpush2.msra.mxu0 0.0
  %2113 = vmatprep.subr.mxu0 0.0
  %2114 = vmatpush2.msra.mxu0 0.0
  %2115 = vmatprep.subr.mxu0 0.0
  %2116 = vmatpush2.msra.mxu0 0.0
  %2117 = vmatprep.subr.mxu0 0.0
  %2118 = vmatpush2.msra.mxu0 0.0
  %2119 = vmatprep.subr.mxu0 0.0
  %2120 = vmatpush2.msra.mxu0 0.0
  %2121 = vmatprep.mubr.f32.mxu0 0.0
  %2122 = vmatmul.mubr.f32.gmra.mxu0 %v1884
  %v2123 = vpop.f32.mrf.mxu0
  %v2124 = vadd.f32 %v2054, %v2123
  %v2125 = vpop.f32.mrf.mxu0
  %2126 = vdwg.mxu0
  %v2127 = vadd.f32 %v2124, %v187
  %v2128 = vxor.u32 %v2127, 2147483648
  %v2129 = vmul.f32 %v2128, 1.442695
  %v2130 = vpow.pop %v2129
  %v2131 = vadd.f32 %v2130, 1.0
  %v2132 = vrcp.pop %v2131
  %v2133 = vmul.f32 1.0, %v2132
  %v2134 = vtanh.pop %v2127
  %v2135 = vmul.f32 %v2133, %v1872
  %2137 = vrot.lane.b32.xlu0 %v2134, 64
  %v2138 = vpop.permute.xlu0 %2137
  %v2140 = vmul.f32 %v2133, %v2138
  %2142 = vrot.lane.b32.xlu0 %v2140, 32
  %v2143 = vpop.permute.xlu0 %2142
  %v2145 = vadd.f32 %v2135, %v2143
  %v2146 = vtanh.pop %v2145
  %2148 = vrot.lane.b32.xlu0 %v2146, 64
  %v2149 = vpop.permute.xlu0 %2148
  %v2151 = vmul.f32 %v2133, %v2149
  %v2152 = vsub.f32 %v2151, %v1870
  %v2153 = vadd.f32 %v1870, %v2152
  %v2154 = vsub.f32 %v2145, %v1872
  %v2155 = vadd.f32 %v1872, %v2154
  %2157 = vrot.lane.b32.xlu0 %v2153, 32
  %v2158 = vpop.permute.xlu0 %2157
  %s2160 = scalar_lea.vmem [#allocation3], 48
  %2161 = vst.msk [vmem:[%s2160] sm:$0xff] %vm84, %v2158
  %s2162 = scalar_lea.vmem [#allocation2], 56
  %v2163 = vld [vmem:[%s2162] sm:$0xff]
  %2165 = vrot.lane.b32.xlu0 %v1982, 32
  %v2166 = vpop.permute.xlu0 %2165
  %v2167 = vsel %vm84, %v2166, 0
  %2169 = vmatprep.subr.mxu0 0.0
  %2170 = vmatpush1.msra.mxu0 0.0
  %2171 = vmatprep.subr.mxu0 0.0
  %2172 = vmatpush1.msra.mxu0 0.0
  %2173 = vmatprep.subr.mxu0 0.0
  %2174 = vmatpush1.msra.mxu0 0.0
  %2175 = vmatprep.subr.mxu0 0.0
  %2176 = vmatpush1.msra.mxu0 0.0
  %2177 = vmatprep.subr.mxu0 0.0
  %2178 = vmatpush1.msra.mxu0 0.0
  %2179 = vmatprep.subr.mxu0 0.0
  %2180 = vmatpush1.msra.mxu0 0.0
  %2181 = vmatprep.subr.mxu0 0.0
  %2182 = vmatpush1.msra.mxu0 0.0
  %2183 = vmatprep.subr.mxu0 0.0
  %2184 = vmatpush1.msra.mxu0 0.0
  %2185 = vmatprep.subr.mxu0 0.0
  %2186 = vmatpush1.msra.mxu0 0.0
  %2187 = vmatprep.subr.mxu0 0.0
  %2188 = vmatpush1.msra.mxu0 0.0
  %2189 = vmatprep.subr.mxu0 0.0
  %2190 = vmatpush1.msra.mxu0 0.0
  %2191 = vmatprep.subr.mxu0 0.0
  %2192 = vmatpush1.msra.mxu0 0.0
  %2193 = vmatprep.subr.mxu0 0.0
  %2194 = vmatpush1.msra.mxu0 %v173
  %2195 = vmatprep.subr.mxu0 0.0
  %2196 = vmatpush1.msra.mxu0 %v172
  %2197 = vmatprep.subr.mxu0 0.0
  %2198 = vmatpush1.msra.mxu0 %v171
  %2199 = vmatprep.subr.mxu0 0.0
  %2200 = vmatpush1.msra.mxu0 %v170
  %2201 = vmatprep.subr.mxu0 0.0
  %2202 = vmatpush2.msra.mxu0 0.0
  %2203 = vmatprep.subr.mxu0 0.0
  %2204 = vmatpush2.msra.mxu0 0.0
  %2205 = vmatprep.subr.mxu0 0.0
  %2206 = vmatpush2.msra.mxu0 0.0
  %2207 = vmatprep.subr.mxu0 0.0
  %2208 = vmatpush2.msra.mxu0 0.0
  %2209 = vmatprep.subr.mxu0 0.0
  %2210 = vmatpush2.msra.mxu0 0.0
  %2211 = vmatprep.subr.mxu0 0.0
  %2212 = vmatpush2.msra.mxu0 0.0
  %2213 = vmatprep.subr.mxu0 0.0
  %2214 = vmatpush2.msra.mxu0 0.0
  %2215 = vmatprep.subr.mxu0 0.0
  %2216 = vmatpush2.msra.mxu0 0.0
  %2217 = vmatprep.subr.mxu0 0.0
  %2218 = vmatpush2.msra.mxu0 0.0
  %2219 = vmatprep.subr.mxu0 0.0
  %2220 = vmatpush2.msra.mxu0 0.0
  %2221 = vmatprep.subr.mxu0 0.0
  %2222 = vmatpush2.msra.mxu0 0.0
  %2223 = vmatprep.subr.mxu0 0.0
  %2224 = vmatpush2.msra.mxu0 0.0
  %2225 = vmatprep.subr.mxu0 0.0
  %2226 = vmatpush2.msra.mxu0 0.0
  %2227 = vmatprep.subr.mxu0 0.0
  %2228 = vmatpush2.msra.mxu0 0.0
  %2229 = vmatprep.subr.mxu0 0.0
  %2230 = vmatpush2.msra.mxu0 0.0
  %2231 = vmatprep.subr.mxu0 0.0
  %2232 = vmatpush2.msra.mxu0 0.0
  %2233 = vmatprep.mubr.f32.mxu0 0.0
  %2234 = vmatmul.mubr.f32.gmra.mxu0 %v2167
  %v2235 = vpop.f32.mrf.mxu0
  %v2236 = vadd.f32 0.0, %v2235
  %v2237 = vpop.f32.mrf.mxu0
  %2238 = vdwg.mxu0
  %v2239 = vadd.f32 %v2163, %v2236
  %v2240 = vxor.u32 %v2239, 2147483648
  %v2241 = vmul.f32 %v2240, 1.442695
  %v2242 = vpow.pop %v2241
  %v2243 = vadd.f32 %v2242, 1.0
  %v2244 = vrcp.pop %v2243
  %v2245 = vmul.f32 1.0, %v2244
  %v2246 = vtanh.pop %v2239
  %v2247 = vmul.f32 %v2245, %v1984
  %2249 = vrot.lane.b32.xlu0 %v2246, 64
  %v2250 = vpop.permute.xlu0 %2249
  %v2252 = vmul.f32 %v2245, %v2250
  %2254 = vrot.lane.b32.xlu0 %v2252, 32
  %v2255 = vpop.permute.xlu0 %2254
  %v2257 = vadd.f32 %v2247, %v2255
  %v2258 = vtanh.pop %v2257
  %2260 = vrot.lane.b32.xlu0 %v2258, 64
  %v2261 = vpop.permute.xlu0 %2260
  %v2263 = vmul.f32 %v2245, %v2261
  %v2264 = vsub.f32 %v2263, %v1982
  %v2265 = vadd.f32 %v1982, %v2264
  %v2266 = vsel %vm84, %v2158, 0
  %2268 = vmatprep.subr.mxu0 0.0
  %2269 = vmatpush1.msra.mxu0 0.0
  %2270 = vmatprep.subr.mxu0 0.0
  %2271 = vmatpush1.msra.mxu0 0.0
  %2272 = vmatprep.subr.mxu0 0.0
  %2273 = vmatpush1.msra.mxu0 0.0
  %2274 = vmatprep.subr.mxu0 0.0
  %2275 = vmatpush1.msra.mxu0 0.0
  %2276 = vmatprep.subr.mxu0 0.0
  %2277 = vmatpush1.msra.mxu0 0.0
  %2278 = vmatprep.subr.mxu0 0.0
  %2279 = vmatpush1.msra.mxu0 0.0
  %2280 = vmatprep.subr.mxu0 0.0
  %2281 = vmatpush1.msra.mxu0 0.0
  %2282 = vmatprep.subr.mxu0 0.0
  %2283 = vmatpush1.msra.mxu0 0.0
  %2284 = vmatprep.subr.mxu0 0.0
  %2285 = vmatpush1.msra.mxu0 0.0
  %2286 = vmatprep.subr.mxu0 0.0
  %2287 = vmatpush1.msra.mxu0 0.0
  %2288 = vmatprep.subr.mxu0 0.0
  %2289 = vmatpush1.msra.mxu0 0.0
  %2290 = vmatprep.subr.mxu0 0.0
  %2291 = vmatpush1.msra.mxu0 0.0
  %2292 = vmatprep.subr.mxu0 0.0
  %2293 = vmatpush1.msra.mxu0 %v177
  %2294 = vmatprep.subr.mxu0 0.0
  %2295 = vmatpush1.msra.mxu0 %v176
  %2296 = vmatprep.subr.mxu0 0.0
  %2297 = vmatpush1.msra.mxu0 %v175
  %2298 = vmatprep.subr.mxu0 0.0
  %2299 = vmatpush1.msra.mxu0 %v174
  %2300 = vmatprep.subr.mxu0 0.0
  %2301 = vmatpush2.msra.mxu0 0.0
  %2302 = vmatprep.subr.mxu0 0.0
  %2303 = vmatpush2.msra.mxu0 0.0
  %2304 = vmatprep.subr.mxu0 0.0
  %2305 = vmatpush2.msra.mxu0 0.0
  %2306 = vmatprep.subr.mxu0 0.0
  %2307 = vmatpush2.msra.mxu0 0.0
  %2308 = vmatprep.subr.mxu0 0.0
  %2309 = vmatpush2.msra.mxu0 0.0
  %2310 = vmatprep.subr.mxu0 0.0
  %2311 = vmatpush2.msra.mxu0 0.0
  %2312 = vmatprep.subr.mxu0 0.0
  %2313 = vmatpush2.msra.mxu0 0.0
  %2314 = vmatprep.subr.mxu0 0.0
  %2315 = vmatpush2.msra.mxu0 0.0
  %2316 = vmatprep.subr.mxu0 0.0
  %2317 = vmatpush2.msra.mxu0 0.0
  %2318 = vmatprep.subr.mxu0 0.0
  %2319 = vmatpush2.msra.mxu0 0.0
  %2320 = vmatprep.subr.mxu0 0.0
  %2321 = vmatpush2.msra.mxu0 0.0
  %2322 = vmatprep.subr.mxu0 0.0
  %2323 = vmatpush2.msra.mxu0 0.0
  %2324 = vmatprep.subr.mxu0 0.0
  %2325 = vmatpush2.msra.mxu0 0.0
  %2326 = vmatprep.subr.mxu0 0.0
  %2327 = vmatpush2.msra.mxu0 0.0
  %2328 = vmatprep.subr.mxu0 0.0
  %2329 = vmatpush2.msra.mxu0 0.0
  %2330 = vmatprep.subr.mxu0 0.0
  %2331 = vmatpush2.msra.mxu0 0.0
  %2332 = vmatprep.mubr.f32.mxu0 0.0
  %2333 = vmatmul.mubr.f32.gmra.mxu0 %v2266
  %v2334 = vpop.f32.mrf.mxu0
  %v2335 = vadd.f32 0.0, %v2334
  %v2336 = vpop.f32.mrf.mxu0
  %2337 = vdwg.mxu0
  %2338 = vmatprep.subr.mxu0 0.0
  %2339 = vmatpush1.msra.mxu0 0.0
  %2340 = vmatprep.subr.mxu0 0.0
  %2341 = vmatpush1.msra.mxu0 0.0
  %2342 = vmatprep.subr.mxu0 0.0
  %2343 = vmatpush1.msra.mxu0 0.0
  %2344 = vmatprep.subr.mxu0 0.0
  %2345 = vmatpush1.msra.mxu0 0.0
  %2346 = vmatprep.subr.mxu0 0.0
  %2347 = vmatpush1.msra.mxu0 0.0
  %2348 = vmatprep.subr.mxu0 0.0
  %2349 = vmatpush1.msra.mxu0 0.0
  %2350 = vmatprep.subr.mxu0 0.0
  %2351 = vmatpush1.msra.mxu0 0.0
  %2352 = vmatprep.subr.mxu0 0.0
  %2353 = vmatpush1.msra.mxu0 0.0
  %2354 = vmatprep.subr.mxu0 0.0
  %2355 = vmatpush1.msra.mxu0 0.0
  %2356 = vmatprep.subr.mxu0 0.0
  %2357 = vmatpush1.msra.mxu0 0.0
  %2358 = vmatprep.subr.mxu0 0.0
  %2359 = vmatpush1.msra.mxu0 0.0
  %2360 = vmatprep.subr.mxu0 0.0
  %2361 = vmatpush1.msra.mxu0 0.0
  %2362 = vmatprep.subr.mxu0 0.0
  %2363 = vmatpush1.msra.mxu0 %v181
  %2364 = vmatprep.subr.mxu0 0.0
  %2365 = vmatpush1.msra.mxu0 %v180
  %2366 = vmatprep.subr.mxu0 0.0
  %2367 = vmatpush1.msra.mxu0 %v179
  %2368 = vmatprep.subr.mxu0 0.0
  %2369 = vmatpush1.msra.mxu0 %v178
  %2370 = vmatprep.subr.mxu0 0.0
  %2371 = vmatpush2.msra.mxu0 0.0
  %2372 = vmatprep.subr.mxu0 0.0
  %2373 = vmatpush2.msra.mxu0 0.0
  %2374 = vmatprep.subr.mxu0 0.0
  %2375 = vmatpush2.msra.mxu0 0.0
  %2376 = vmatprep.subr.mxu0 0.0
  %2377 = vmatpush2.msra.mxu0 0.0
  %2378 = vmatprep.subr.mxu0 0.0
  %2379 = vmatpush2.msra.mxu0 0.0
  %2380 = vmatprep.subr.mxu0 0.0
  %2381 = vmatpush2.msra.mxu0 0.0
  %2382 = vmatprep.subr.mxu0 0.0
  %2383 = vmatpush2.msra.mxu0 0.0
  %2384 = vmatprep.subr.mxu0 0.0
  %2385 = vmatpush2.msra.mxu0 0.0
  %2386 = vmatprep.subr.mxu0 0.0
  %2387 = vmatpush2.msra.mxu0 0.0
  %2388 = vmatprep.subr.mxu0 0.0
  %2389 = vmatpush2.msra.mxu0 0.0
  %2390 = vmatprep.subr.mxu0 0.0
  %2391 = vmatpush2.msra.mxu0 0.0
  %2392 = vmatprep.subr.mxu0 0.0
  %2393 = vmatpush2.msra.mxu0 0.0
  %2394 = vmatprep.subr.mxu0 0.0
  %2395 = vmatpush2.msra.mxu0 0.0
  %2396 = vmatprep.subr.mxu0 0.0
  %2397 = vmatpush2.msra.mxu0 0.0
  %2398 = vmatprep.subr.mxu0 0.0
  %2399 = vmatpush2.msra.mxu0 0.0
  %2400 = vmatprep.subr.mxu0 0.0
  %2401 = vmatpush2.msra.mxu0 0.0
  %2402 = vmatprep.mubr.f32.mxu0 0.0
  %2403 = vmatmul.mubr.f32.gmra.mxu0 %v2167
  %v2404 = vpop.f32.mrf.mxu0
  %v2405 = vadd.f32 %v2335, %v2404
  %v2406 = vpop.f32.mrf.mxu0
  %2407 = vdwg.mxu0
  %v2408 = vadd.f32 %v2405, %v187
  %v2409 = vxor.u32 %v2408, 2147483648
  %v2410 = vmul.f32 %v2409, 1.442695
  %v2411 = vpow.pop %v2410
  %v2412 = vadd.f32 %v2411, 1.0
  %v2413 = vrcp.pop %v2412
  %v2414 = vmul.f32 1.0, %v2413
  %v2415 = vtanh.pop %v2408
  %v2416 = vmul.f32 %v2414, %v2155
  %2418 = vrot.lane.b32.xlu0 %v2415, 64
  %v2419 = vpop.permute.xlu0 %2418
  %v2421 = vmul.f32 %v2414, %v2419
  %2423 = vrot.lane.b32.xlu0 %v2421, 32
  %v2424 = vpop.permute.xlu0 %2423
  %v2426 = vadd.f32 %v2416, %v2424
  %v2427 = vtanh.pop %v2426
  %2429 = vrot.lane.b32.xlu0 %v2427, 64
  %v2430 = vpop.permute.xlu0 %2429
  %v2432 = vmul.f32 %v2414, %v2430
  %v2433 = vsub.f32 %v2432, %v2153
  %v2434 = vadd.f32 %v2153, %v2433
  %v2435 = vsub.f32 %v2426, %v2155
  %v2436 = vadd.f32 %v2155, %v2435
  %2438 = vrot.lane.b32.xlu0 %v2434, 32
  %v2439 = vpop.permute.xlu0 %2438
  %s2441 = scalar_lea.vmem [#allocation3], 56
  %2442 = vst.msk [vmem:[%s2441] sm:$0xff] %vm84, %v2439
  %v2443 = vsel %vm84, %v2439, 0
  %2445 = vmatprep.subr.mxu0 0.0
  %2446 = vmatpush1.msra.mxu0 0.0
  %2447 = vmatprep.subr.mxu0 0.0
  %2448 = vmatpush1.msra.mxu0 0.0
  %2449 = vmatprep.subr.mxu0 0.0
  %2450 = vmatpush1.msra.mxu0 0.0
  %2451 = vmatprep.subr.mxu0 0.0
  %2452 = vmatpush1.msra.mxu0 0.0
  %2453 = vmatprep.subr.mxu0 0.0
  %2454 = vmatpush1.msra.mxu0 0.0
  %2455 = vmatprep.subr.mxu0 0.0
  %2456 = vmatpush1.msra.mxu0 0.0
  %2457 = vmatprep.subr.mxu0 0.0
  %2458 = vmatpush1.msra.mxu0 0.0
  %2459 = vmatprep.subr.mxu0 0.0
  %2460 = vmatpush1.msra.mxu0 0.0
  %2461 = vmatprep.subr.mxu0 0.0
  %2462 = vmatpush1.msra.mxu0 0.0
  %2463 = vmatprep.subr.mxu0 0.0
  %2464 = vmatpush1.msra.mxu0 0.0
  %2465 = vmatprep.subr.mxu0 0.0
  %2466 = vmatpush1.msra.mxu0 0.0
  %2467 = vmatprep.subr.mxu0 0.0
  %2468 = vmatpush1.msra.mxu0 0.0
  %2469 = vmatprep.subr.mxu0 0.0
  %2470 = vmatpush1.msra.mxu0 %v177
  %2471 = vmatprep.subr.mxu0 0.0
  %2472 = vmatpush1.msra.mxu0 %v176
  %2473 = vmatprep.subr.mxu0 0.0
  %2474 = vmatpush1.msra.mxu0 %v175
  %2475 = vmatprep.subr.mxu0 0.0
  %2476 = vmatpush1.msra.mxu0 %v174
  %2477 = vmatprep.subr.mxu0 0.0
  %2478 = vmatpush2.msra.mxu0 0.0
  %2479 = vmatprep.subr.mxu0 0.0
  %2480 = vmatpush2.msra.mxu0 0.0
  %2481 = vmatprep.subr.mxu0 0.0
  %2482 = vmatpush2.msra.mxu0 0.0
  %2483 = vmatprep.subr.mxu0 0.0
  %2484 = vmatpush2.msra.mxu0 0.0
  %2485 = vmatprep.subr.mxu0 0.0
  %2486 = vmatpush2.msra.mxu0 0.0
  %2487 = vmatprep.subr.mxu0 0.0
  %2488 = vmatpush2.msra.mxu0 0.0
  %2489 = vmatprep.subr.mxu0 0.0
  %2490 = vmatpush2.msra.mxu0 0.0
  %2491 = vmatprep.subr.mxu0 0.0
  %2492 = vmatpush2.msra.mxu0 0.0
  %2493 = vmatprep.subr.mxu0 0.0
  %2494 = vmatpush2.msra.mxu0 0.0
  %2495 = vmatprep.subr.mxu0 0.0
  %2496 = vmatpush2.msra.mxu0 0.0
  %2497 = vmatprep.subr.mxu0 0.0
  %2498 = vmatpush2.msra.mxu0 0.0
  %2499 = vmatprep.subr.mxu0 0.0
  %2500 = vmatpush2.msra.mxu0 0.0
  %2501 = vmatprep.subr.mxu0 0.0
  %2502 = vmatpush2.msra.mxu0 0.0
  %2503 = vmatprep.subr.mxu0 0.0
  %2504 = vmatpush2.msra.mxu0 0.0
  %2505 = vmatprep.subr.mxu0 0.0
  %2506 = vmatpush2.msra.mxu0 0.0
  %2507 = vmatprep.subr.mxu0 0.0
  %2508 = vmatpush2.msra.mxu0 0.0
  %2509 = vmatprep.mubr.f32.mxu0 0.0
  %2510 = vmatmul.mubr.f32.gmra.mxu0 %v2443
  %v2511 = vpop.f32.mrf.mxu0
  %v2512 = vadd.f32 0.0, %v2511
  %v2513 = vpop.f32.mrf.mxu0
  %2514 = vdwg.mxu0
  %2516 = vrot.lane.b32.xlu0 %v2265, 32
  %v2517 = vpop.permute.xlu0 %2516
  %v2518 = vsel %vm84, %v2517, 0
  %2520 = vmatprep.subr.mxu0 0.0
  %2521 = vmatpush1.msra.mxu0 0.0
  %2522 = vmatprep.subr.mxu0 0.0
  %2523 = vmatpush1.msra.mxu0 0.0
  %2524 = vmatprep.subr.mxu0 0.0
  %2525 = vmatpush1.msra.mxu0 0.0
  %2526 = vmatprep.subr.mxu0 0.0
  %2527 = vmatpush1.msra.mxu0 0.0
  %2528 = vmatprep.subr.mxu0 0.0
  %2529 = vmatpush1.msra.mxu0 0.0
  %2530 = vmatprep.subr.mxu0 0.0
  %2531 = vmatpush1.msra.mxu0 0.0
  %2532 = vmatprep.subr.mxu0 0.0
  %2533 = vmatpush1.msra.mxu0 0.0
  %2534 = vmatprep.subr.mxu0 0.0
  %2535 = vmatpush1.msra.mxu0 0.0
  %2536 = vmatprep.subr.mxu0 0.0
  %2537 = vmatpush1.msra.mxu0 0.0
  %2538 = vmatprep.subr.mxu0 0.0
  %2539 = vmatpush1.msra.mxu0 0.0
  %2540 = vmatprep.subr.mxu0 0.0
  %2541 = vmatpush1.msra.mxu0 0.0
  %2542 = vmatprep.subr.mxu0 0.0
  %2543 = vmatpush1.msra.mxu0 0.0
  %2544 = vmatprep.subr.mxu0 0.0
  %2545 = vmatpush1.msra.mxu0 %v181
  %2546 = vmatprep.subr.mxu0 0.0
  %2547 = vmatpush1.msra.mxu0 %v180
  %2548 = vmatprep.subr.mxu0 0.0
  %2549 = vmatpush1.msra.mxu0 %v179
  %2550 = vmatprep.subr.mxu0 0.0
  %2551 = vmatpush1.msra.mxu0 %v178
  %2552 = vmatprep.subr.mxu0 0.0
  %2553 = vmatpush2.msra.mxu0 0.0
  %2554 = vmatprep.subr.mxu0 0.0
  %2555 = vmatpush2.msra.mxu0 0.0
  %2556 = vmatprep.subr.mxu0 0.0
  %2557 = vmatpush2.msra.mxu0 0.0
  %2558 = vmatprep.subr.mxu0 0.0
  %2559 = vmatpush2.msra.mxu0 0.0
  %2560 = vmatprep.subr.mxu0 0.0
  %2561 = vmatpush2.msra.mxu0 0.0
  %2562 = vmatprep.subr.mxu0 0.0
  %2563 = vmatpush2.msra.mxu0 0.0
  %2564 = vmatprep.subr.mxu0 0.0
  %2565 = vmatpush2.msra.mxu0 0.0
  %2566 = vmatprep.subr.mxu0 0.0
  %2567 = vmatpush2.msra.mxu0 0.0
  %2568 = vmatprep.subr.mxu0 0.0
  %2569 = vmatpush2.msra.mxu0 0.0
  %2570 = vmatprep.subr.mxu0 0.0
  %2571 = vmatpush2.msra.mxu0 0.0
  %2572 = vmatprep.subr.mxu0 0.0
  %2573 = vmatpush2.msra.mxu0 0.0
  %2574 = vmatprep.subr.mxu0 0.0
  %2575 = vmatpush2.msra.mxu0 0.0
  %2576 = vmatprep.subr.mxu0 0.0
  %2577 = vmatpush2.msra.mxu0 0.0
  %2578 = vmatprep.subr.mxu0 0.0
  %2579 = vmatpush2.msra.mxu0 0.0
  %2580 = vmatprep.subr.mxu0 0.0
  %2581 = vmatpush2.msra.mxu0 0.0
  %2582 = vmatprep.subr.mxu0 0.0
  %2583 = vmatpush2.msra.mxu0 0.0
  %2584 = vmatprep.mubr.f32.mxu0 0.0
  %2585 = vmatmul.mubr.f32.gmra.mxu0 %v2518
  %v2586 = vpop.f32.mrf.mxu0
  %v2587 = vadd.f32 %v2512, %v2586
  %v2588 = vpop.f32.mrf.mxu0
  %2589 = vdwg.mxu0
  %v2590 = vadd.f32 %v2587, %v187
  %v2591 = vxor.u32 %v2590, 2147483648
  %v2592 = vmul.f32 %v2591, 1.442695
  %v2593 = vpow.pop %v2592
  %v2594 = vadd.f32 %v2593, 1.0
  %v2595 = vrcp.pop %v2594
  %v2596 = vmul.f32 1.0, %v2595
  %v2597 = vtanh.pop %v2590
  %v2598 = vmul.f32 %v2596, %v2436
  %2600 = vrot.lane.b32.xlu0 %v2597, 64
  %v2601 = vpop.permute.xlu0 %2600
  %v2603 = vmul.f32 %v2596, %v2601
  %2605 = vrot.lane.b32.xlu0 %v2603, 32
  %v2606 = vpop.permute.xlu0 %2605
  %v2608 = vadd.f32 %v2598, %v2606
  %v2609 = vtanh.pop %v2608
  %2611 = vrot.lane.b32.xlu0 %v2609, 64
  %v2612 = vpop.permute.xlu0 %2611
  %v2614 = vmul.f32 %v2596, %v2612
  %v2615 = vsub.f32 %v2614, %v2434
  %v2616 = vadd.f32 %v2434, %v2615
  %2618 = vrot.lane.b32.xlu0 %v2616, 32
  %v2619 = vpop.permute.xlu0 %2618
  %s2621 = scalar_lea.vmem [#allocation3], 64
  %2622 = vst.msk [vmem:[%s2621] sm:$0xff] %vm84, %v2619
  %v2623 = vld [vmem:[#allocation3 + $0x8] sm:$0xff]
  %v2624 = vld [vmem:[#allocation3 + $0x10] sm:$0xff]
  %v2625 = vld [vmem:[#allocation3 + $0x18] sm:$0xff]
  %v2626 = vld [vmem:[#allocation3 + $0x20] sm:$0xff]
  %v2627 = vld [vmem:[#allocation3 + $0x28] sm:$0xff]
  %v2628 = vld [vmem:[#allocation3 + $0x30] sm:$0xff]
  %v2629 = vld [vmem:[#allocation3 + $0x38] sm:$0xff]
  %v2630 = vld [vmem:[#allocation3 + $0x40] sm:$0xff]
  %v2631 = vpack.c.bf16 %v2624, %v2623
  %v2632 = vpack.c.bf16 %v2626, %v2625
  %v2633 = vpack.c.bf16 %v2628, %v2627
  %v2634 = vpack.c.bf16 %v2630, %v2629
  %v2635 = vld [vmem:[%s7] sm:$0xf]
  %v2636 = vld [vmem:[%s7 + $0x4] sm:$0xf]
  %v2637 = vld [vmem:[%s7 + $0x8] sm:$0xf]
  %v2638 = vld [vmem:[%s7 + $0xc] sm:$0xf]
  %v2639 = vld [vmem:[%s8] sm:$0x1]
  %v2641 = vlaneseq
  %v2642 = vshrl.u32 %v2641, 7
  %v2643 = vsub.s32 0, %v2642
  %v2644 = vrot.slane %v2639, %v2643
  %v2650 = vunpack.c.l.b16 %v2635
  %v2651 = vunpack.c.l.b16 %v2636
  %v2652 = vunpack.c.l.b16 %v2637
  %v2653 = vunpack.c.l.b16 %v2638
  %v2654 = vpack.c.b16 %v2651, %v2650
  %v2655 = vpack.c.b16 %v2653, %v2652
  %v2659 = vsel %vm84, %v2631, 0
  %v2662 = vsel %vm84, %v2632, 0
  %v2665 = vsel %vm84, %v2633, 0
  %v2668 = vsel %vm84, %v2634, 0
  %2670 = vmatprep.subr.bf16.mxu0 0
  %2671 = vmatpush1.bf16.msra.mxu0 0
  %2672 = vmatprep.subr.bf16.mxu0 0
  %2673 = vmatpush1.bf16.msra.mxu0 0
  %2674 = vmatprep.subr.bf16.mxu0 0
  %2675 = vmatpush1.bf16.msra.mxu0 0
  %2676 = vmatprep.subr.bf16.mxu0 0
  %2677 = vmatpush1.bf16.msra.mxu0 0
  %2678 = vmatprep.subr.bf16.mxu0 0
  %2679 = vmatpush1.bf16.msra.mxu0 0
  %2680 = vmatprep.subr.bf16.mxu0 0
  %2681 = vmatpush1.bf16.msra.mxu0 0
  %2682 = vmatprep.subr.bf16.mxu0 0
  %2683 = vmatpush1.bf16.msra.mxu0 %v2655
  %2684 = vmatprep.subr.bf16.mxu0 0
  %2685 = vmatpush1.bf16.msra.mxu0 %v2654
  %2686 = vmatprep.subr.bf16.mxu0 0
  %2687 = vmatpush2.bf16.msra.mxu0 0
  %2688 = vmatprep.subr.bf16.mxu0 0
  %2689 = vmatpush2.bf16.msra.mxu0 0
  %2690 = vmatprep.subr.bf16.mxu0 0
  %2691 = vmatpush2.bf16.msra.mxu0 0
  %2692 = vmatprep.subr.bf16.mxu0 0
  %2693 = vmatpush2.bf16.msra.mxu0 0
  %2694 = vmatprep.subr.bf16.mxu0 0
  %2695 = vmatpush2.bf16.msra.mxu0 0
  %2696 = vmatprep.subr.bf16.mxu0 0
  %2697 = vmatpush2.bf16.msra.mxu0 0
  %2698 = vmatprep.subr.bf16.mxu0 0
  %2699 = vmatpush2.bf16.msra.mxu0 0
  %2700 = vmatprep.subr.bf16.mxu0 0
  %2701 = vmatpush2.bf16.msra.mxu0 0
  %2702 = vmatprep.mubr.bf16.mxu0 0
  %2703 = vmatmul.mubr.bf16.gmra.mxu0 %v2659
  %v2704 = vpop.f32.mrf.mxu0
  %v2705 = vadd.f32 %v2644, %v2704
  %v2706 = vpop.f32.mrf.mxu0
  %v2707 = vpop.f32.mrf.mxu0
  %v2708 = vadd.f32 %v2644, %v2707
  %v2709 = vpop.f32.mrf.mxu0
  %2710 = vmatprep.mubr.bf16.mxu0 0
  %2711 = vmatmul.mubr.bf16.gmra.mxu0 %v2662
  %v2712 = vpop.f32.mrf.mxu0
  %v2713 = vadd.f32 %v2644, %v2712
  %v2714 = vpop.f32.mrf.mxu0
  %v2715 = vpop.f32.mrf.mxu0
  %v2716 = vadd.f32 %v2644, %v2715
  %v2717 = vpop.f32.mrf.mxu0
  %2718 = vmatprep.mubr.bf16.mxu0 0
  %2719 = vmatmul.mubr.bf16.gmra.mxu0 %v2665
  %v2720 = vpop.f32.mrf.mxu0
  %v2721 = vadd.f32 %v2644, %v2720
  %v2722 = vpop.f32.mrf.mxu0
  %v2723 = vpop.f32.mrf.mxu0
  %v2724 = vadd.f32 %v2644, %v2723
  %v2725 = vpop.f32.mrf.mxu0
  %2726 = vmatprep.mubr.bf16.mxu0 0
  %2727 = vmatmul.mubr.bf16.gmra.mxu0 %v2668
  %v2728 = vpop.f32.mrf.mxu0
  %v2729 = vadd.f32 %v2644, %v2728
  %v2730 = vpop.f32.mrf.mxu0
  %v2731 = vpop.f32.mrf.mxu0
  %v2732 = vadd.f32 %v2644, %v2731
  %v2733 = vpop.f32.mrf.mxu0
  %2734 = vdwg.mxu0
  %vm2735 = vcmask 523264
  %2736 = vst.msk [vmem:[%s9] sm:$0xff] %vm2735, %v2705
  %2737 = vst.msk [vmem:[%s9 + $0x8] sm:$0xff] %vm2735, %v2708
  %2738 = vst.msk [vmem:[%s9 + $0x10] sm:$0xff] %vm2735, %v2713
  %2739 = vst.msk [vmem:[%s9 + $0x18] sm:$0xff] %vm2735, %v2716
  %2740 = vst.msk [vmem:[%s9 + $0x20] sm:$0xff] %vm2735, %v2721
  %2741 = vst.msk [vmem:[%s9 + $0x28] sm:$0xff] %vm2735, %v2724
  %2742 = vst.msk [vmem:[%s9 + $0x30] sm:$0xff] %vm2735, %v2729
  %2743 = vst.msk [vmem:[%s9 + $0x38] sm:$0xff] %vm2735, %v2732
  // Predicated region
  $region38: #{tt_rnn_forward.1} parent=0 // pred_check
    _
  $region39: #{tt_rnn_forward.1} parent=0 // pred_check_branch
    %2745 = sbr.rel (0) target = $region41
  $region40: #{tt_rnn_forward.1} parent=0 // pred_region
    _
  $region41: #{tt_rnn_forward.1} parent=0 // pred_fallthru
    _
  // Predicated region
  $region42: #{tt_rnn_forward.1} parent=0 // pred_check
    _
  $region43: #{tt_rnn_forward.1} parent=0 // pred_check_branch
    %2747 = sbr.rel (0) target = $region45
  $region44: #{tt_rnn_forward.1} parent=0 // pred_region
    _
  $region45: #{tt_rnn_forward.1} parent=0 // pred_fallthru
    _

</llo_original>
